<compile_context>
chip_gen: v6e
topology: v6e:2x2x1
jax: 0.10.0
libtpu: 0.0.40
codegen_flags: <defaults>
</compile_context>

<pallas_src>
import numpy as np
import jax
import jax.numpy as jnp
from jax.experimental import pallas as pl
from jax.experimental.pallas import tpu as pltpu

ANCHORS = [[10, 13, 16, 30, 33, 23],
           [30, 61, 62, 45, 59, 119],
           [116, 90, 156, 198, 373, 326]]
STRIDES = [4.0, 8.0, 16.0]   # mirrors the reference module (not the usual 8/16/32)
NC = 1
NKPT = 17
NO_DET = NC + 5              # 6
NO_KPT = 3 * NKPT            # 51
NO = NO_DET + NO_KPT         # 57
NA = len(ANCHORS[0]) // 2    # 3
NL = len(ANCHORS)            # 3

# per-position constant columns: [(gx-.5)*s, (gy-.5)*s, 4*aw, 4*ah, 2*s, pad..]
_C_BX, _C_BY, _C_AW4, _C_AH4, _C_S2 = range(5)
PC_W = 8


def _pos_consts_level(ny, nx, stride, anchors_level):
    """(na*ny*nx, PC_W) per-position decode constants for one level."""
    s = np.arange(ny * nx)
    gx = np.tile((s % nx).astype(np.float32), NA)
    gy = np.tile((s // nx).astype(np.float32), NA)
    aw = np.asarray([anchors_level[k][0] for k in range(NA)], np.float32)
    ah = np.asarray([anchors_level[k][1] for k in range(NA)], np.float32)
    a_idx = np.repeat(np.arange(NA), ny * nx)
    n = NA * ny * nx
    pc = np.zeros((n, PC_W), np.float32)
    pc[:, _C_BX] = (gx - 0.5) * stride
    pc[:, _C_BY] = (gy - 0.5) * stride
    pc[:, _C_AW4] = 4.0 * aw[a_idx]
    pc[:, _C_AH4] = 4.0 * ah[a_idx]
    pc[:, _C_S2] = 2.0 * stride
    return pc


def _decode_kernel(x_ref, pc_ref, o_ref):
    x = x_ref[0]                         # (T, NO) raw logits
    pc = pc_ref[...]                     # (T, PC_W)
    bx = pc[:, _C_BX:_C_BX + 1]
    by = pc[:, _C_BY:_C_BY + 1]
    aw4 = pc[:, _C_AW4:_C_AW4 + 1]
    ah4 = pc[:, _C_AH4:_C_AH4 + 1]
    s2 = pc[:, _C_S2:_C_S2 + 1]

    # Per-channel masks from a (1, NO) channel iota — a handful of ops on a
    # single vreg per grid step; avoids shipping/double-buffering any tables.
    c = jax.lax.broadcasted_iota(jnp.int32, (1, NO), 1)
    is_kpt = c >= NO_DET
    kmod = jnp.maximum(c - NO_DET, 0) % 3
    raw_m = is_kpt & (kmod != 2)                         # kpt x/y: raw logits
    isx_m = (c == 0) | (is_kpt & (kmod == 0))            # x-coordinate channels
    coord_m = isx_m | (c == 1) | (is_kpt & (kmod == 1))  # any coordinate channel
    isw_m = c == 2
    wh_m = (c == 2) | (c == 3)

    sig = jax.nn.sigmoid(x)
    base = jnp.where(raw_m, x, sig)                      # exact pass-through
    coord = base * s2 + jnp.where(isx_m, bx, by)         # (2v-0.5+g)*stride
    whv = (sig * sig) * jnp.where(isw_m, aw4, ah4)       # (2*sig)^2 * anchor
    o_ref[0] = jnp.where(coord_m, coord, jnp.where(wh_m, whv, sig))


def _choose_chunk(n_total, target):
    """Pick a sublane-aligned N-chunk; prefer an exact divisor (no padding)."""
    best = 0
    t = 8
    lim = min(target, n_total)
    while t <= lim:
        if n_total % t == 0:
            best = t
        t += 8
    if best > 0 and best >= max(8, min(n_total, target // 4)):
        return best, n_total
    t = min(target, ((n_total + 7) // 8) * 8)
    n_pad = ((n_total + t - 1) // t) * t
    return t, n_pad


def detect_pallas(xs, spatial, *, target_chunk=4096):
    """xs[i]: (bs, na, ny_i, nx_i, NO) float32 -> (bs, sum na*ny*nx, NO)."""
    bs = xs[0].shape[0]
    ns = [NA * ny * nx for ny, nx in spatial]
    n_total = int(sum(ns))

    # Pure reshapes (contiguous-dim collapse) + a single concat into the fused
    # (bs, n_total, NO) layout all levels share.
    x_all = jnp.concatenate([x.reshape(bs, n, NO) for x, n in zip(xs, ns)],
                            axis=1)

    pcs = []
    for i, (ny, nx) in enumerate(spatial):
        anchors_level = [(float(ANCHORS[i][2 * k]), float(ANCHORS[i][2 * k + 1]))
                         for k in range(NA)]
        pcs.append(_pos_consts_level(ny, nx, STRIDES[i], anchors_level))
    pc_all = np.concatenate(pcs, axis=0)

    t, n_pad = _choose_chunk(n_total, target_chunk)
    if n_pad != n_total:
        x_all = jnp.pad(x_all, ((0, 0), (0, n_pad - n_total), (0, 0)))
        pc_all = np.pad(pc_all, ((0, n_pad - n_total), (0, 0)))
    pc_all = jnp.asarray(pc_all)
    n_chunks = n_pad // t

    out = pl.pallas_call(
        _decode_kernel,
        out_shape=jax.ShapeDtypeStruct((bs, n_pad, NO), jnp.float32),
        grid_spec=pltpu.PrefetchScalarGridSpec(
            num_scalar_prefetch=0,
            grid=(bs, n_chunks),
            in_specs=[pl.BlockSpec((1, t, NO), lambda b, c: (b, c, 0)),
                      pl.BlockSpec((t, PC_W), lambda b, c: (c, 0))],
            out_specs=pl.BlockSpec((1, t, NO), lambda b, c: (b, c, 0)),
        ),
        compiler_params=pltpu.CompilerParams(
            dimension_semantics=("parallel", "parallel")),
    )(x_all, pc_all)

    return out[:, :n_total] if n_pad != n_total else out


# ---------------- pure-JAX reference (mirrors the PyTorch forward) ----------
def _ref_level(x, nx, ny, stride, anchors_level):
    bs, na, _, _, no = x.shape
    x_det = x[..., :NO_DET]
    x_kpt = x[..., NO_DET:]
    y = jax.nn.sigmoid(x_det)
    yv, xv = jnp.meshgrid(jnp.arange(ny), jnp.arange(nx), indexing="ij")
    grid = jnp.stack((xv, yv), 2).reshape(1, 1, ny, nx, 2).astype(jnp.float32)
    gx = grid[..., 0:1]
    gy = grid[..., 1:2]
    xy = (y[..., 0:2] * 2.0 - 0.5 + grid) * stride
    ag = jnp.array(anchors_level, jnp.float32).reshape(1, na, 1, 1, 2)
    wh = (y[..., 2:4] * 2.0) ** 2 * ag
    kx = (x_kpt[..., 0::3] * 2.0 - 0.5 + gx) * stride
    ky = (x_kpt[..., 1::3] * 2.0 - 0.5 + gy) * stride
    kc = jax.nn.sigmoid(x_kpt[..., 2::3])
    kpt = jnp.stack([kx, ky, kc], axis=-1).reshape(x_kpt.shape[:-1] + (NO_KPT,))
    out = jnp.concatenate((xy, wh, y[..., 4:], kpt), axis=-1)
    return out.reshape(bs, -1, NO)


def detect_ref(xs, spatial):
    z = []
    for i, (ny, nx) in enumerate(spatial):
        anchors_level = [(float(ANCHORS[i][2 * k]), float(ANCHORS[i][2 * k + 1]))
                         for k in range(NA)]
        z.append(_ref_level(xs[i], nx, ny, STRIDES[i], anchors_level))
    return jnp.concatenate(z, axis=1)


if __name__ == "__main__":
    bs = 2
    spatial = [(16, 16), (8, 8), (4, 4)]   # (ny, nx) per level, strides 4/8/16

    key = jax.random.PRNGKey(0)
    xs = []
    for (ny, nx) in spatial:
        key, sub = jax.random.split(key)
        xs.append(jax.random.normal(sub, (bs, NA, ny, nx, NO), jnp.float32))

    detect_fn = jax.jit(lambda x0, x1, x2: detect_pallas([x0, x1, x2], spatial))
    z = detect_fn(*xs)
    jax.block_until_ready(z)

    z_ref = detect_ref(xs, spatial)
    np.testing.assert_allclose(np.asarray(z), np.asarray(z_ref),
                               rtol=1e-5, atol=1e-4)
    assert z.shape == (bs, sum(NA * ny * nx for ny, nx in spatial), NO)
    print("KERNEL_OK")
</pallas_src>

<mosaic_0001>
module attributes {stable_mosaic.version = 11 : i64} {
  func.func @_decode_kernel(%arg0: i32, %arg1: i32, %arg2: memref<1x1008x57xf32, #tpu.memory_space<vmem>>, %arg3: memref<1008x8xf32, #tpu.memory_space<vmem>>, %arg4: memref<1x1008x57xf32, #tpu.memory_space<vmem>>) attributes {dimension_semantics = [#tpu.dimension_semantics<parallel>, #tpu.dimension_semantics<parallel>], iteration_bounds = array<i64: 2, 1>, scalar_prefetch = 0 : i64, scratch_operands = 0 : i64, tpu.core_type = #tpu.core_type<tc>, window_params = [{transform_indices = @transform_0, window_bounds = array<i64: 1, 1008, 57>}, {transform_indices = @transform_1, window_bounds = array<i64: 1008, 8>}, {transform_indices = @transform_2, window_bounds = array<i64: 1, 1008, 57>}]} {
    %c0 = arith.constant 0 : index
    %c0_0 = arith.constant 0 : index
    %c0_1 = arith.constant 0 : index
    %0 = vector.load %arg2[%c0, %c0_0, %c0_1] : memref<1x1008x57xf32, #tpu.memory_space<vmem>>, vector<1x1008x57xf32>
    %1 = vector.shape_cast %0 : vector<1x1008x57xf32> to vector<1008x57xf32>
    %c0_2 = arith.constant 0 : index
    %c0_3 = arith.constant 0 : index
    %2 = vector.load %arg3[%c0_2, %c0_3] : memref<1008x8xf32, #tpu.memory_space<vmem>>, vector<1008x8xf32>
    %3 = vector.extract_strided_slice %2 {offsets = [0, 0], sizes = [1008, 1], strides = [1, 1]} : vector<1008x8xf32> to vector<1008x1xf32>
    %4 = vector.extract_strided_slice %2 {offsets = [0, 1], sizes = [1008, 1], strides = [1, 1]} : vector<1008x8xf32> to vector<1008x1xf32>
    %5 = vector.extract_strided_slice %2 {offsets = [0, 2], sizes = [1008, 1], strides = [1, 1]} : vector<1008x8xf32> to vector<1008x1xf32>
    %6 = vector.extract_strided_slice %2 {offsets = [0, 3], sizes = [1008, 1], strides = [1, 1]} : vector<1008x8xf32> to vector<1008x1xf32>
    %7 = vector.extract_strided_slice %2 {offsets = [0, 4], sizes = [1008, 1], strides = [1, 1]} : vector<1008x8xf32> to vector<1008x1xf32>
    %8 = tpu.iota {dimensions = array<i32: 1>} : vector<1x57xi32>
    %c6_i32 = arith.constant 6 : i32
    %9 = vector.broadcast %c6_i32 : i32 to vector<1x57xi32>
    %10 = arith.cmpi sge, %8, %9 : vector<1x57xi32>
    %c6_i32_4 = arith.constant 6 : i32
    %11 = vector.broadcast %c6_i32_4 : i32 to vector<1x57xi32>
    %12 = arith.subi %8, %11 : vector<1x57xi32>
    %c0_i32 = arith.constant 0 : i32
    %13 = vector.broadcast %c0_i32 : i32 to vector<1x57xi32>
    %14 = arith.maxsi %12, %13 : vector<1x57xi32>
    %c3_i32 = arith.constant 3 : i32
    %c0_i32_5 = arith.constant 0 : i32
    %15 = arith.cmpi eq, %c3_i32, %c0_i32_5 : i32
    %c1_i32 = arith.constant 1 : i32
    %16 = arith.select %15, %c1_i32, %c3_i32 : i32
    %17 = vector.broadcast %16 : i32 to vector<1x57xi32>
    %18 = arith.remsi %14, %17 : vector<1x57xi32>
    %c0_i32_6 = arith.constant 0 : i32
    %19 = vector.broadcast %c0_i32_6 : i32 to vector<1x57xi32>
    %20 = arith.cmpi ne, %18, %19 : vector<1x57xi32>
    %c0_i32_7 = arith.constant 0 : i32
    %21 = vector.broadcast %c0_i32_7 : i32 to vector<1x57xi32>
    %22 = arith.cmpi slt, %18, %21 : vector<1x57xi32>
    %c0_i32_8 = arith.constant 0 : i32
    %23 = arith.cmpi slt, %16, %c0_i32_8 : i32
    %24 = vector.broadcast %23 : i1 to vector<1x57xi1>
    %25 = vector.broadcast %24 : vector<1x57xi1> to vector<1x57xi1>
    %26 = arith.xori %22, %25 : vector<1x57xi1>
    %27 = arith.andi %26, %20 : vector<1x57xi1>
    %28 = vector.broadcast %16 : i32 to vector<1x57xi32>
    %29 = arith.addi %18, %28 : vector<1x57xi32>
    %30 = arith.select %27, %29, %18 : vector<1x57xi1>, vector<1x57xi32>
    %c2_i32 = arith.constant 2 : i32
    %31 = vector.broadcast %c2_i32 : i32 to vector<1x57xi32>
    %32 = arith.cmpi ne, %30, %31 : vector<1x57xi32>
    %33 = arith.andi %10, %32 : vector<1x57xi1>
    %c0_i32_9 = arith.constant 0 : i32
    %34 = vector.broadcast %c0_i32_9 : i32 to vector<1x57xi32>
    %35 = arith.cmpi eq, %8, %34 : vector<1x57xi32>
    %c0_i32_10 = arith.constant 0 : i32
    %36 = vector.broadcast %c0_i32_10 : i32 to vector<1x57xi32>
    %37 = arith.cmpi eq, %30, %36 : vector<1x57xi32>
    %38 = arith.andi %10, %37 : vector<1x57xi1>
    %39 = arith.ori %35, %38 : vector<1x57xi1>
    %c1_i32_11 = arith.constant 1 : i32
    %40 = vector.broadcast %c1_i32_11 : i32 to vector<1x57xi32>
    %41 = arith.cmpi eq, %8, %40 : vector<1x57xi32>
    %42 = arith.ori %39, %41 : vector<1x57xi1>
    %c1_i32_12 = arith.constant 1 : i32
    %43 = vector.broadcast %c1_i32_12 : i32 to vector<1x57xi32>
    %44 = arith.cmpi eq, %30, %43 : vector<1x57xi32>
    %45 = arith.andi %10, %44 : vector<1x57xi1>
    %46 = arith.ori %42, %45 : vector<1x57xi1>
    %c2_i32_13 = arith.constant 2 : i32
    %47 = vector.broadcast %c2_i32_13 : i32 to vector<1x57xi32>
    %48 = arith.cmpi eq, %8, %47 : vector<1x57xi32>
    %c2_i32_14 = arith.constant 2 : i32
    %49 = vector.broadcast %c2_i32_14 : i32 to vector<1x57xi32>
    %50 = arith.cmpi eq, %8, %49 : vector<1x57xi32>
    %c3_i32_15 = arith.constant 3 : i32
    %51 = vector.broadcast %c3_i32_15 : i32 to vector<1x57xi32>
    %52 = arith.cmpi eq, %8, %51 : vector<1x57xi32>
    %53 = arith.ori %50, %52 : vector<1x57xi1>
    %54 = arith.negf %1 : vector<1008x57xf32>
    %55 = math.exp %54 : vector<1008x57xf32>
    %cst = arith.constant 1.000000e+00 : f32
    %56 = vector.broadcast %cst : f32 to vector<1008x57xf32>
    %57 = arith.addf %56, %55 : vector<1008x57xf32>
    %58 = arith.divf %56, %57 : vector<1008x57xf32>
    %59 = vector.shape_cast %33 : vector<1x57xi1> to vector<1x57xi1>
    %60 = vector.broadcast %59 : vector<1x57xi1> to vector<1008x57xi1>
    %61 = arith.select %60, %1, %58 : vector<1008x57xi1>, vector<1008x57xf32>
    %62 = vector.broadcast %7 : vector<1008x1xf32> to vector<1008x57xf32>
    %63 = arith.mulf %61, %62 : vector<1008x57xf32>
    %64 = vector.shape_cast %39 : vector<1x57xi1> to vector<1x57xi1>
    %65 = vector.broadcast %64 : vector<1x57xi1> to vector<1008x57xi1>
    %66 = vector.shape_cast %3 : vector<1008x1xf32> to vector<1008x1xf32>
    %67 = vector.broadcast %66 : vector<1008x1xf32> to vector<1008x57xf32>
    %68 = vector.shape_cast %4 : vector<1008x1xf32> to vector<1008x1xf32>
    %69 = vector.broadcast %68 : vector<1008x1xf32> to vector<1008x57xf32>
    %70 = arith.select %65, %67, %69 : vector<1008x57xi1>, vector<1008x57xf32>
    %71 = arith.addf %63, %70 : vector<1008x57xf32>
    %72 = arith.mulf %58, %58 : vector<1008x57xf32>
    %73 = vector.shape_cast %48 : vector<1x57xi1> to vector<1x57xi1>
    %74 = vector.broadcast %73 : vector<1x57xi1> to vector<1008x57xi1>
    %75 = vector.shape_cast %5 : vector<1008x1xf32> to vector<1008x1xf32>
    %76 = vector.broadcast %75 : vector<1008x1xf32> to vector<1008x57xf32>
    %77 = vector.shape_cast %6 : vector<1008x1xf32> to vector<1008x1xf32>
    %78 = vector.broadcast %77 : vector<1008x1xf32> to vector<1008x57xf32>
    %79 = arith.select %74, %76, %78 : vector<1008x57xi1>, vector<1008x57xf32>
    %80 = arith.mulf %72, %79 : vector<1008x57xf32>
    %81 = vector.shape_cast %53 : vector<1x57xi1> to vector<1x57xi1>
    %82 = vector.broadcast %81 : vector<1x57xi1> to vector<1008x57xi1>
    %83 = arith.select %82, %80, %58 : vector<1008x57xi1>, vector<1008x57xf32>
    %84 = vector.shape_cast %46 : vector<1x57xi1> to vector<1x57xi1>
    %85 = vector.broadcast %84 : vector<1x57xi1> to vector<1008x57xi1>
    %86 = arith.select %85, %71, %83 : vector<1008x57xi1>, vector<1008x57xf32>
    %c0_16 = arith.constant 0 : index
    %c0_17 = arith.constant 0 : index
    %c0_18 = arith.constant 0 : index
    %87 = vector.load %arg4[%c0_16, %c0_17, %c0_18] : memref<1x1008x57xf32, #tpu.memory_space<vmem>>, vector<1x1008x57xf32>
    %88 = vector.shape_cast %87 : vector<1x1008x57xf32> to vector<1008x57xf32>
    %89 = vector.shape_cast %86 : vector<1008x57xf32> to vector<1x1008x57xf32>
    tpu.vector_store %arg4[%c0_16, %c0_17, %c0_18], %89 {strides = array<i32>} : memref<1x1008x57xf32, #tpu.memory_space<vmem>>, vector<1x1008x57xf32>,
    return
  }
  func.func @transform_0(%arg0: i32, %arg1: i32) -> (i32, i32, i32) {
    %c0_i32 = arith.constant 0 : i32
    %c0_i32_0 = arith.constant 0 : i32
    return %arg0, %arg1, %c0_i32 : i32, i32, i32
  }
  func.func @transform_1(%arg0: i32, %arg1: i32) -> (i32, i32) {
    %c0_i32 = arith.constant 0 : i32
    %c0_i32_0 = arith.constant 0 : i32
    return %arg1, %c0_i32 : i32, i32
  }
  func.func @transform_2(%arg0: i32, %arg1: i32) -> (i32, i32, i32) {
    %c0_i32 = arith.constant 0 : i32
    %c0_i32_0 = arith.constant 0 : i32
    return %arg0, %arg1, %c0_i32 : i32, i32, i32
  }
}

</mosaic_0001>

<llo_original>
// kernel: _lambda_.1
$region0: #{_lambda_.1}
  #allocation0 [shape = 'u32[]', space=smem, size = 0x4, offset = 0x4, fixed_abs, tag = 'smem constant byte address 0x4 - core index']
  #allocation1 [shape = 'u32[144,128]{1,0:T(1,128)}', space=vmem, size = 0x12000, scoped, tag = 'internal scratch']
  %s0 = inlined_call_operand.vmem [shape: f32[2,1008,57], index: 0, kind: input, shape index: {}]
  %s1 = inlined_call_operand.vmem [shape: f32[1008,8], index: 1, kind: input, shape index: {}]
  %s2 = inlined_call_operand.vmem [shape: f32[2,1008,57], index: 2, kind: output, shape index: {}]
  %s3 = sld [smem:[#allocation0]]
  $region41: #{_lambda_.1} parent=0
    _
  %s5 = ssub.s32 1, %s3
  %s6 = scalar_select 0, %s5, %s3
  loop: start=0, step=1, limit=4
  $region2: #{_lambda_.1} parent=0 // loop_pre_header
    _
  $region3: #{_lambda_.1} parent=0 // loop_header
    %s8 = sphi 0, %s12
    %p9 = scmp.ge.s32.totalorder %s8, 4
    %s15 = sphi 0, %s27
    %s16 = sphi 0, %s23
    %s17 = sphi 0, %s15
    %s18 = sphi 0, %s16
    %s19 = sphi 0, %s17
    %s20 = sphi 0, %s18
    %s32 = sphi 0, %s34
    %s35 = sphi 0, %s32
    %s36 = sphi 0, %s35
    %s52 = sphi 0, %s36
    %s58 = sphi 0, %s60
    %s61 = sphi 0, %s58
    %s62 = sphi 0, %s61
    %s78 = sphi 0, %s62
    %s86 = sphi 0, %s88
    %s89 = sphi 0, %s86
    %s90 = sphi 0, %s89
    %s106 = sphi 0, %s90
  $region4: #{_lambda_.1} parent=0 // loop_header_branch
    %11 = sbr.rel (%p9) target = $region8
  $region5: #{_lambda_.1} parent=0 // loop_body
    %s13 = ssub.s32 %s8, 1
    %s14 = ssub.s32 %s8, 2
    %s21 = sadd.s32 1, %s16
    %p22 = scmp.ge.s32.totalorder %s21, 1
    %s23 = scalar_select %p22, 0, %s21
    %s24 = sadd.s32 1, %s15
    %s25 = scalar_select %p22, %s24, %s15
    %p26 = scmp.ge.s32.totalorder %s25, 2
    %s27 = scalar_select %p26, 0, %s25
    %s28 = ssub.s32 %s15, %s27
    %s29 = ssub.s32 %s16, %s23
    %s30 = sor.u32 %s28, %s29
    %p31 = scmp.eq.s32.totalorder %s30, 0
    %s33 = sadd.s32 %s32, 1
    %s34 = scalar_select %p31, %s32, %s33
    %p37 = pneg %p31
    %p38 = scmp.eq.s32.totalorder %s8, 1
    %p39 = por %p37, %p38
    %p40 = scmp.ne.s32.totalorder %s32, %s35
    %p41 = scmp.eq.s32.totalorder %s8, 0
    %p42 = por %p40, %p41
    %p43 = scmp.ne.s32.totalorder %s32, %s35
    %p44 = scmp.eq.s32.totalorder %s13, 1
    %p45 = por %p43, %p44
    %p46 = scmp.ne.s32.totalorder %s35, %s36
    %p47 = scmp.eq.s32.totalorder %s13, 0
    %p48 = por %p46, %p47
    %p49 = scmp.ne.s32.totalorder %s35, %s36
    %p50 = scmp.eq.s32.totalorder %s14, 1
    %p51 = por %p49, %p50
    %p53 = scmp.ne.s32.totalorder %s36, %s52
    %p54 = scmp.eq.s32.totalorder %s14, 0
    %p55 = por %p53, %p54
    %s56 = ssub.s32 %s16, %s23
    %p57 = scmp.eq.s32.totalorder %s56, 0
    %s59 = sadd.s32 %s58, 1
    %s60 = scalar_select %p57, %s58, %s59
    %p63 = pneg %p57
    %p64 = scmp.eq.s32.totalorder %s8, 1
    %p65 = por %p63, %p64
    %p66 = scmp.ne.s32.totalorder %s58, %s61
    %p67 = scmp.eq.s32.totalorder %s8, 0
    %p68 = por %p66, %p67
    %p69 = scmp.ne.s32.totalorder %s58, %s61
    %p70 = scmp.eq.s32.totalorder %s13, 1
    %p71 = por %p69, %p70
    %p72 = scmp.ne.s32.totalorder %s61, %s62
    %p73 = scmp.eq.s32.totalorder %s13, 0
    %p74 = por %p72, %p73
    %p75 = scmp.ne.s32.totalorder %s61, %s62
    %p76 = scmp.eq.s32.totalorder %s14, 1
    %p77 = por %p75, %p76
    %p79 = scmp.ne.s32.totalorder %s62, %s78
    %p80 = scmp.eq.s32.totalorder %s14, 0
    %p81 = por %p79, %p80
    %s82 = ssub.s32 %s15, %s27
    %s83 = ssub.s32 %s16, %s23
    %s84 = sor.u32 %s82, %s83
    %p85 = scmp.eq.s32.totalorder %s84, 0
    %s87 = sadd.s32 %s86, 1
    %s88 = scalar_select %p85, %s86, %s87
    %p91 = pneg %p85
    %p92 = scmp.eq.s32.totalorder %s8, 1
    %p93 = por %p91, %p92
    %p94 = scmp.ne.s32.totalorder %s86, %s89
    %p95 = scmp.eq.s32.totalorder %s8, 0
    %p96 = por %p94, %p95
    %p97 = scmp.ne.s32.totalorder %s86, %s89
    %p98 = scmp.eq.s32.totalorder %s13, 1
    %p99 = por %p97, %p98
    %p100 = scmp.ne.s32.totalorder %s89, %s90
    %p101 = scmp.eq.s32.totalorder %s13, 0
    %p102 = por %p100, %p101
    %p103 = scmp.ne.s32.totalorder %s89, %s90
    %p104 = scmp.eq.s32.totalorder %s14, 1
    %p105 = por %p103, %p104
    %p107 = scmp.ne.s32.totalorder %s90, %s106
    %p108 = scmp.eq.s32.totalorder %s14, 0
    %p109 = por %p107, %p108
    %p110 = scmp.le.s32.totalorder 1, %s8
    %p111 = scmp.lt.s32.totalorder %s8, 3
    %p112 = pnand %p110, %p111
    %p113 = pneg %p112
    // Predicated region
    $region9: #{_lambda_.1} parent=5 // pred_check
      _
    $region10: #{_lambda_.1} parent=5 // pred_check_branch
      %115 = sbr.rel (%p112) target = $region12
    $region11: #{_lambda_.1} parent=5 // pred_region
      %s116 = ssub.s32 %s8, 1
      // Predicated region
      $region13: #{_lambda_.1} parent=11 // pred_check
        %p117 = pneg %p74
      $region14: #{_lambda_.1} parent=11 // pred_check_branch
        %119 = sbr.rel (%p117) target = $region16
      $region15: #{_lambda_.1} parent=11 // pred_region
        %s120 = smul.u32 126, %s18
        %p121 = scmp.lt.s32.totalorder %s120, 125
        %s122 = scalar_select %p121, %s120, 125
        %s123 = smul.addr %s122, 8
        %s124 = scalar_lea.vmem %s1, %s123
        %s125 = smul.u32 126, %s18
      $region16: #{_lambda_.1} parent=11 // pred_fallthru
        _
    $region12: #{_lambda_.1} parent=5 // pred_fallthru
      _
    %p126 = scmp.lt.s32.totalorder %s8, 2
    // Predicated region
    $region17: #{_lambda_.1} parent=5 // pred_check
      %p127 = pneg %p126
    $region18: #{_lambda_.1} parent=5 // pred_check_branch
      %129 = sbr.rel (%p127) target = $region20
    $region19: #{_lambda_.1} parent=5 // pred_region
      // Predicated region
      $region21: #{_lambda_.1} parent=19 // pred_check
        %p130 = pneg %p42
      $region22: #{_lambda_.1} parent=19 // pred_check_branch
        %132 = sbr.rel (%p130) target = $region24
      $region23: #{_lambda_.1} parent=19 // pred_region
        %s133 = smul.u32 126, %s16
        %p134 = scmp.lt.s32.totalorder %s15, 1
        %s135 = scalar_select %p134, %s15, 1
        %p136 = scmp.lt.s32.totalorder %s133, 125
        %s137 = scalar_select %p136, %s133, 125
        %s138 = smul.addr %s135, 126
        %s139 = sadd.s32 %s137, %s138
        %s140 = smul.addr %s139, 8
        %s141 = scalar_lea.vmem %s0, %s140
        %s142 = smul.u32 126, %s16
      $region24: #{_lambda_.1} parent=19 // pred_fallthru
        _
    $region20: #{_lambda_.1} parent=5 // pred_fallthru
      _
    %p143 = scmp.le.s32.totalorder 1, %s8
    %p144 = scmp.lt.s32.totalorder %s8, 3
    %p145 = pnand %p143, %p144
    %p146 = pneg %p145
    // Predicated region
    $region25: #{_lambda_.1} parent=5 // pred_check
      _
    $region26: #{_lambda_.1} parent=5 // pred_check_branch
      %148 = sbr.rel (%p145) target = $region28
    $region27: #{_lambda_.1} parent=5 // pred_region
      %s149 = ssub.s32 %s8, 1
      %s150 = smul.u32 126, %s18
      %p151 = scmp.lt.s32.totalorder %s17, 1
      %s152 = scalar_select %p151, %s17, 1
      %p153 = scmp.lt.s32.totalorder %s150, 125
      %s154 = scalar_select %p153, %s150, 125
      %s155 = smul.addr %s152, 126
      %s156 = sadd.s32 %s154, %s155
      %s157 = smul.addr %s156, 8
      %s158 = scalar_lea.vmem %s0, %s157
      %p159 = pneg %p48
      %p160 = pneg %p45
      %s161 = smul.u32 126, %s18
      %p162 = scmp.lt.s32.totalorder %s161, 125
      %s163 = scalar_select %p162, %s161, 125
      %s164 = smul.addr %s163, 8
      %s165 = scalar_lea.vmem %s1, %s164
      %p166 = pneg %p74
      %p167 = pneg %p71
      %p168 = pneg %p102
      %p169 = pneg %p99
      %s170 = smul.u32 126, %s18
      %p171 = scmp.lt.s32.totalorder %s17, 1
      %s172 = scalar_select %p171, %s17, 1
      %p173 = scmp.lt.s32.totalorder %s170, 125
      %s174 = scalar_select %p173, %s170, 125
      %s175 = smul.addr %s172, 126
      %s176 = sadd.s32 %s174, %s175
      %s177 = smul.addr %s176, 8
      %s178 = scalar_lea.vmem %s2, %s177
      %s179 = smul.u32 126, %s18
      %p180 = scmp.lt.s32.totalorder %s17, 1
      %s181 = scalar_select %p180, %s17, 1
      %p182 = scmp.lt.s32.totalorder %s179, 125
      %s183 = scalar_select %p182, %s179, 125
      %s184 = smul.addr %s181, 126
      %s185 = sadd.s32 %s183, %s184
      %s186 = smul.addr %s185, 8
      %s187 = scalar_lea.vmem %s0, %s186
      %s188 = smul.u32 126, %s18
      %s189 = smul.u32 126, %s18
      %p190 = scmp.lt.s32.totalorder %s189, 125
      %s191 = scalar_select %p190, %s189, 125
      %s192 = smul.addr %s191, 8
      %s193 = scalar_lea.vmem %s1, %s192
      %s194 = smul.u32 126, %s18
      %s195 = smul.u32 126, %s18
      %p196 = scmp.lt.s32.totalorder %s17, 1
      %s197 = scalar_select %p196, %s17, 1
      %p198 = scmp.lt.s32.totalorder %s195, 125
      %s199 = scalar_select %p198, %s195, 125
      %s200 = smul.addr %s197, 126
      %s201 = sadd.s32 %s199, %s200
      %s202 = smul.addr %s201, 8
      %s203 = scalar_lea.vmem %s2, %s202
      %s204 = smul.u32 126, %s18
      %v205 = vld [vmem:[%s187] sm:$0xff]
      %v206 = vld [vmem:[%s187 + $0x8] sm:$0xff]
      %v207 = vld [vmem:[%s187 + $0x10] sm:$0xff]
      %v208 = vld [vmem:[%s187 + $0x18] sm:$0xff]
      %v209 = vld [vmem:[%s187 + $0x20] sm:$0xff]
      %v210 = vld [vmem:[%s187 + $0x28] sm:$0xff]
      %v211 = vld [vmem:[%s187 + $0x30] sm:$0xff]
      %v212 = vld [vmem:[%s187 + $0x38] sm:$0xff]
      %v213 = vld [vmem:[%s187 + $0x40] sm:$0xff]
      %v214 = vld [vmem:[%s187 + $0x48] sm:$0xff]
      %v215 = vld [vmem:[%s187 + $0x50] sm:$0xff]
      %v216 = vld [vmem:[%s187 + $0x58] sm:$0xff]
      %v217 = vld [vmem:[%s187 + $0x60] sm:$0xff]
      %v218 = vld [vmem:[%s187 + $0x68] sm:$0xff]
      %v219 = vld [vmem:[%s187 + $0x70] sm:$0xff]
      %v220 = vld [vmem:[%s187 + $0x78] sm:$0xff]
      %v221 = vld [vmem:[%s187 + $0x80] sm:$0xff]
      %v222 = vld [vmem:[%s187 + $0x88] sm:$0xff]
      %v223 = vld [vmem:[%s187 + $0x90] sm:$0xff]
      %v224 = vld [vmem:[%s187 + $0x98] sm:$0xff]
      %v225 = vld [vmem:[%s187 + $0xa0] sm:$0xff]
      %v226 = vld [vmem:[%s187 + $0xa8] sm:$0xff]
      %v227 = vld [vmem:[%s187 + $0xb0] sm:$0xff]
      %v228 = vld [vmem:[%s187 + $0xb8] sm:$0xff]
      %v229 = vld [vmem:[%s187 + $0xc0] sm:$0xff]
      %v230 = vld [vmem:[%s187 + $0xc8] sm:$0xff]
      %v231 = vld [vmem:[%s187 + $0xd0] sm:$0xff]
      %v232 = vld [vmem:[%s187 + $0xd8] sm:$0xff]
      %v233 = vld [vmem:[%s187 + $0xe0] sm:$0xff]
      %v234 = vld [vmem:[%s187 + $0xe8] sm:$0xff]
      %v235 = vld [vmem:[%s187 + $0xf0] sm:$0xff]
      %v236 = vld [vmem:[%s187 + $0xf8] sm:$0xff]
      %v237 = vld [vmem:[%s187 + $0x100] sm:$0xff]
      %v238 = vld [vmem:[%s187 + $0x108] sm:$0xff]
      %v239 = vld [vmem:[%s187 + $0x110] sm:$0xff]
      %v240 = vld [vmem:[%s187 + $0x118] sm:$0xff]
      %v241 = vld [vmem:[%s187 + $0x120] sm:$0xff]
      %v242 = vld [vmem:[%s187 + $0x128] sm:$0xff]
      %v243 = vld [vmem:[%s187 + $0x130] sm:$0xff]
      %v244 = vld [vmem:[%s187 + $0x138] sm:$0xff]
      %v245 = vld [vmem:[%s187 + $0x140] sm:$0xff]
      %v246 = vld [vmem:[%s187 + $0x148] sm:$0xff]
      %v247 = vld [vmem:[%s187 + $0x150] sm:$0xff]
      %v248 = vld [vmem:[%s187 + $0x158] sm:$0xff]
      %v249 = vld [vmem:[%s187 + $0x160] sm:$0xff]
      %v250 = vld [vmem:[%s187 + $0x168] sm:$0xff]
      %v251 = vld [vmem:[%s187 + $0x170] sm:$0xff]
      %v252 = vld [vmem:[%s187 + $0x178] sm:$0xff]
      %v253 = vld [vmem:[%s187 + $0x180] sm:$0xff]
      %v254 = vld [vmem:[%s187 + $0x188] sm:$0xff]
      %v255 = vld [vmem:[%s187 + $0x190] sm:$0xff]
      %v256 = vld [vmem:[%s187 + $0x198] sm:$0xff]
      %v257 = vld [vmem:[%s187 + $0x1a0] sm:$0xff]
      %v258 = vld [vmem:[%s187 + $0x1a8] sm:$0xff]
      %v259 = vld [vmem:[%s187 + $0x1b0] sm:$0xff]
      %v260 = vld [vmem:[%s187 + $0x1b8] sm:$0xff]
      %v261 = vld [vmem:[%s187 + $0x1c0] sm:$0xff]
      %v262 = vld [vmem:[%s187 + $0x1c8] sm:$0xff]
      %v263 = vld [vmem:[%s187 + $0x1d0] sm:$0xff]
      %v264 = vld [vmem:[%s187 + $0x1d8] sm:$0xff]
      %v265 = vld [vmem:[%s187 + $0x1e0] sm:$0xff]
      %v266 = vld [vmem:[%s187 + $0x1e8] sm:$0xff]
      %v267 = vld [vmem:[%s187 + $0x1f0] sm:$0xff]
      %v268 = vld [vmem:[%s187 + $0x1f8] sm:$0xff]
      %v269 = vld [vmem:[%s187 + $0x200] sm:$0xff]
      %v270 = vld [vmem:[%s187 + $0x208] sm:$0xff]
      %v271 = vld [vmem:[%s187 + $0x210] sm:$0xff]
      %v272 = vld [vmem:[%s187 + $0x218] sm:$0xff]
      %v273 = vld [vmem:[%s187 + $0x220] sm:$0xff]
      %v274 = vld [vmem:[%s187 + $0x228] sm:$0xff]
      %v275 = vld [vmem:[%s187 + $0x230] sm:$0xff]
      %v276 = vld [vmem:[%s187 + $0x238] sm:$0xff]
      %v277 = vld [vmem:[%s187 + $0x240] sm:$0xff]
      %v278 = vld [vmem:[%s187 + $0x248] sm:$0xff]
      %v279 = vld [vmem:[%s187 + $0x250] sm:$0xff]
      %v280 = vld [vmem:[%s187 + $0x258] sm:$0xff]
      %v281 = vld [vmem:[%s187 + $0x260] sm:$0xff]
      %v282 = vld [vmem:[%s187 + $0x268] sm:$0xff]
      %v283 = vld [vmem:[%s187 + $0x270] sm:$0xff]
      %v284 = vld [vmem:[%s187 + $0x278] sm:$0xff]
      %v285 = vld [vmem:[%s187 + $0x280] sm:$0xff]
      %v286 = vld [vmem:[%s187 + $0x288] sm:$0xff]
      %v287 = vld [vmem:[%s187 + $0x290] sm:$0xff]
      %v288 = vld [vmem:[%s187 + $0x298] sm:$0xff]
      %v289 = vld [vmem:[%s187 + $0x2a0] sm:$0xff]
      %v290 = vld [vmem:[%s187 + $0x2a8] sm:$0xff]
      %v291 = vld [vmem:[%s187 + $0x2b0] sm:$0xff]
      %v292 = vld [vmem:[%s187 + $0x2b8] sm:$0xff]
      %v293 = vld [vmem:[%s187 + $0x2c0] sm:$0xff]
      %v294 = vld [vmem:[%s187 + $0x2c8] sm:$0xff]
      %v295 = vld [vmem:[%s187 + $0x2d0] sm:$0xff]
      %v296 = vld [vmem:[%s187 + $0x2d8] sm:$0xff]
      %v297 = vld [vmem:[%s187 + $0x2e0] sm:$0xff]
      %v298 = vld [vmem:[%s187 + $0x2e8] sm:$0xff]
      %v299 = vld [vmem:[%s187 + $0x2f0] sm:$0xff]
      %v300 = vld [vmem:[%s187 + $0x2f8] sm:$0xff]
      %v301 = vld [vmem:[%s187 + $0x300] sm:$0xff]
      %v302 = vld [vmem:[%s187 + $0x308] sm:$0xff]
      %v303 = vld [vmem:[%s187 + $0x310] sm:$0xff]
      %v304 = vld [vmem:[%s187 + $0x318] sm:$0xff]
      %v305 = vld [vmem:[%s187 + $0x320] sm:$0xff]
      %v306 = vld [vmem:[%s187 + $0x328] sm:$0xff]
      %v307 = vld [vmem:[%s187 + $0x330] sm:$0xff]
      %v308 = vld [vmem:[%s187 + $0x338] sm:$0xff]
      %v309 = vld [vmem:[%s187 + $0x340] sm:$0xff]
      %v310 = vld [vmem:[%s187 + $0x348] sm:$0xff]
      %v311 = vld [vmem:[%s187 + $0x350] sm:$0xff]
      %v312 = vld [vmem:[%s187 + $0x358] sm:$0xff]
      %v313 = vld [vmem:[%s187 + $0x360] sm:$0xff]
      %v314 = vld [vmem:[%s187 + $0x368] sm:$0xff]
      %v315 = vld [vmem:[%s187 + $0x370] sm:$0xff]
      %v316 = vld [vmem:[%s187 + $0x378] sm:$0xff]
      %v317 = vld [vmem:[%s187 + $0x380] sm:$0xff]
      %v318 = vld [vmem:[%s187 + $0x388] sm:$0xff]
      %v319 = vld [vmem:[%s187 + $0x390] sm:$0xff]
      %v320 = vld [vmem:[%s187 + $0x398] sm:$0xff]
      %v321 = vld [vmem:[%s187 + $0x3a0] sm:$0xff]
      %v322 = vld [vmem:[%s187 + $0x3a8] sm:$0xff]
      %v323 = vld [vmem:[%s187 + $0x3b0] sm:$0xff]
      %v324 = vld [vmem:[%s187 + $0x3b8] sm:$0xff]
      %v325 = vld [vmem:[%s187 + $0x3c0] sm:$0xff]
      %v326 = vld [vmem:[%s187 + $0x3c8] sm:$0xff]
      %v327 = vld [vmem:[%s187 + $0x3d0] sm:$0xff]
      %v328 = vld [vmem:[%s187 + $0x3d8] sm:$0xff]
      %v329 = vld [vmem:[%s187 + $0x3e0] sm:$0xff]
      %v330 = vld [vmem:[%s187 + $0x3e8] sm:$0xff]
      %v331 = vld [vmem:[%s193] sm:$0xff]
      %v332 = vld [vmem:[%s193 + $0x8] sm:$0xff]
      %v333 = vld [vmem:[%s193 + $0x10] sm:$0xff]
      %v334 = vld [vmem:[%s193 + $0x18] sm:$0xff]
      %v335 = vld [vmem:[%s193 + $0x20] sm:$0xff]
      %v336 = vld [vmem:[%s193 + $0x28] sm:$0xff]
      %v337 = vld [vmem:[%s193 + $0x30] sm:$0xff]
      %v338 = vld [vmem:[%s193 + $0x38] sm:$0xff]
      %v339 = vld [vmem:[%s193 + $0x40] sm:$0xff]
      %v340 = vld [vmem:[%s193 + $0x48] sm:$0xff]
      %v341 = vld [vmem:[%s193 + $0x50] sm:$0xff]
      %v342 = vld [vmem:[%s193 + $0x58] sm:$0xff]
      %v343 = vld [vmem:[%s193 + $0x60] sm:$0xff]
      %v344 = vld [vmem:[%s193 + $0x68] sm:$0xff]
      %v345 = vld [vmem:[%s193 + $0x70] sm:$0xff]
      %v346 = vld [vmem:[%s193 + $0x78] sm:$0xff]
      %v347 = vld [vmem:[%s193 + $0x80] sm:$0xff]
      %v348 = vld [vmem:[%s193 + $0x88] sm:$0xff]
      %v349 = vld [vmem:[%s193 + $0x90] sm:$0xff]
      %v350 = vld [vmem:[%s193 + $0x98] sm:$0xff]
      %v351 = vld [vmem:[%s193 + $0xa0] sm:$0xff]
      %v352 = vld [vmem:[%s193 + $0xa8] sm:$0xff]
      %v353 = vld [vmem:[%s193 + $0xb0] sm:$0xff]
      %v354 = vld [vmem:[%s193 + $0xb8] sm:$0xff]
      %v355 = vld [vmem:[%s193 + $0xc0] sm:$0xff]
      %v356 = vld [vmem:[%s193 + $0xc8] sm:$0xff]
      %v357 = vld [vmem:[%s193 + $0xd0] sm:$0xff]
      %v358 = vld [vmem:[%s193 + $0xd8] sm:$0xff]
      %v359 = vld [vmem:[%s193 + $0xe0] sm:$0xff]
      %v360 = vld [vmem:[%s193 + $0xe8] sm:$0xff]
      %v361 = vld [vmem:[%s193 + $0xf0] sm:$0xff]
      %v362 = vld [vmem:[%s193 + $0xf8] sm:$0xff]
      %v363 = vld [vmem:[%s193 + $0x100] sm:$0xff]
      %v364 = vld [vmem:[%s193 + $0x108] sm:$0xff]
      %v365 = vld [vmem:[%s193 + $0x110] sm:$0xff]
      %v366 = vld [vmem:[%s193 + $0x118] sm:$0xff]
      %v367 = vld [vmem:[%s193 + $0x120] sm:$0xff]
      %v368 = vld [vmem:[%s193 + $0x128] sm:$0xff]
      %v369 = vld [vmem:[%s193 + $0x130] sm:$0xff]
      %v370 = vld [vmem:[%s193 + $0x138] sm:$0xff]
      %v371 = vld [vmem:[%s193 + $0x140] sm:$0xff]
      %v372 = vld [vmem:[%s193 + $0x148] sm:$0xff]
      %v373 = vld [vmem:[%s193 + $0x150] sm:$0xff]
      %v374 = vld [vmem:[%s193 + $0x158] sm:$0xff]
      %v375 = vld [vmem:[%s193 + $0x160] sm:$0xff]
      %v376 = vld [vmem:[%s193 + $0x168] sm:$0xff]
      %v377 = vld [vmem:[%s193 + $0x170] sm:$0xff]
      %v378 = vld [vmem:[%s193 + $0x178] sm:$0xff]
      %v379 = vld [vmem:[%s193 + $0x180] sm:$0xff]
      %v380 = vld [vmem:[%s193 + $0x188] sm:$0xff]
      %v381 = vld [vmem:[%s193 + $0x190] sm:$0xff]
      %v382 = vld [vmem:[%s193 + $0x198] sm:$0xff]
      %v383 = vld [vmem:[%s193 + $0x1a0] sm:$0xff]
      %v384 = vld [vmem:[%s193 + $0x1a8] sm:$0xff]
      %v385 = vld [vmem:[%s193 + $0x1b0] sm:$0xff]
      %v386 = vld [vmem:[%s193 + $0x1b8] sm:$0xff]
      %v387 = vld [vmem:[%s193 + $0x1c0] sm:$0xff]
      %v388 = vld [vmem:[%s193 + $0x1c8] sm:$0xff]
      %v389 = vld [vmem:[%s193 + $0x1d0] sm:$0xff]
      %v390 = vld [vmem:[%s193 + $0x1d8] sm:$0xff]
      %v391 = vld [vmem:[%s193 + $0x1e0] sm:$0xff]
      %v392 = vld [vmem:[%s193 + $0x1e8] sm:$0xff]
      %v393 = vld [vmem:[%s193 + $0x1f0] sm:$0xff]
      %v394 = vld [vmem:[%s193 + $0x1f8] sm:$0xff]
      %v395 = vld [vmem:[%s193 + $0x200] sm:$0xff]
      %v396 = vld [vmem:[%s193 + $0x208] sm:$0xff]
      %v397 = vld [vmem:[%s193 + $0x210] sm:$0xff]
      %v398 = vld [vmem:[%s193 + $0x218] sm:$0xff]
      %v399 = vld [vmem:[%s193 + $0x220] sm:$0xff]
      %v400 = vld [vmem:[%s193 + $0x228] sm:$0xff]
      %v401 = vld [vmem:[%s193 + $0x230] sm:$0xff]
      %v402 = vld [vmem:[%s193 + $0x238] sm:$0xff]
      %v403 = vld [vmem:[%s193 + $0x240] sm:$0xff]
      %v404 = vld [vmem:[%s193 + $0x248] sm:$0xff]
      %v405 = vld [vmem:[%s193 + $0x250] sm:$0xff]
      %v406 = vld [vmem:[%s193 + $0x258] sm:$0xff]
      %v407 = vld [vmem:[%s193 + $0x260] sm:$0xff]
      %v408 = vld [vmem:[%s193 + $0x268] sm:$0xff]
      %v409 = vld [vmem:[%s193 + $0x270] sm:$0xff]
      %v410 = vld [vmem:[%s193 + $0x278] sm:$0xff]
      %v411 = vld [vmem:[%s193 + $0x280] sm:$0xff]
      %v412 = vld [vmem:[%s193 + $0x288] sm:$0xff]
      %v413 = vld [vmem:[%s193 + $0x290] sm:$0xff]
      %v414 = vld [vmem:[%s193 + $0x298] sm:$0xff]
      %v415 = vld [vmem:[%s193 + $0x2a0] sm:$0xff]
      %v416 = vld [vmem:[%s193 + $0x2a8] sm:$0xff]
      %v417 = vld [vmem:[%s193 + $0x2b0] sm:$0xff]
      %v418 = vld [vmem:[%s193 + $0x2b8] sm:$0xff]
      %v419 = vld [vmem:[%s193 + $0x2c0] sm:$0xff]
      %v420 = vld [vmem:[%s193 + $0x2c8] sm:$0xff]
      %v421 = vld [vmem:[%s193 + $0x2d0] sm:$0xff]
      %v422 = vld [vmem:[%s193 + $0x2d8] sm:$0xff]
      %v423 = vld [vmem:[%s193 + $0x2e0] sm:$0xff]
      %v424 = vld [vmem:[%s193 + $0x2e8] sm:$0xff]
      %v425 = vld [vmem:[%s193 + $0x2f0] sm:$0xff]
      %v426 = vld [vmem:[%s193 + $0x2f8] sm:$0xff]
      %v427 = vld [vmem:[%s193 + $0x300] sm:$0xff]
      %v428 = vld [vmem:[%s193 + $0x308] sm:$0xff]
      %v429 = vld [vmem:[%s193 + $0x310] sm:$0xff]
      %v430 = vld [vmem:[%s193 + $0x318] sm:$0xff]
      %v431 = vld [vmem:[%s193 + $0x320] sm:$0xff]
      %v432 = vld [vmem:[%s193 + $0x328] sm:$0xff]
      %v433 = vld [vmem:[%s193 + $0x330] sm:$0xff]
      %v434 = vld [vmem:[%s193 + $0x338] sm:$0xff]
      %v435 = vld [vmem:[%s193 + $0x340] sm:$0xff]
      %v436 = vld [vmem:[%s193 + $0x348] sm:$0xff]
      %v437 = vld [vmem:[%s193 + $0x350] sm:$0xff]
      %v438 = vld [vmem:[%s193 + $0x358] sm:$0xff]
      %v439 = vld [vmem:[%s193 + $0x360] sm:$0xff]
      %v440 = vld [vmem:[%s193 + $0x368] sm:$0xff]
      %v441 = vld [vmem:[%s193 + $0x370] sm:$0xff]
      %v442 = vld [vmem:[%s193 + $0x378] sm:$0xff]
      %v443 = vld [vmem:[%s193 + $0x380] sm:$0xff]
      %v444 = vld [vmem:[%s193 + $0x388] sm:$0xff]
      %v445 = vld [vmem:[%s193 + $0x390] sm:$0xff]
      %v446 = vld [vmem:[%s193 + $0x398] sm:$0xff]
      %v447 = vld [vmem:[%s193 + $0x3a0] sm:$0xff]
      %v448 = vld [vmem:[%s193 + $0x3a8] sm:$0xff]
      %v449 = vld [vmem:[%s193 + $0x3b0] sm:$0xff]
      %v450 = vld [vmem:[%s193 + $0x3b8] sm:$0xff]
      %v451 = vld [vmem:[%s193 + $0x3c0] sm:$0xff]
      %v452 = vld [vmem:[%s193 + $0x3c8] sm:$0xff]
      %v453 = vld [vmem:[%s193 + $0x3d0] sm:$0xff]
      %v454 = vld [vmem:[%s193 + $0x3d8] sm:$0xff]
      %v455 = vld [vmem:[%s193 + $0x3e0] sm:$0xff]
      %v456 = vld [vmem:[%s193 + $0x3e8] sm:$0xff]
      %v457 = vlaneseq
      %v458 = vand.u32 %v457, 127
      %vm459 = vcmp.ge.s32.totalorder %v458, 6
      %v460 = vsub.s32 %v458, 6
      %vm461 = vcmp.gt.s32.totalorder %v460, 0
      %v462 = vsel %vm461, %v460, 0
      %vm463 = vcmp.lt.s32.totalorder %v462, 0
      %v464 = vsub.s32 0, %v462
      %v465 = vsel %vm463, %v464, %v462
      %v466 = vmul.u32.u64.compose %v465, 2863311531
      %v467 = vextract.low.u32 %v466
      %v468 = vextract.high.u32 %v466
      %v469 = vshrl.u32 %v468, 1
      %v470 = vmul.u32 %v469, 3
      %v471 = vsub.s32 %v465, %v470
      %v472 = vsub.s32 0, %v471
      %v473 = vsel %vm463, %v472, %v471
      %vm474 = vcmp.ne.s32.totalorder %v473, 0
      %vm475 = vcmp.lt.s32.totalorder %v473, 0
      %vm476 = vmand %vm475, %vm474
      %v477 = vadd.s32 %v473, 3
      %v478 = vsel %vm476, %v477, %v473
      %vm479 = vcmp.ne.s32.totalorder %v478, 2
      %vm480 = vmand %vm459, %vm479
      %vm481 = vcmp.eq.s32.totalorder %v458, 0
      %vm482 = vcmp.eq.s32.totalorder %v478, 0
      %vm483 = vmand %vm459, %vm482
      %vm484 = vmor %vm481, %vm483
      %vm485 = vcmp.eq.s32.totalorder %v458, 1
      %vm486 = vmor %vm484, %vm485
      %vm487 = vcmp.eq.s32.totalorder %v478, 1
      %vm488 = vmand %vm459, %vm487
      %vm489 = vmor %vm486, %vm488
      %vm490 = vcmp.eq.s32.totalorder %v458, 2
      %vm491 = vcmp.eq.s32.totalorder %v458, 3
      %vm492 = vmor %vm490, %vm491
      %v493 = vxor.u32 %v205, 2147483648
      %v494 = vxor.u32 %v206, 2147483648
      %v495 = vxor.u32 %v207, 2147483648
      %v496 = vxor.u32 %v208, 2147483648
      %v497 = vxor.u32 %v209, 2147483648
      %v498 = vxor.u32 %v210, 2147483648
      %v499 = vxor.u32 %v211, 2147483648
      %v500 = vxor.u32 %v212, 2147483648
      %v501 = vxor.u32 %v213, 2147483648
      %v502 = vxor.u32 %v214, 2147483648
      %v503 = vxor.u32 %v215, 2147483648
      %v504 = vxor.u32 %v216, 2147483648
      %v505 = vxor.u32 %v217, 2147483648
      %v506 = vxor.u32 %v218, 2147483648
      %v507 = vxor.u32 %v219, 2147483648
      %v508 = vxor.u32 %v220, 2147483648
      %v509 = vxor.u32 %v221, 2147483648
      %v510 = vxor.u32 %v222, 2147483648
      %v511 = vxor.u32 %v223, 2147483648
      %v512 = vxor.u32 %v224, 2147483648
      %v513 = vxor.u32 %v225, 2147483648
      %v514 = vxor.u32 %v226, 2147483648
      %v515 = vxor.u32 %v227, 2147483648
      %v516 = vxor.u32 %v228, 2147483648
      %v517 = vxor.u32 %v229, 2147483648
      %v518 = vxor.u32 %v230, 2147483648
      %v519 = vxor.u32 %v231, 2147483648
      %v520 = vxor.u32 %v232, 2147483648
      %v521 = vxor.u32 %v233, 2147483648
      %v522 = vxor.u32 %v234, 2147483648
      %v523 = vxor.u32 %v235, 2147483648
      %v524 = vxor.u32 %v236, 2147483648
      %v525 = vxor.u32 %v237, 2147483648
      %v526 = vxor.u32 %v238, 2147483648
      %v527 = vxor.u32 %v239, 2147483648
      %v528 = vxor.u32 %v240, 2147483648
      %v529 = vxor.u32 %v241, 2147483648
      %v530 = vxor.u32 %v242, 2147483648
      %v531 = vxor.u32 %v243, 2147483648
      %v532 = vxor.u32 %v244, 2147483648
      %v533 = vxor.u32 %v245, 2147483648
      %v534 = vxor.u32 %v246, 2147483648
      %v535 = vxor.u32 %v247, 2147483648
      %v536 = vxor.u32 %v248, 2147483648
      %v537 = vxor.u32 %v249, 2147483648
      %v538 = vxor.u32 %v250, 2147483648
      %v539 = vxor.u32 %v251, 2147483648
      %v540 = vxor.u32 %v252, 2147483648
      %v541 = vxor.u32 %v253, 2147483648
      %v542 = vxor.u32 %v254, 2147483648
      %v543 = vxor.u32 %v255, 2147483648
      %v544 = vxor.u32 %v256, 2147483648
      %v545 = vxor.u32 %v257, 2147483648
      %v546 = vxor.u32 %v258, 2147483648
      %v547 = vxor.u32 %v259, 2147483648
      %v548 = vxor.u32 %v260, 2147483648
      %v549 = vxor.u32 %v261, 2147483648
      %v550 = vxor.u32 %v262, 2147483648
      %v551 = vxor.u32 %v263, 2147483648
      %v552 = vxor.u32 %v264, 2147483648
      %v553 = vxor.u32 %v265, 2147483648
      %v554 = vxor.u32 %v266, 2147483648
      %v555 = vxor.u32 %v267, 2147483648
      %v556 = vxor.u32 %v268, 2147483648
      %v557 = vxor.u32 %v269, 2147483648
      %v558 = vxor.u32 %v270, 2147483648
      %v559 = vxor.u32 %v271, 2147483648
      %v560 = vxor.u32 %v272, 2147483648
      %v561 = vxor.u32 %v273, 2147483648
      %v562 = vxor.u32 %v274, 2147483648
      %v563 = vxor.u32 %v275, 2147483648
      %v564 = vxor.u32 %v276, 2147483648
      %v565 = vxor.u32 %v277, 2147483648
      %v566 = vxor.u32 %v278, 2147483648
      %v567 = vxor.u32 %v279, 2147483648
      %v568 = vxor.u32 %v280, 2147483648
      %v569 = vxor.u32 %v281, 2147483648
      %v570 = vxor.u32 %v282, 2147483648
      %v571 = vxor.u32 %v283, 2147483648
      %v572 = vxor.u32 %v284, 2147483648
      %v573 = vxor.u32 %v285, 2147483648
      %v574 = vxor.u32 %v286, 2147483648
      %v575 = vxor.u32 %v287, 2147483648
      %v576 = vxor.u32 %v288, 2147483648
      %v577 = vxor.u32 %v289, 2147483648
      %v578 = vxor.u32 %v290, 2147483648
      %v579 = vxor.u32 %v291, 2147483648
      %v580 = vxor.u32 %v292, 2147483648
      %v581 = vxor.u32 %v293, 2147483648
      %v582 = vxor.u32 %v294, 2147483648
      %v583 = vxor.u32 %v295, 2147483648
      %v584 = vxor.u32 %v296, 2147483648
      %v585 = vxor.u32 %v297, 2147483648
      %v586 = vxor.u32 %v298, 2147483648
      %v587 = vxor.u32 %v299, 2147483648
      %v588 = vxor.u32 %v300, 2147483648
      %v589 = vxor.u32 %v301, 2147483648
      %v590 = vxor.u32 %v302, 2147483648
      %v591 = vxor.u32 %v303, 2147483648
      %v592 = vxor.u32 %v304, 2147483648
      %v593 = vxor.u32 %v305, 2147483648
      %v594 = vxor.u32 %v306, 2147483648
      %v595 = vxor.u32 %v307, 2147483648
      %v596 = vxor.u32 %v308, 2147483648
      %v597 = vxor.u32 %v309, 2147483648
      %v598 = vxor.u32 %v310, 2147483648
      %v599 = vxor.u32 %v311, 2147483648
      %v600 = vxor.u32 %v312, 2147483648
      %v601 = vxor.u32 %v313, 2147483648
      %v602 = vxor.u32 %v314, 2147483648
      %v603 = vxor.u32 %v315, 2147483648
      %v604 = vxor.u32 %v316, 2147483648
      %v605 = vxor.u32 %v317, 2147483648
      %v606 = vxor.u32 %v318, 2147483648
      %v607 = vxor.u32 %v319, 2147483648
      %v608 = vxor.u32 %v320, 2147483648
      %v609 = vxor.u32 %v321, 2147483648
      %v610 = vxor.u32 %v322, 2147483648
      %v611 = vxor.u32 %v323, 2147483648
      %v612 = vxor.u32 %v324, 2147483648
      %v613 = vxor.u32 %v325, 2147483648
      %v614 = vxor.u32 %v326, 2147483648
      %v615 = vxor.u32 %v327, 2147483648
      %v616 = vxor.u32 %v328, 2147483648
      %v617 = vxor.u32 %v329, 2147483648
      %v618 = vxor.u32 %v330, 2147483648
      %v619 = vmul.f32 %v493, 1.442695
      %v620 = vpow.pop %v619
      %v621 = vmul.f32 %v494, 1.442695
      %v622 = vpow.pop %v621
      %v623 = vmul.f32 %v495, 1.442695
      %v624 = vpow.pop %v623
      %v625 = vmul.f32 %v496, 1.442695
      %v626 = vpow.pop %v625
      %v627 = vmul.f32 %v497, 1.442695
      %v628 = vpow.pop %v627
      %v629 = vmul.f32 %v498, 1.442695
      %v630 = vpow.pop %v629
      %v631 = vmul.f32 %v499, 1.442695
      %v632 = vpow.pop %v631
      %v633 = vmul.f32 %v500, 1.442695
      %v634 = vpow.pop %v633
      %v635 = vmul.f32 %v501, 1.442695
      %v636 = vpow.pop %v635
      %v637 = vmul.f32 %v502, 1.442695
      %v638 = vpow.pop %v637
      %v639 = vmul.f32 %v503, 1.442695
      %v640 = vpow.pop %v639
      %v641 = vmul.f32 %v504, 1.442695
      %v642 = vpow.pop %v641
      %v643 = vmul.f32 %v505, 1.442695
      %v644 = vpow.pop %v643
      %v645 = vmul.f32 %v506, 1.442695
      %v646 = vpow.pop %v645
      %v647 = vmul.f32 %v507, 1.442695
      %v648 = vpow.pop %v647
      %v649 = vmul.f32 %v508, 1.442695
      %v650 = vpow.pop %v649
      %v651 = vmul.f32 %v509, 1.442695
      %v652 = vpow.pop %v651
      %v653 = vmul.f32 %v510, 1.442695
      %v654 = vpow.pop %v653
      %v655 = vmul.f32 %v511, 1.442695
      %v656 = vpow.pop %v655
      %v657 = vmul.f32 %v512, 1.442695
      %v658 = vpow.pop %v657
      %v659 = vmul.f32 %v513, 1.442695
      %v660 = vpow.pop %v659
      %v661 = vmul.f32 %v514, 1.442695
      %v662 = vpow.pop %v661
      %v663 = vmul.f32 %v515, 1.442695
      %v664 = vpow.pop %v663
      %v665 = vmul.f32 %v516, 1.442695
      %v666 = vpow.pop %v665
      %v667 = vmul.f32 %v517, 1.442695
      %v668 = vpow.pop %v667
      %v669 = vmul.f32 %v518, 1.442695
      %v670 = vpow.pop %v669
      %v671 = vmul.f32 %v519, 1.442695
      %v672 = vpow.pop %v671
      %v673 = vmul.f32 %v520, 1.442695
      %v674 = vpow.pop %v673
      %v675 = vmul.f32 %v521, 1.442695
      %v676 = vpow.pop %v675
      %v677 = vmul.f32 %v522, 1.442695
      %v678 = vpow.pop %v677
      %v679 = vmul.f32 %v523, 1.442695
      %v680 = vpow.pop %v679
      %v681 = vmul.f32 %v524, 1.442695
      %v682 = vpow.pop %v681
      %v683 = vmul.f32 %v525, 1.442695
      %v684 = vpow.pop %v683
      %v685 = vmul.f32 %v526, 1.442695
      %v686 = vpow.pop %v685
      %v687 = vmul.f32 %v527, 1.442695
      %v688 = vpow.pop %v687
      %v689 = vmul.f32 %v528, 1.442695
      %v690 = vpow.pop %v689
      %v691 = vmul.f32 %v529, 1.442695
      %v692 = vpow.pop %v691
      %v693 = vmul.f32 %v530, 1.442695
      %v694 = vpow.pop %v693
      %v695 = vmul.f32 %v531, 1.442695
      %v696 = vpow.pop %v695
      %v697 = vmul.f32 %v532, 1.442695
      %v698 = vpow.pop %v697
      %v699 = vmul.f32 %v533, 1.442695
      %v700 = vpow.pop %v699
      %v701 = vmul.f32 %v534, 1.442695
      %v702 = vpow.pop %v701
      %v703 = vmul.f32 %v535, 1.442695
      %v704 = vpow.pop %v703
      %v705 = vmul.f32 %v536, 1.442695
      %v706 = vpow.pop %v705
      %v707 = vmul.f32 %v537, 1.442695
      %v708 = vpow.pop %v707
      %v709 = vmul.f32 %v538, 1.442695
      %v710 = vpow.pop %v709
      %v711 = vmul.f32 %v539, 1.442695
      %v712 = vpow.pop %v711
      %v713 = vmul.f32 %v540, 1.442695
      %v714 = vpow.pop %v713
      %v715 = vmul.f32 %v541, 1.442695
      %v716 = vpow.pop %v715
      %v717 = vmul.f32 %v542, 1.442695
      %v718 = vpow.pop %v717
      %v719 = vmul.f32 %v543, 1.442695
      %v720 = vpow.pop %v719
      %v721 = vmul.f32 %v544, 1.442695
      %v722 = vpow.pop %v721
      %v723 = vmul.f32 %v545, 1.442695
      %v724 = vpow.pop %v723
      %v725 = vmul.f32 %v546, 1.442695
      %v726 = vpow.pop %v725
      %v727 = vmul.f32 %v547, 1.442695
      %v728 = vpow.pop %v727
      %v729 = vmul.f32 %v548, 1.442695
      %v730 = vpow.pop %v729
      %v731 = vmul.f32 %v549, 1.442695
      %v732 = vpow.pop %v731
      %v733 = vmul.f32 %v550, 1.442695
      %v734 = vpow.pop %v733
      %v735 = vmul.f32 %v551, 1.442695
      %v736 = vpow.pop %v735
      %v737 = vmul.f32 %v552, 1.442695
      %v738 = vpow.pop %v737
      %v739 = vmul.f32 %v553, 1.442695
      %v740 = vpow.pop %v739
      %v741 = vmul.f32 %v554, 1.442695
      %v742 = vpow.pop %v741
      %v743 = vmul.f32 %v555, 1.442695
      %v744 = vpow.pop %v743
      %v745 = vmul.f32 %v556, 1.442695
      %v746 = vpow.pop %v745
      %v747 = vmul.f32 %v557, 1.442695
      %v748 = vpow.pop %v747
      %v749 = vmul.f32 %v558, 1.442695
      %v750 = vpow.pop %v749
      %v751 = vmul.f32 %v559, 1.442695
      %v752 = vpow.pop %v751
      %v753 = vmul.f32 %v560, 1.442695
      %v754 = vpow.pop %v753
      %v755 = vmul.f32 %v561, 1.442695
      %v756 = vpow.pop %v755
      %v757 = vmul.f32 %v562, 1.442695
      %v758 = vpow.pop %v757
      %v759 = vmul.f32 %v563, 1.442695
      %v760 = vpow.pop %v759
      %v761 = vmul.f32 %v564, 1.442695
      %v762 = vpow.pop %v761
      %v763 = vmul.f32 %v565, 1.442695
      %v764 = vpow.pop %v763
      %v765 = vmul.f32 %v566, 1.442695
      %v766 = vpow.pop %v765
      %v767 = vmul.f32 %v567, 1.442695
      %v768 = vpow.pop %v767
      %v769 = vmul.f32 %v568, 1.442695
      %v770 = vpow.pop %v769
      %v771 = vmul.f32 %v569, 1.442695
      %v772 = vpow.pop %v771
      %v773 = vmul.f32 %v570, 1.442695
      %v774 = vpow.pop %v773
      %v775 = vmul.f32 %v571, 1.442695
      %v776 = vpow.pop %v775
      %v777 = vmul.f32 %v572, 1.442695
      %v778 = vpow.pop %v777
      %v779 = vmul.f32 %v573, 1.442695
      %v780 = vpow.pop %v779
      %v781 = vmul.f32 %v574, 1.442695
      %v782 = vpow.pop %v781
      %v783 = vmul.f32 %v575, 1.442695
      %v784 = vpow.pop %v783
      %v785 = vmul.f32 %v576, 1.442695
      %v786 = vpow.pop %v785
      %v787 = vmul.f32 %v577, 1.442695
      %v788 = vpow.pop %v787
      %v789 = vmul.f32 %v578, 1.442695
      %v790 = vpow.pop %v789
      %v791 = vmul.f32 %v579, 1.442695
      %v792 = vpow.pop %v791
      %v793 = vmul.f32 %v580, 1.442695
      %v794 = vpow.pop %v793
      %v795 = vmul.f32 %v581, 1.442695
      %v796 = vpow.pop %v795
      %v797 = vmul.f32 %v582, 1.442695
      %v798 = vpow.pop %v797
      %v799 = vmul.f32 %v583, 1.442695
      %v800 = vpow.pop %v799
      %v801 = vmul.f32 %v584, 1.442695
      %v802 = vpow.pop %v801
      %v803 = vmul.f32 %v585, 1.442695
      %v804 = vpow.pop %v803
      %v805 = vmul.f32 %v586, 1.442695
      %v806 = vpow.pop %v805
      %v807 = vmul.f32 %v587, 1.442695
      %v808 = vpow.pop %v807
      %v809 = vmul.f32 %v588, 1.442695
      %v810 = vpow.pop %v809
      %v811 = vmul.f32 %v589, 1.442695
      %v812 = vpow.pop %v811
      %v813 = vmul.f32 %v590, 1.442695
      %v814 = vpow.pop %v813
      %v815 = vmul.f32 %v591, 1.442695
      %v816 = vpow.pop %v815
      %v817 = vmul.f32 %v592, 1.442695
      %v818 = vpow.pop %v817
      %v819 = vmul.f32 %v593, 1.442695
      %v820 = vpow.pop %v819
      %v821 = vmul.f32 %v594, 1.442695
      %v822 = vpow.pop %v821
      %v823 = vmul.f32 %v595, 1.442695
      %v824 = vpow.pop %v823
      %v825 = vmul.f32 %v596, 1.442695
      %v826 = vpow.pop %v825
      %v827 = vmul.f32 %v597, 1.442695
      %v828 = vpow.pop %v827
      %v829 = vmul.f32 %v598, 1.442695
      %v830 = vpow.pop %v829
      %v831 = vmul.f32 %v599, 1.442695
      %v832 = vpow.pop %v831
      %v833 = vmul.f32 %v600, 1.442695
      %v834 = vpow.pop %v833
      %v835 = vmul.f32 %v601, 1.442695
      %v836 = vpow.pop %v835
      %v837 = vmul.f32 %v602, 1.442695
      %v838 = vpow.pop %v837
      %v839 = vmul.f32 %v603, 1.442695
      %v840 = vpow.pop %v839
      %v841 = vmul.f32 %v604, 1.442695
      %v842 = vpow.pop %v841
      %v843 = vmul.f32 %v605, 1.442695
      %v844 = vpow.pop %v843
      %v845 = vmul.f32 %v606, 1.442695
      %v846 = vpow.pop %v845
      %v847 = vmul.f32 %v607, 1.442695
      %v848 = vpow.pop %v847
      %v849 = vmul.f32 %v608, 1.442695
      %v850 = vpow.pop %v849
      %v851 = vmul.f32 %v609, 1.442695
      %v852 = vpow.pop %v851
      %v853 = vmul.f32 %v610, 1.442695
      %v854 = vpow.pop %v853
      %v855 = vmul.f32 %v611, 1.442695
      %v856 = vpow.pop %v855
      %v857 = vmul.f32 %v612, 1.442695
      %v858 = vpow.pop %v857
      %v859 = vmul.f32 %v613, 1.442695
      %v860 = vpow.pop %v859
      %v861 = vmul.f32 %v614, 1.442695
      %v862 = vpow.pop %v861
      %v863 = vmul.f32 %v615, 1.442695
      %v864 = vpow.pop %v863
      %v865 = vmul.f32 %v616, 1.442695
      %v866 = vpow.pop %v865
      %v867 = vmul.f32 %v617, 1.442695
      %v868 = vpow.pop %v867
      %v869 = vmul.f32 %v618, 1.442695
      %v870 = vpow.pop %v869
      %v871 = vadd.f32 %v620, 1.0
      %v872 = vadd.f32 %v622, 1.0
      %v873 = vadd.f32 %v624, 1.0
      %v874 = vadd.f32 %v626, 1.0
      %v875 = vadd.f32 %v628, 1.0
      %v876 = vadd.f32 %v630, 1.0
      %v877 = vadd.f32 %v632, 1.0
      %v878 = vadd.f32 %v634, 1.0
      %v879 = vadd.f32 %v636, 1.0
      %v880 = vadd.f32 %v638, 1.0
      %v881 = vadd.f32 %v640, 1.0
      %v882 = vadd.f32 %v642, 1.0
      %v883 = vadd.f32 %v644, 1.0
      %v884 = vadd.f32 %v646, 1.0
      %v885 = vadd.f32 %v648, 1.0
      %v886 = vadd.f32 %v650, 1.0
      %v887 = vadd.f32 %v652, 1.0
      %v888 = vadd.f32 %v654, 1.0
      %v889 = vadd.f32 %v656, 1.0
      %v890 = vadd.f32 %v658, 1.0
      %v891 = vadd.f32 %v660, 1.0
      %v892 = vadd.f32 %v662, 1.0
      %v893 = vadd.f32 %v664, 1.0
      %v894 = vadd.f32 %v666, 1.0
      %v895 = vadd.f32 %v668, 1.0
      %v896 = vadd.f32 %v670, 1.0
      %v897 = vadd.f32 %v672, 1.0
      %v898 = vadd.f32 %v674, 1.0
      %v899 = vadd.f32 %v676, 1.0
      %v900 = vadd.f32 %v678, 1.0
      %v901 = vadd.f32 %v680, 1.0
      %v902 = vadd.f32 %v682, 1.0
      %v903 = vadd.f32 %v684, 1.0
      %v904 = vadd.f32 %v686, 1.0
      %v905 = vadd.f32 %v688, 1.0
      %v906 = vadd.f32 %v690, 1.0
      %v907 = vadd.f32 %v692, 1.0
      %v908 = vadd.f32 %v694, 1.0
      %v909 = vadd.f32 %v696, 1.0
      %v910 = vadd.f32 %v698, 1.0
      %v911 = vadd.f32 %v700, 1.0
      %v912 = vadd.f32 %v702, 1.0
      %v913 = vadd.f32 %v704, 1.0
      %v914 = vadd.f32 %v706, 1.0
      %v915 = vadd.f32 %v708, 1.0
      %v916 = vadd.f32 %v710, 1.0
      %v917 = vadd.f32 %v712, 1.0
      %v918 = vadd.f32 %v714, 1.0
      %v919 = vadd.f32 %v716, 1.0
      %v920 = vadd.f32 %v718, 1.0
      %v921 = vadd.f32 %v720, 1.0
      %v922 = vadd.f32 %v722, 1.0
      %v923 = vadd.f32 %v724, 1.0
      %v924 = vadd.f32 %v726, 1.0
      %v925 = vadd.f32 %v728, 1.0
      %v926 = vadd.f32 %v730, 1.0
      %v927 = vadd.f32 %v732, 1.0
      %v928 = vadd.f32 %v734, 1.0
      %v929 = vadd.f32 %v736, 1.0
      %v930 = vadd.f32 %v738, 1.0
      %v931 = vadd.f32 %v740, 1.0
      %v932 = vadd.f32 %v742, 1.0
      %v933 = vadd.f32 %v744, 1.0
      %v934 = vadd.f32 %v746, 1.0
      %v935 = vadd.f32 %v748, 1.0
      %v936 = vadd.f32 %v750, 1.0
      %v937 = vadd.f32 %v752, 1.0
      %v938 = vadd.f32 %v754, 1.0
      %v939 = vadd.f32 %v756, 1.0
      %v940 = vadd.f32 %v758, 1.0
      %v941 = vadd.f32 %v760, 1.0
      %v942 = vadd.f32 %v762, 1.0
      %v943 = vadd.f32 %v764, 1.0
      %v944 = vadd.f32 %v766, 1.0
      %v945 = vadd.f32 %v768, 1.0
      %v946 = vadd.f32 %v770, 1.0
      %v947 = vadd.f32 %v772, 1.0
      %v948 = vadd.f32 %v774, 1.0
      %v949 = vadd.f32 %v776, 1.0
      %v950 = vadd.f32 %v778, 1.0
      %v951 = vadd.f32 %v780, 1.0
      %v952 = vadd.f32 %v782, 1.0
      %v953 = vadd.f32 %v784, 1.0
      %v954 = vadd.f32 %v786, 1.0
      %v955 = vadd.f32 %v788, 1.0
      %v956 = vadd.f32 %v790, 1.0
      %v957 = vadd.f32 %v792, 1.0
      %v958 = vadd.f32 %v794, 1.0
      %v959 = vadd.f32 %v796, 1.0
      %v960 = vadd.f32 %v798, 1.0
      %v961 = vadd.f32 %v800, 1.0
      %v962 = vadd.f32 %v802, 1.0
      %v963 = vadd.f32 %v804, 1.0
      %v964 = vadd.f32 %v806, 1.0
      %v965 = vadd.f32 %v808, 1.0
      %v966 = vadd.f32 %v810, 1.0
      %v967 = vadd.f32 %v812, 1.0
      %v968 = vadd.f32 %v814, 1.0
      %v969 = vadd.f32 %v816, 1.0
      %v970 = vadd.f32 %v818, 1.0
      %v971 = vadd.f32 %v820, 1.0
      %v972 = vadd.f32 %v822, 1.0
      %v973 = vadd.f32 %v824, 1.0
      %v974 = vadd.f32 %v826, 1.0
      %v975 = vadd.f32 %v828, 1.0
      %v976 = vadd.f32 %v830, 1.0
      %v977 = vadd.f32 %v832, 1.0
      %v978 = vadd.f32 %v834, 1.0
      %v979 = vadd.f32 %v836, 1.0
      %v980 = vadd.f32 %v838, 1.0
      %v981 = vadd.f32 %v840, 1.0
      %v982 = vadd.f32 %v842, 1.0
      %v983 = vadd.f32 %v844, 1.0
      %v984 = vadd.f32 %v846, 1.0
      %v985 = vadd.f32 %v848, 1.0
      %v986 = vadd.f32 %v850, 1.0
      %v987 = vadd.f32 %v852, 1.0
      %v988 = vadd.f32 %v854, 1.0
      %v989 = vadd.f32 %v856, 1.0
      %v990 = vadd.f32 %v858, 1.0
      %v991 = vadd.f32 %v860, 1.0
      %v992 = vadd.f32 %v862, 1.0
      %v993 = vadd.f32 %v864, 1.0
      %v994 = vadd.f32 %v866, 1.0
      %v995 = vadd.f32 %v868, 1.0
      %v996 = vadd.f32 %v870, 1.0
      %v997 = vrcp.pop %v871
      %v998 = vmul.f32 1.0, %v997
      %v999 = vrcp.pop %v872
      %v1000 = vmul.f32 1.0, %v999
      %v1001 = vrcp.pop %v873
      %v1002 = vmul.f32 1.0, %v1001
      %v1003 = vrcp.pop %v874
      %v1004 = vmul.f32 1.0, %v1003
      %v1005 = vrcp.pop %v875
      %v1006 = vmul.f32 1.0, %v1005
      %v1007 = vrcp.pop %v876
      %v1008 = vmul.f32 1.0, %v1007
      %v1009 = vrcp.pop %v877
      %v1010 = vmul.f32 1.0, %v1009
      %v1011 = vrcp.pop %v878
      %v1012 = vmul.f32 1.0, %v1011
      %v1013 = vrcp.pop %v879
      %v1014 = vmul.f32 1.0, %v1013
      %v1015 = vrcp.pop %v880
      %v1016 = vmul.f32 1.0, %v1015
      %v1017 = vrcp.pop %v881
      %v1018 = vmul.f32 1.0, %v1017
      %v1019 = vrcp.pop %v882
      %v1020 = vmul.f32 1.0, %v1019
      %v1021 = vrcp.pop %v883
      %v1022 = vmul.f32 1.0, %v1021
      %v1023 = vrcp.pop %v884
      %v1024 = vmul.f32 1.0, %v1023
      %v1025 = vrcp.pop %v885
      %v1026 = vmul.f32 1.0, %v1025
      %v1027 = vrcp.pop %v886
      %v1028 = vmul.f32 1.0, %v1027
      %v1029 = vrcp.pop %v887
      %v1030 = vmul.f32 1.0, %v1029
      %v1031 = vrcp.pop %v888
      %v1032 = vmul.f32 1.0, %v1031
      %v1033 = vrcp.pop %v889
      %v1034 = vmul.f32 1.0, %v1033
      %v1035 = vrcp.pop %v890
      %v1036 = vmul.f32 1.0, %v1035
      %v1037 = vrcp.pop %v891
      %v1038 = vmul.f32 1.0, %v1037
      %v1039 = vrcp.pop %v892
      %v1040 = vmul.f32 1.0, %v1039
      %v1041 = vrcp.pop %v893
      %v1042 = vmul.f32 1.0, %v1041
      %v1043 = vrcp.pop %v894
      %v1044 = vmul.f32 1.0, %v1043
      %v1045 = vrcp.pop %v895
      %v1046 = vmul.f32 1.0, %v1045
      %v1047 = vrcp.pop %v896
      %v1048 = vmul.f32 1.0, %v1047
      %v1049 = vrcp.pop %v897
      %v1050 = vmul.f32 1.0, %v1049
      %v1051 = vrcp.pop %v898
      %v1052 = vmul.f32 1.0, %v1051
      %v1053 = vrcp.pop %v899
      %v1054 = vmul.f32 1.0, %v1053
      %v1055 = vrcp.pop %v900
      %v1056 = vmul.f32 1.0, %v1055
      %v1057 = vrcp.pop %v901
      %v1058 = vmul.f32 1.0, %v1057
      %v1059 = vrcp.pop %v902
      %v1060 = vmul.f32 1.0, %v1059
      %v1061 = vrcp.pop %v903
      %v1062 = vmul.f32 1.0, %v1061
      %v1063 = vrcp.pop %v904
      %v1064 = vmul.f32 1.0, %v1063
      %v1065 = vrcp.pop %v905
      %v1066 = vmul.f32 1.0, %v1065
      %v1067 = vrcp.pop %v906
      %v1068 = vmul.f32 1.0, %v1067
      %v1069 = vrcp.pop %v907
      %v1070 = vmul.f32 1.0, %v1069
      %v1071 = vrcp.pop %v908
      %v1072 = vmul.f32 1.0, %v1071
      %v1073 = vrcp.pop %v909
      %v1074 = vmul.f32 1.0, %v1073
      %v1075 = vrcp.pop %v910
      %v1076 = vmul.f32 1.0, %v1075
      %v1077 = vrcp.pop %v911
      %v1078 = vmul.f32 1.0, %v1077
      %v1079 = vrcp.pop %v912
      %v1080 = vmul.f32 1.0, %v1079
      %v1081 = vrcp.pop %v913
      %v1082 = vmul.f32 1.0, %v1081
      %v1083 = vrcp.pop %v914
      %v1084 = vmul.f32 1.0, %v1083
      %v1085 = vrcp.pop %v915
      %v1086 = vmul.f32 1.0, %v1085
      %v1087 = vrcp.pop %v916
      %v1088 = vmul.f32 1.0, %v1087
      %v1089 = vrcp.pop %v917
      %v1090 = vmul.f32 1.0, %v1089
      %v1091 = vrcp.pop %v918
      %v1092 = vmul.f32 1.0, %v1091
      %v1093 = vrcp.pop %v919
      %v1094 = vmul.f32 1.0, %v1093
      %v1095 = vrcp.pop %v920
      %v1096 = vmul.f32 1.0, %v1095
      %v1097 = vrcp.pop %v921
      %v1098 = vmul.f32 1.0, %v1097
      %v1099 = vrcp.pop %v922
      %v1100 = vmul.f32 1.0, %v1099
      %v1101 = vrcp.pop %v923
      %v1102 = vmul.f32 1.0, %v1101
      %v1103 = vrcp.pop %v924
      %v1104 = vmul.f32 1.0, %v1103
      %v1105 = vrcp.pop %v925
      %v1106 = vmul.f32 1.0, %v1105
      %v1107 = vrcp.pop %v926
      %v1108 = vmul.f32 1.0, %v1107
      %v1109 = vrcp.pop %v927
      %v1110 = vmul.f32 1.0, %v1109
      %v1111 = vrcp.pop %v928
      %v1112 = vmul.f32 1.0, %v1111
      %v1113 = vrcp.pop %v929
      %v1114 = vmul.f32 1.0, %v1113
      %v1115 = vrcp.pop %v930
      %v1116 = vmul.f32 1.0, %v1115
      %v1117 = vrcp.pop %v931
      %v1118 = vmul.f32 1.0, %v1117
      %v1119 = vrcp.pop %v932
      %v1120 = vmul.f32 1.0, %v1119
      %v1121 = vrcp.pop %v933
      %v1122 = vmul.f32 1.0, %v1121
      %v1123 = vrcp.pop %v934
      %v1124 = vmul.f32 1.0, %v1123
      %v1125 = vrcp.pop %v935
      %v1126 = vmul.f32 1.0, %v1125
      %v1127 = vrcp.pop %v936
      %v1128 = vmul.f32 1.0, %v1127
      %v1129 = vrcp.pop %v937
      %v1130 = vmul.f32 1.0, %v1129
      %v1131 = vrcp.pop %v938
      %v1132 = vmul.f32 1.0, %v1131
      %v1133 = vrcp.pop %v939
      %v1134 = vmul.f32 1.0, %v1133
      %v1135 = vrcp.pop %v940
      %v1136 = vmul.f32 1.0, %v1135
      %v1137 = vrcp.pop %v941
      %v1138 = vmul.f32 1.0, %v1137
      %v1139 = vrcp.pop %v942
      %v1140 = vmul.f32 1.0, %v1139
      %v1141 = vrcp.pop %v943
      %v1142 = vmul.f32 1.0, %v1141
      %v1143 = vrcp.pop %v944
      %v1144 = vmul.f32 1.0, %v1143
      %v1145 = vrcp.pop %v945
      %v1146 = vmul.f32 1.0, %v1145
      %v1147 = vrcp.pop %v946
      %v1148 = vmul.f32 1.0, %v1147
      %v1149 = vrcp.pop %v947
      %v1150 = vmul.f32 1.0, %v1149
      %v1151 = vrcp.pop %v948
      %v1152 = vmul.f32 1.0, %v1151
      %v1153 = vrcp.pop %v949
      %v1154 = vmul.f32 1.0, %v1153
      %v1155 = vrcp.pop %v950
      %v1156 = vmul.f32 1.0, %v1155
      %v1157 = vrcp.pop %v951
      %v1158 = vmul.f32 1.0, %v1157
      %v1159 = vrcp.pop %v952
      %v1160 = vmul.f32 1.0, %v1159
      %v1161 = vrcp.pop %v953
      %v1162 = vmul.f32 1.0, %v1161
      %v1163 = vrcp.pop %v954
      %v1164 = vmul.f32 1.0, %v1163
      %v1165 = vrcp.pop %v955
      %v1166 = vmul.f32 1.0, %v1165
      %v1167 = vrcp.pop %v956
      %v1168 = vmul.f32 1.0, %v1167
      %v1169 = vrcp.pop %v957
      %v1170 = vmul.f32 1.0, %v1169
      %v1171 = vrcp.pop %v958
      %v1172 = vmul.f32 1.0, %v1171
      %v1173 = vrcp.pop %v959
      %v1174 = vmul.f32 1.0, %v1173
      %v1175 = vrcp.pop %v960
      %v1176 = vmul.f32 1.0, %v1175
      %v1177 = vrcp.pop %v961
      %v1178 = vmul.f32 1.0, %v1177
      %v1179 = vrcp.pop %v962
      %v1180 = vmul.f32 1.0, %v1179
      %v1181 = vrcp.pop %v963
      %v1182 = vmul.f32 1.0, %v1181
      %v1183 = vrcp.pop %v964
      %v1184 = vmul.f32 1.0, %v1183
      %v1185 = vrcp.pop %v965
      %v1186 = vmul.f32 1.0, %v1185
      %v1187 = vrcp.pop %v966
      %v1188 = vmul.f32 1.0, %v1187
      %v1189 = vrcp.pop %v967
      %v1190 = vmul.f32 1.0, %v1189
      %v1191 = vrcp.pop %v968
      %v1192 = vmul.f32 1.0, %v1191
      %v1193 = vrcp.pop %v969
      %v1194 = vmul.f32 1.0, %v1193
      %v1195 = vrcp.pop %v970
      %v1196 = vmul.f32 1.0, %v1195
      %v1197 = vrcp.pop %v971
      %v1198 = vmul.f32 1.0, %v1197
      %v1199 = vrcp.pop %v972
      %v1200 = vmul.f32 1.0, %v1199
      %v1201 = vrcp.pop %v973
      %v1202 = vmul.f32 1.0, %v1201
      %v1203 = vrcp.pop %v974
      %v1204 = vmul.f32 1.0, %v1203
      %v1205 = vrcp.pop %v975
      %v1206 = vmul.f32 1.0, %v1205
      %v1207 = vrcp.pop %v976
      %v1208 = vmul.f32 1.0, %v1207
      %v1209 = vrcp.pop %v977
      %v1210 = vmul.f32 1.0, %v1209
      %v1211 = vrcp.pop %v978
      %v1212 = vmul.f32 1.0, %v1211
      %v1213 = vrcp.pop %v979
      %v1214 = vmul.f32 1.0, %v1213
      %v1215 = vrcp.pop %v980
      %v1216 = vmul.f32 1.0, %v1215
      %v1217 = vrcp.pop %v981
      %v1218 = vmul.f32 1.0, %v1217
      %v1219 = vrcp.pop %v982
      %v1220 = vmul.f32 1.0, %v1219
      %v1221 = vrcp.pop %v983
      %v1222 = vmul.f32 1.0, %v1221
      %v1223 = vrcp.pop %v984
      %v1224 = vmul.f32 1.0, %v1223
      %v1225 = vrcp.pop %v985
      %v1226 = vmul.f32 1.0, %v1225
      %v1227 = vrcp.pop %v986
      %v1228 = vmul.f32 1.0, %v1227
      %v1229 = vrcp.pop %v987
      %v1230 = vmul.f32 1.0, %v1229
      %v1231 = vrcp.pop %v988
      %v1232 = vmul.f32 1.0, %v1231
      %v1233 = vrcp.pop %v989
      %v1234 = vmul.f32 1.0, %v1233
      %v1235 = vrcp.pop %v990
      %v1236 = vmul.f32 1.0, %v1235
      %v1237 = vrcp.pop %v991
      %v1238 = vmul.f32 1.0, %v1237
      %v1239 = vrcp.pop %v992
      %v1240 = vmul.f32 1.0, %v1239
      %v1241 = vrcp.pop %v993
      %v1242 = vmul.f32 1.0, %v1241
      %v1243 = vrcp.pop %v994
      %v1244 = vmul.f32 1.0, %v1243
      %v1245 = vrcp.pop %v995
      %v1246 = vmul.f32 1.0, %v1245
      %v1247 = vrcp.pop %v996
      %v1248 = vmul.f32 1.0, %v1247
      %v1249 = vsel %vm480, 1, 0
      %vm1250 = vcmp.eq.s32.totalorder %v1249, 1
      %v1251 = vsel %vm1250, %v205, %v998
      %v1252 = vsel %vm1250, %v206, %v1000
      %v1253 = vsel %vm1250, %v207, %v1002
      %v1254 = vsel %vm1250, %v208, %v1004
      %v1255 = vsel %vm1250, %v209, %v1006
      %v1256 = vsel %vm1250, %v210, %v1008
      %v1257 = vsel %vm1250, %v211, %v1010
      %v1258 = vsel %vm1250, %v212, %v1012
      %v1259 = vsel %vm1250, %v213, %v1014
      %v1260 = vsel %vm1250, %v214, %v1016
      %v1261 = vsel %vm1250, %v215, %v1018
      %v1262 = vsel %vm1250, %v216, %v1020
      %v1263 = vsel %vm1250, %v217, %v1022
      %v1264 = vsel %vm1250, %v218, %v1024
      %v1265 = vsel %vm1250, %v219, %v1026
      %v1266 = vsel %vm1250, %v220, %v1028
      %v1267 = vsel %vm1250, %v221, %v1030
      %v1268 = vsel %vm1250, %v222, %v1032
      %v1269 = vsel %vm1250, %v223, %v1034
      %v1270 = vsel %vm1250, %v224, %v1036
      %v1271 = vsel %vm1250, %v225, %v1038
      %v1272 = vsel %vm1250, %v226, %v1040
      %v1273 = vsel %vm1250, %v227, %v1042
      %v1274 = vsel %vm1250, %v228, %v1044
      %v1275 = vsel %vm1250, %v229, %v1046
      %v1276 = vsel %vm1250, %v230, %v1048
      %v1277 = vsel %vm1250, %v231, %v1050
      %v1278 = vsel %vm1250, %v232, %v1052
      %v1279 = vsel %vm1250, %v233, %v1054
      %v1280 = vsel %vm1250, %v234, %v1056
      %v1281 = vsel %vm1250, %v235, %v1058
      %v1282 = vsel %vm1250, %v236, %v1060
      %v1283 = vsel %vm1250, %v237, %v1062
      %v1284 = vsel %vm1250, %v238, %v1064
      %v1285 = vsel %vm1250, %v239, %v1066
      %v1286 = vsel %vm1250, %v240, %v1068
      %v1287 = vsel %vm1250, %v241, %v1070
      %v1288 = vsel %vm1250, %v242, %v1072
      %v1289 = vsel %vm1250, %v243, %v1074
      %v1290 = vsel %vm1250, %v244, %v1076
      %v1291 = vsel %vm1250, %v245, %v1078
      %v1292 = vsel %vm1250, %v246, %v1080
      %v1293 = vsel %vm1250, %v247, %v1082
      %v1294 = vsel %vm1250, %v248, %v1084
      %v1295 = vsel %vm1250, %v249, %v1086
      %v1296 = vsel %vm1250, %v250, %v1088
      %v1297 = vsel %vm1250, %v251, %v1090
      %v1298 = vsel %vm1250, %v252, %v1092
      %v1299 = vsel %vm1250, %v253, %v1094
      %v1300 = vsel %vm1250, %v254, %v1096
      %v1301 = vsel %vm1250, %v255, %v1098
      %v1302 = vsel %vm1250, %v256, %v1100
      %v1303 = vsel %vm1250, %v257, %v1102
      %v1304 = vsel %vm1250, %v258, %v1104
      %v1305 = vsel %vm1250, %v259, %v1106
      %v1306 = vsel %vm1250, %v260, %v1108
      %v1307 = vsel %vm1250, %v261, %v1110
      %v1308 = vsel %vm1250, %v262, %v1112
      %v1309 = vsel %vm1250, %v263, %v1114
      %v1310 = vsel %vm1250, %v264, %v1116
      %v1311 = vsel %vm1250, %v265, %v1118
      %v1312 = vsel %vm1250, %v266, %v1120
      %v1313 = vsel %vm1250, %v267, %v1122
      %v1314 = vsel %vm1250, %v268, %v1124
      %v1315 = vsel %vm1250, %v269, %v1126
      %v1316 = vsel %vm1250, %v270, %v1128
      %v1317 = vsel %vm1250, %v271, %v1130
      %v1318 = vsel %vm1250, %v272, %v1132
      %v1319 = vsel %vm1250, %v273, %v1134
      %v1320 = vsel %vm1250, %v274, %v1136
      %v1321 = vsel %vm1250, %v275, %v1138
      %v1322 = vsel %vm1250, %v276, %v1140
      %v1323 = vsel %vm1250, %v277, %v1142
      %v1324 = vsel %vm1250, %v278, %v1144
      %v1325 = vsel %vm1250, %v279, %v1146
      %v1326 = vsel %vm1250, %v280, %v1148
      %v1327 = vsel %vm1250, %v281, %v1150
      %v1328 = vsel %vm1250, %v282, %v1152
      %v1329 = vsel %vm1250, %v283, %v1154
      %v1330 = vsel %vm1250, %v284, %v1156
      %v1331 = vsel %vm1250, %v285, %v1158
      %v1332 = vsel %vm1250, %v286, %v1160
      %v1333 = vsel %vm1250, %v287, %v1162
      %v1334 = vsel %vm1250, %v288, %v1164
      %v1335 = vsel %vm1250, %v289, %v1166
      %v1336 = vsel %vm1250, %v290, %v1168
      %v1337 = vsel %vm1250, %v291, %v1170
      %v1338 = vsel %vm1250, %v292, %v1172
      %v1339 = vsel %vm1250, %v293, %v1174
      %v1340 = vsel %vm1250, %v294, %v1176
      %v1341 = vsel %vm1250, %v295, %v1178
      %v1342 = vsel %vm1250, %v296, %v1180
      %v1343 = vsel %vm1250, %v297, %v1182
      %v1344 = vsel %vm1250, %v298, %v1184
      %v1345 = vsel %vm1250, %v299, %v1186
      %v1346 = vsel %vm1250, %v300, %v1188
      %v1347 = vsel %vm1250, %v301, %v1190
      %v1348 = vsel %vm1250, %v302, %v1192
      %v1349 = vsel %vm1250, %v303, %v1194
      %v1350 = vsel %vm1250, %v304, %v1196
      %v1351 = vsel %vm1250, %v305, %v1198
      %v1352 = vsel %vm1250, %v306, %v1200
      %v1353 = vsel %vm1250, %v307, %v1202
      %v1354 = vsel %vm1250, %v308, %v1204
      %v1355 = vsel %vm1250, %v309, %v1206
      %v1356 = vsel %vm1250, %v310, %v1208
      %v1357 = vsel %vm1250, %v311, %v1210
      %v1358 = vsel %vm1250, %v312, %v1212
      %v1359 = vsel %vm1250, %v313, %v1214
      %v1360 = vsel %vm1250, %v314, %v1216
      %v1361 = vsel %vm1250, %v315, %v1218
      %v1362 = vsel %vm1250, %v316, %v1220
      %v1363 = vsel %vm1250, %v317, %v1222
      %v1364 = vsel %vm1250, %v318, %v1224
      %v1365 = vsel %vm1250, %v319, %v1226
      %v1366 = vsel %vm1250, %v320, %v1228
      %v1367 = vsel %vm1250, %v321, %v1230
      %v1368 = vsel %vm1250, %v322, %v1232
      %v1369 = vsel %vm1250, %v323, %v1234
      %v1370 = vsel %vm1250, %v324, %v1236
      %v1371 = vsel %vm1250, %v325, %v1238
      %v1372 = vsel %vm1250, %v326, %v1240
      %v1373 = vsel %vm1250, %v327, %v1242
      %v1374 = vsel %vm1250, %v328, %v1244
      %v1375 = vsel %vm1250, %v329, %v1246
      %v1376 = vsel %vm1250, %v330, %v1248
      %1378 = vset.pattern.permute.xlu0 4
      %1379 = vperm.xlu0 %1378, %v331
      %v1380 = vpop.permute.xlu0 %1379
      %1383 = vset.pattern.permute.xlu0 4
      %1384 = vperm.xlu0 %1383, %v332
      %v1385 = vpop.permute.xlu0 %1384
      %1388 = vset.pattern.permute.xlu0 4
      %1389 = vperm.xlu0 %1388, %v333
      %v1390 = vpop.permute.xlu0 %1389
      %1393 = vset.pattern.permute.xlu0 4
      %1394 = vperm.xlu0 %1393, %v334
      %v1395 = vpop.permute.xlu0 %1394
      %1398 = vset.pattern.permute.xlu0 4
      %1399 = vperm.xlu0 %1398, %v335
      %v1400 = vpop.permute.xlu0 %1399
      %1403 = vset.pattern.permute.xlu0 4
      %1404 = vperm.xlu0 %1403, %v336
      %v1405 = vpop.permute.xlu0 %1404
      %1408 = vset.pattern.permute.xlu0 4
      %1409 = vperm.xlu0 %1408, %v337
      %v1410 = vpop.permute.xlu0 %1409
      %1413 = vset.pattern.permute.xlu0 4
      %1414 = vperm.xlu0 %1413, %v338
      %v1415 = vpop.permute.xlu0 %1414
      %1418 = vset.pattern.permute.xlu0 4
      %1419 = vperm.xlu0 %1418, %v339
      %v1420 = vpop.permute.xlu0 %1419
      %1423 = vset.pattern.permute.xlu0 4
      %1424 = vperm.xlu0 %1423, %v340
      %v1425 = vpop.permute.xlu0 %1424
      %1428 = vset.pattern.permute.xlu0 4
      %1429 = vperm.xlu0 %1428, %v341
      %v1430 = vpop.permute.xlu0 %1429
      %1433 = vset.pattern.permute.xlu0 4
      %1434 = vperm.xlu0 %1433, %v342
      %v1435 = vpop.permute.xlu0 %1434
      %1438 = vset.pattern.permute.xlu0 4
      %1439 = vperm.xlu0 %1438, %v343
      %v1440 = vpop.permute.xlu0 %1439
      %1443 = vset.pattern.permute.xlu0 4
      %1444 = vperm.xlu0 %1443, %v344
      %v1445 = vpop.permute.xlu0 %1444
      %1448 = vset.pattern.permute.xlu0 4
      %1449 = vperm.xlu0 %1448, %v345
      %v1450 = vpop.permute.xlu0 %1449
      %1453 = vset.pattern.permute.xlu0 4
      %1454 = vperm.xlu0 %1453, %v346
      %v1455 = vpop.permute.xlu0 %1454
      %1458 = vset.pattern.permute.xlu0 4
      %1459 = vperm.xlu0 %1458, %v347
      %v1460 = vpop.permute.xlu0 %1459
      %1463 = vset.pattern.permute.xlu0 4
      %1464 = vperm.xlu0 %1463, %v348
      %v1465 = vpop.permute.xlu0 %1464
      %1468 = vset.pattern.permute.xlu0 4
      %1469 = vperm.xlu0 %1468, %v349
      %v1470 = vpop.permute.xlu0 %1469
      %1473 = vset.pattern.permute.xlu0 4
      %1474 = vperm.xlu0 %1473, %v350
      %v1475 = vpop.permute.xlu0 %1474
      %1478 = vset.pattern.permute.xlu0 4
      %1479 = vperm.xlu0 %1478, %v351
      %v1480 = vpop.permute.xlu0 %1479
      %1483 = vset.pattern.permute.xlu0 4
      %1484 = vperm.xlu0 %1483, %v352
      %v1485 = vpop.permute.xlu0 %1484
      %1488 = vset.pattern.permute.xlu0 4
      %1489 = vperm.xlu0 %1488, %v353
      %v1490 = vpop.permute.xlu0 %1489
      %1493 = vset.pattern.permute.xlu0 4
      %1494 = vperm.xlu0 %1493, %v354
      %v1495 = vpop.permute.xlu0 %1494
      %1498 = vset.pattern.permute.xlu0 4
      %1499 = vperm.xlu0 %1498, %v355
      %v1500 = vpop.permute.xlu0 %1499
      %1503 = vset.pattern.permute.xlu0 4
      %1504 = vperm.xlu0 %1503, %v356
      %v1505 = vpop.permute.xlu0 %1504
      %1508 = vset.pattern.permute.xlu0 4
      %1509 = vperm.xlu0 %1508, %v357
      %v1510 = vpop.permute.xlu0 %1509
      %1513 = vset.pattern.permute.xlu0 4
      %1514 = vperm.xlu0 %1513, %v358
      %v1515 = vpop.permute.xlu0 %1514
      %1518 = vset.pattern.permute.xlu0 4
      %1519 = vperm.xlu0 %1518, %v359
      %v1520 = vpop.permute.xlu0 %1519
      %1523 = vset.pattern.permute.xlu0 4
      %1524 = vperm.xlu0 %1523, %v360
      %v1525 = vpop.permute.xlu0 %1524
      %1528 = vset.pattern.permute.xlu0 4
      %1529 = vperm.xlu0 %1528, %v361
      %v1530 = vpop.permute.xlu0 %1529
      %1533 = vset.pattern.permute.xlu0 4
      %1534 = vperm.xlu0 %1533, %v362
      %v1535 = vpop.permute.xlu0 %1534
      %1538 = vset.pattern.permute.xlu0 4
      %1539 = vperm.xlu0 %1538, %v363
      %v1540 = vpop.permute.xlu0 %1539
      %1543 = vset.pattern.permute.xlu0 4
      %1544 = vperm.xlu0 %1543, %v364
      %v1545 = vpop.permute.xlu0 %1544
      %1548 = vset.pattern.permute.xlu0 4
      %1549 = vperm.xlu0 %1548, %v365
      %v1550 = vpop.permute.xlu0 %1549
      %1553 = vset.pattern.permute.xlu0 4
      %1554 = vperm.xlu0 %1553, %v366
      %v1555 = vpop.permute.xlu0 %1554
      %1558 = vset.pattern.permute.xlu0 4
      %1559 = vperm.xlu0 %1558, %v367
      %v1560 = vpop.permute.xlu0 %1559
      %1563 = vset.pattern.permute.xlu0 4
      %1564 = vperm.xlu0 %1563, %v368
      %v1565 = vpop.permute.xlu0 %1564
      %1568 = vset.pattern.permute.xlu0 4
      %1569 = vperm.xlu0 %1568, %v369
      %v1570 = vpop.permute.xlu0 %1569
      %1573 = vset.pattern.permute.xlu0 4
      %1574 = vperm.xlu0 %1573, %v370
      %v1575 = vpop.permute.xlu0 %1574
      %1578 = vset.pattern.permute.xlu0 4
      %1579 = vperm.xlu0 %1578, %v371
      %v1580 = vpop.permute.xlu0 %1579
      %1583 = vset.pattern.permute.xlu0 4
      %1584 = vperm.xlu0 %1583, %v372
      %v1585 = vpop.permute.xlu0 %1584
      %1588 = vset.pattern.permute.xlu0 4
      %1589 = vperm.xlu0 %1588, %v373
      %v1590 = vpop.permute.xlu0 %1589
      %1593 = vset.pattern.permute.xlu0 4
      %1594 = vperm.xlu0 %1593, %v374
      %v1595 = vpop.permute.xlu0 %1594
      %1598 = vset.pattern.permute.xlu0 4
      %1599 = vperm.xlu0 %1598, %v375
      %v1600 = vpop.permute.xlu0 %1599
      %1603 = vset.pattern.permute.xlu0 4
      %1604 = vperm.xlu0 %1603, %v376
      %v1605 = vpop.permute.xlu0 %1604
      %1608 = vset.pattern.permute.xlu0 4
      %1609 = vperm.xlu0 %1608, %v377
      %v1610 = vpop.permute.xlu0 %1609
      %1613 = vset.pattern.permute.xlu0 4
      %1614 = vperm.xlu0 %1613, %v378
      %v1615 = vpop.permute.xlu0 %1614
      %1618 = vset.pattern.permute.xlu0 4
      %1619 = vperm.xlu0 %1618, %v379
      %v1620 = vpop.permute.xlu0 %1619
      %1623 = vset.pattern.permute.xlu0 4
      %1624 = vperm.xlu0 %1623, %v380
      %v1625 = vpop.permute.xlu0 %1624
      %1628 = vset.pattern.permute.xlu0 4
      %1629 = vperm.xlu0 %1628, %v381
      %v1630 = vpop.permute.xlu0 %1629
      %1633 = vset.pattern.permute.xlu0 4
      %1634 = vperm.xlu0 %1633, %v382
      %v1635 = vpop.permute.xlu0 %1634
      %1638 = vset.pattern.permute.xlu0 4
      %1639 = vperm.xlu0 %1638, %v383
      %v1640 = vpop.permute.xlu0 %1639
      %1643 = vset.pattern.permute.xlu0 4
      %1644 = vperm.xlu0 %1643, %v384
      %v1645 = vpop.permute.xlu0 %1644
      %1648 = vset.pattern.permute.xlu0 4
      %1649 = vperm.xlu0 %1648, %v385
      %v1650 = vpop.permute.xlu0 %1649
      %1653 = vset.pattern.permute.xlu0 4
      %1654 = vperm.xlu0 %1653, %v386
      %v1655 = vpop.permute.xlu0 %1654
      %1658 = vset.pattern.permute.xlu0 4
      %1659 = vperm.xlu0 %1658, %v387
      %v1660 = vpop.permute.xlu0 %1659
      %1663 = vset.pattern.permute.xlu0 4
      %1664 = vperm.xlu0 %1663, %v388
      %v1665 = vpop.permute.xlu0 %1664
      %1668 = vset.pattern.permute.xlu0 4
      %1669 = vperm.xlu0 %1668, %v389
      %v1670 = vpop.permute.xlu0 %1669
      %1673 = vset.pattern.permute.xlu0 4
      %1674 = vperm.xlu0 %1673, %v390
      %v1675 = vpop.permute.xlu0 %1674
      %1678 = vset.pattern.permute.xlu0 4
      %1679 = vperm.xlu0 %1678, %v391
      %v1680 = vpop.permute.xlu0 %1679
      %1683 = vset.pattern.permute.xlu0 4
      %1684 = vperm.xlu0 %1683, %v392
      %v1685 = vpop.permute.xlu0 %1684
      %1688 = vset.pattern.permute.xlu0 4
      %1689 = vperm.xlu0 %1688, %v393
      %v1690 = vpop.permute.xlu0 %1689
      %1693 = vset.pattern.permute.xlu0 4
      %1694 = vperm.xlu0 %1693, %v394
      %v1695 = vpop.permute.xlu0 %1694
      %1698 = vset.pattern.permute.xlu0 4
      %1699 = vperm.xlu0 %1698, %v395
      %v1700 = vpop.permute.xlu0 %1699
      %1703 = vset.pattern.permute.xlu0 4
      %1704 = vperm.xlu0 %1703, %v396
      %v1705 = vpop.permute.xlu0 %1704
      %1708 = vset.pattern.permute.xlu0 4
      %1709 = vperm.xlu0 %1708, %v397
      %v1710 = vpop.permute.xlu0 %1709
      %1713 = vset.pattern.permute.xlu0 4
      %1714 = vperm.xlu0 %1713, %v398
      %v1715 = vpop.permute.xlu0 %1714
      %1718 = vset.pattern.permute.xlu0 4
      %1719 = vperm.xlu0 %1718, %v399
      %v1720 = vpop.permute.xlu0 %1719
      %1723 = vset.pattern.permute.xlu0 4
      %1724 = vperm.xlu0 %1723, %v400
      %v1725 = vpop.permute.xlu0 %1724
      %1728 = vset.pattern.permute.xlu0 4
      %1729 = vperm.xlu0 %1728, %v401
      %v1730 = vpop.permute.xlu0 %1729
      %1733 = vset.pattern.permute.xlu0 4
      %1734 = vperm.xlu0 %1733, %v402
      %v1735 = vpop.permute.xlu0 %1734
      %1738 = vset.pattern.permute.xlu0 4
      %1739 = vperm.xlu0 %1738, %v403
      %v1740 = vpop.permute.xlu0 %1739
      %1743 = vset.pattern.permute.xlu0 4
      %1744 = vperm.xlu0 %1743, %v404
      %v1745 = vpop.permute.xlu0 %1744
      %1748 = vset.pattern.permute.xlu0 4
      %1749 = vperm.xlu0 %1748, %v405
      %v1750 = vpop.permute.xlu0 %1749
      %1753 = vset.pattern.permute.xlu0 4
      %1754 = vperm.xlu0 %1753, %v406
      %v1755 = vpop.permute.xlu0 %1754
      %1758 = vset.pattern.permute.xlu0 4
      %1759 = vperm.xlu0 %1758, %v407
      %v1760 = vpop.permute.xlu0 %1759
      %1763 = vset.pattern.permute.xlu0 4
      %1764 = vperm.xlu0 %1763, %v408
      %v1765 = vpop.permute.xlu0 %1764
      %1768 = vset.pattern.permute.xlu0 4
      %1769 = vperm.xlu0 %1768, %v409
      %v1770 = vpop.permute.xlu0 %1769
      %1773 = vset.pattern.permute.xlu0 4
      %1774 = vperm.xlu0 %1773, %v410
      %v1775 = vpop.permute.xlu0 %1774
      %1778 = vset.pattern.permute.xlu0 4
      %1779 = vperm.xlu0 %1778, %v411
      %v1780 = vpop.permute.xlu0 %1779
      %1783 = vset.pattern.permute.xlu0 4
      %1784 = vperm.xlu0 %1783, %v412
      %v1785 = vpop.permute.xlu0 %1784
      %1788 = vset.pattern.permute.xlu0 4
      %1789 = vperm.xlu0 %1788, %v413
      %v1790 = vpop.permute.xlu0 %1789
      %1793 = vset.pattern.permute.xlu0 4
      %1794 = vperm.xlu0 %1793, %v414
      %v1795 = vpop.permute.xlu0 %1794
      %1798 = vset.pattern.permute.xlu0 4
      %1799 = vperm.xlu0 %1798, %v415
      %v1800 = vpop.permute.xlu0 %1799
      %1803 = vset.pattern.permute.xlu0 4
      %1804 = vperm.xlu0 %1803, %v416
      %v1805 = vpop.permute.xlu0 %1804
      %1808 = vset.pattern.permute.xlu0 4
      %1809 = vperm.xlu0 %1808, %v417
      %v1810 = vpop.permute.xlu0 %1809
      %1813 = vset.pattern.permute.xlu0 4
      %1814 = vperm.xlu0 %1813, %v418
      %v1815 = vpop.permute.xlu0 %1814
      %1818 = vset.pattern.permute.xlu0 4
      %1819 = vperm.xlu0 %1818, %v419
      %v1820 = vpop.permute.xlu0 %1819
      %1823 = vset.pattern.permute.xlu0 4
      %1824 = vperm.xlu0 %1823, %v420
      %v1825 = vpop.permute.xlu0 %1824
      %1828 = vset.pattern.permute.xlu0 4
      %1829 = vperm.xlu0 %1828, %v421
      %v1830 = vpop.permute.xlu0 %1829
      %1833 = vset.pattern.permute.xlu0 4
      %1834 = vperm.xlu0 %1833, %v422
      %v1835 = vpop.permute.xlu0 %1834
      %1838 = vset.pattern.permute.xlu0 4
      %1839 = vperm.xlu0 %1838, %v423
      %v1840 = vpop.permute.xlu0 %1839
      %1843 = vset.pattern.permute.xlu0 4
      %1844 = vperm.xlu0 %1843, %v424
      %v1845 = vpop.permute.xlu0 %1844
      %1848 = vset.pattern.permute.xlu0 4
      %1849 = vperm.xlu0 %1848, %v425
      %v1850 = vpop.permute.xlu0 %1849
      %1853 = vset.pattern.permute.xlu0 4
      %1854 = vperm.xlu0 %1853, %v426
      %v1855 = vpop.permute.xlu0 %1854
      %1858 = vset.pattern.permute.xlu0 4
      %1859 = vperm.xlu0 %1858, %v427
      %v1860 = vpop.permute.xlu0 %1859
      %1863 = vset.pattern.permute.xlu0 4
      %1864 = vperm.xlu0 %1863, %v428
      %v1865 = vpop.permute.xlu0 %1864
      %1868 = vset.pattern.permute.xlu0 4
      %1869 = vperm.xlu0 %1868, %v429
      %v1870 = vpop.permute.xlu0 %1869
      %1873 = vset.pattern.permute.xlu0 4
      %1874 = vperm.xlu0 %1873, %v430
      %v1875 = vpop.permute.xlu0 %1874
      %1878 = vset.pattern.permute.xlu0 4
      %1879 = vperm.xlu0 %1878, %v431
      %v1880 = vpop.permute.xlu0 %1879
      %1883 = vset.pattern.permute.xlu0 4
      %1884 = vperm.xlu0 %1883, %v432
      %v1885 = vpop.permute.xlu0 %1884
      %1888 = vset.pattern.permute.xlu0 4
      %1889 = vperm.xlu0 %1888, %v433
      %v1890 = vpop.permute.xlu0 %1889
      %1893 = vset.pattern.permute.xlu0 4
      %1894 = vperm.xlu0 %1893, %v434
      %v1895 = vpop.permute.xlu0 %1894
      %1898 = vset.pattern.permute.xlu0 4
      %1899 = vperm.xlu0 %1898, %v435
      %v1900 = vpop.permute.xlu0 %1899
      %1903 = vset.pattern.permute.xlu0 4
      %1904 = vperm.xlu0 %1903, %v436
      %v1905 = vpop.permute.xlu0 %1904
      %1908 = vset.pattern.permute.xlu0 4
      %1909 = vperm.xlu0 %1908, %v437
      %v1910 = vpop.permute.xlu0 %1909
      %1913 = vset.pattern.permute.xlu0 4
      %1914 = vperm.xlu0 %1913, %v438
      %v1915 = vpop.permute.xlu0 %1914
      %1918 = vset.pattern.permute.xlu0 4
      %1919 = vperm.xlu0 %1918, %v439
      %v1920 = vpop.permute.xlu0 %1919
      %1923 = vset.pattern.permute.xlu0 4
      %1924 = vperm.xlu0 %1923, %v440
      %v1925 = vpop.permute.xlu0 %1924
      %1928 = vset.pattern.permute.xlu0 4
      %1929 = vperm.xlu0 %1928, %v441
      %v1930 = vpop.permute.xlu0 %1929
      %1933 = vset.pattern.permute.xlu0 4
      %1934 = vperm.xlu0 %1933, %v442
      %v1935 = vpop.permute.xlu0 %1934
      %1938 = vset.pattern.permute.xlu0 4
      %1939 = vperm.xlu0 %1938, %v443
      %v1940 = vpop.permute.xlu0 %1939
      %1943 = vset.pattern.permute.xlu0 4
      %1944 = vperm.xlu0 %1943, %v444
      %v1945 = vpop.permute.xlu0 %1944
      %1948 = vset.pattern.permute.xlu0 4
      %1949 = vperm.xlu0 %1948, %v445
      %v1950 = vpop.permute.xlu0 %1949
      %1953 = vset.pattern.permute.xlu0 4
      %1954 = vperm.xlu0 %1953, %v446
      %v1955 = vpop.permute.xlu0 %1954
      %1958 = vset.pattern.permute.xlu0 4
      %1959 = vperm.xlu0 %1958, %v447
      %v1960 = vpop.permute.xlu0 %1959
      %1963 = vset.pattern.permute.xlu0 4
      %1964 = vperm.xlu0 %1963, %v448
      %v1965 = vpop.permute.xlu0 %1964
      %1968 = vset.pattern.permute.xlu0 4
      %1969 = vperm.xlu0 %1968, %v449
      %v1970 = vpop.permute.xlu0 %1969
      %1973 = vset.pattern.permute.xlu0 4
      %1974 = vperm.xlu0 %1973, %v450
      %v1975 = vpop.permute.xlu0 %1974
      %1978 = vset.pattern.permute.xlu0 4
      %1979 = vperm.xlu0 %1978, %v451
      %v1980 = vpop.permute.xlu0 %1979
      %1983 = vset.pattern.permute.xlu0 4
      %1984 = vperm.xlu0 %1983, %v452
      %v1985 = vpop.permute.xlu0 %1984
      %1988 = vset.pattern.permute.xlu0 4
      %1989 = vperm.xlu0 %1988, %v453
      %v1990 = vpop.permute.xlu0 %1989
      %1993 = vset.pattern.permute.xlu0 4
      %1994 = vperm.xlu0 %1993, %v454
      %v1995 = vpop.permute.xlu0 %1994
      %1998 = vset.pattern.permute.xlu0 4
      %1999 = vperm.xlu0 %1998, %v455
      %v2000 = vpop.permute.xlu0 %1999
      %2003 = vset.pattern.permute.xlu0 4
      %2004 = vperm.xlu0 %2003, %v456
      %v2005 = vpop.permute.xlu0 %2004
      %v2007 = vmul.f32 %v1251, %v1380
      %v2008 = vmul.f32 %v1252, %v1385
      %v2009 = vmul.f32 %v1253, %v1390
      %v2010 = vmul.f32 %v1254, %v1395
      %v2011 = vmul.f32 %v1255, %v1400
      %v2012 = vmul.f32 %v1256, %v1405
      %v2013 = vmul.f32 %v1257, %v1410
      %v2014 = vmul.f32 %v1258, %v1415
      %v2015 = vmul.f32 %v1259, %v1420
      %v2016 = vmul.f32 %v1260, %v1425
      %v2017 = vmul.f32 %v1261, %v1430
      %v2018 = vmul.f32 %v1262, %v1435
      %v2019 = vmul.f32 %v1263, %v1440
      %v2020 = vmul.f32 %v1264, %v1445
      %v2021 = vmul.f32 %v1265, %v1450
      %v2022 = vmul.f32 %v1266, %v1455
      %v2023 = vmul.f32 %v1267, %v1460
      %v2024 = vmul.f32 %v1268, %v1465
      %v2025 = vmul.f32 %v1269, %v1470
      %v2026 = vmul.f32 %v1270, %v1475
      %v2027 = vmul.f32 %v1271, %v1480
      %v2028 = vmul.f32 %v1272, %v1485
      %v2029 = vmul.f32 %v1273, %v1490
      %v2030 = vmul.f32 %v1274, %v1495
      %v2031 = vmul.f32 %v1275, %v1500
      %v2032 = vmul.f32 %v1276, %v1505
      %v2033 = vmul.f32 %v1277, %v1510
      %v2034 = vmul.f32 %v1278, %v1515
      %v2035 = vmul.f32 %v1279, %v1520
      %v2036 = vmul.f32 %v1280, %v1525
      %v2037 = vmul.f32 %v1281, %v1530
      %v2038 = vmul.f32 %v1282, %v1535
      %v2039 = vmul.f32 %v1283, %v1540
      %v2040 = vmul.f32 %v1284, %v1545
      %v2041 = vmul.f32 %v1285, %v1550
      %v2042 = vmul.f32 %v1286, %v1555
      %v2043 = vmul.f32 %v1287, %v1560
      %v2044 = vmul.f32 %v1288, %v1565
      %v2045 = vmul.f32 %v1289, %v1570
      %v2046 = vmul.f32 %v1290, %v1575
      %v2047 = vmul.f32 %v1291, %v1580
      %v2048 = vmul.f32 %v1292, %v1585
      %v2049 = vmul.f32 %v1293, %v1590
      %v2050 = vmul.f32 %v1294, %v1595
      %v2051 = vmul.f32 %v1295, %v1600
      %v2052 = vmul.f32 %v1296, %v1605
      %v2053 = vmul.f32 %v1297, %v1610
      %v2054 = vmul.f32 %v1298, %v1615
      %v2055 = vmul.f32 %v1299, %v1620
      %v2056 = vmul.f32 %v1300, %v1625
      %v2057 = vmul.f32 %v1301, %v1630
      %v2058 = vmul.f32 %v1302, %v1635
      %v2059 = vmul.f32 %v1303, %v1640
      %v2060 = vmul.f32 %v1304, %v1645
      %v2061 = vmul.f32 %v1305, %v1650
      %v2062 = vmul.f32 %v1306, %v1655
      %v2063 = vmul.f32 %v1307, %v1660
      %v2064 = vmul.f32 %v1308, %v1665
      %v2065 = vmul.f32 %v1309, %v1670
      %v2066 = vmul.f32 %v1310, %v1675
      %v2067 = vmul.f32 %v1311, %v1680
      %v2068 = vmul.f32 %v1312, %v1685
      %v2069 = vmul.f32 %v1313, %v1690
      %v2070 = vmul.f32 %v1314, %v1695
      %v2071 = vmul.f32 %v1315, %v1700
      %v2072 = vmul.f32 %v1316, %v1705
      %v2073 = vmul.f32 %v1317, %v1710
      %v2074 = vmul.f32 %v1318, %v1715
      %v2075 = vmul.f32 %v1319, %v1720
      %v2076 = vmul.f32 %v1320, %v1725
      %v2077 = vmul.f32 %v1321, %v1730
      %v2078 = vmul.f32 %v1322, %v1735
      %v2079 = vmul.f32 %v1323, %v1740
      %v2080 = vmul.f32 %v1324, %v1745
      %v2081 = vmul.f32 %v1325, %v1750
      %v2082 = vmul.f32 %v1326, %v1755
      %v2083 = vmul.f32 %v1327, %v1760
      %v2084 = vmul.f32 %v1328, %v1765
      %v2085 = vmul.f32 %v1329, %v1770
      %v2086 = vmul.f32 %v1330, %v1775
      %v2087 = vmul.f32 %v1331, %v1780
      %v2088 = vmul.f32 %v1332, %v1785
      %v2089 = vmul.f32 %v1333, %v1790
      %v2090 = vmul.f32 %v1334, %v1795
      %v2091 = vmul.f32 %v1335, %v1800
      %v2092 = vmul.f32 %v1336, %v1805
      %v2093 = vmul.f32 %v1337, %v1810
      %v2094 = vmul.f32 %v1338, %v1815
      %v2095 = vmul.f32 %v1339, %v1820
      %v2096 = vmul.f32 %v1340, %v1825
      %v2097 = vmul.f32 %v1341, %v1830
      %v2098 = vmul.f32 %v1342, %v1835
      %v2099 = vmul.f32 %v1343, %v1840
      %v2100 = vmul.f32 %v1344, %v1845
      %v2101 = vmul.f32 %v1345, %v1850
      %v2102 = vmul.f32 %v1346, %v1855
      %v2103 = vmul.f32 %v1347, %v1860
      %v2104 = vmul.f32 %v1348, %v1865
      %v2105 = vmul.f32 %v1349, %v1870
      %v2106 = vmul.f32 %v1350, %v1875
      %v2107 = vmul.f32 %v1351, %v1880
      %v2108 = vmul.f32 %v1352, %v1885
      %v2109 = vmul.f32 %v1353, %v1890
      %v2110 = vmul.f32 %v1354, %v1895
      %v2111 = vmul.f32 %v1355, %v1900
      %v2112 = vmul.f32 %v1356, %v1905
      %v2113 = vmul.f32 %v1357, %v1910
      %v2114 = vmul.f32 %v1358, %v1915
      %v2115 = vmul.f32 %v1359, %v1920
      %v2116 = vmul.f32 %v1360, %v1925
      %v2117 = vmul.f32 %v1361, %v1930
      %v2118 = vmul.f32 %v1362, %v1935
      %v2119 = vmul.f32 %v1363, %v1940
      %v2120 = vmul.f32 %v1364, %v1945
      %v2121 = vmul.f32 %v1365, %v1950
      %v2122 = vmul.f32 %v1366, %v1955
      %v2123 = vmul.f32 %v1367, %v1960
      %v2124 = vmul.f32 %v1368, %v1965
      %v2125 = vmul.f32 %v1369, %v1970
      %v2126 = vmul.f32 %v1370, %v1975
      %v2127 = vmul.f32 %v1371, %v1980
      %v2128 = vmul.f32 %v1372, %v1985
      %v2129 = vmul.f32 %v1373, %v1990
      %v2130 = vmul.f32 %v1374, %v1995
      %v2131 = vmul.f32 %v1375, %v2000
      %v2132 = vmul.f32 %v1376, %v2005
      %v2133 = vsel %vm484, 1, 0
      %vm2134 = vcmp.eq.s32.totalorder %v2133, 1
      %2135 = vset.pattern.permute.xlu0 0
      %2136 = vperm.xlu0 %2135, %v331
      %v2137 = vpop.permute.xlu0 %2136
      %2139 = vset.pattern.permute.xlu0 0
      %2140 = vperm.xlu0 %2139, %v332
      %v2141 = vpop.permute.xlu0 %2140
      %2143 = vset.pattern.permute.xlu0 0
      %2144 = vperm.xlu0 %2143, %v333
      %v2145 = vpop.permute.xlu0 %2144
      %2147 = vset.pattern.permute.xlu0 0
      %2148 = vperm.xlu0 %2147, %v334
      %v2149 = vpop.permute.xlu0 %2148
      %2151 = vset.pattern.permute.xlu0 0
      %2152 = vperm.xlu0 %2151, %v335
      %v2153 = vpop.permute.xlu0 %2152
      %2155 = vset.pattern.permute.xlu0 0
      %2156 = vperm.xlu0 %2155, %v336
      %v2157 = vpop.permute.xlu0 %2156
      %2159 = vset.pattern.permute.xlu0 0
      %2160 = vperm.xlu0 %2159, %v337
      %v2161 = vpop.permute.xlu0 %2160
      %2163 = vset.pattern.permute.xlu0 0
      %2164 = vperm.xlu0 %2163, %v338
      %v2165 = vpop.permute.xlu0 %2164
      %2167 = vset.pattern.permute.xlu0 0
      %2168 = vperm.xlu0 %2167, %v339
      %v2169 = vpop.permute.xlu0 %2168
      %2171 = vset.pattern.permute.xlu0 0
      %2172 = vperm.xlu0 %2171, %v340
      %v2173 = vpop.permute.xlu0 %2172
      %2175 = vset.pattern.permute.xlu0 0
      %2176 = vperm.xlu0 %2175, %v341
      %v2177 = vpop.permute.xlu0 %2176
      %2179 = vset.pattern.permute.xlu0 0
      %2180 = vperm.xlu0 %2179, %v342
      %v2181 = vpop.permute.xlu0 %2180
      %2183 = vset.pattern.permute.xlu0 0
      %2184 = vperm.xlu0 %2183, %v343
      %v2185 = vpop.permute.xlu0 %2184
      %2187 = vset.pattern.permute.xlu0 0
      %2188 = vperm.xlu0 %2187, %v344
      %v2189 = vpop.permute.xlu0 %2188
      %2191 = vset.pattern.permute.xlu0 0
      %2192 = vperm.xlu0 %2191, %v345
      %v2193 = vpop.permute.xlu0 %2192
      %2195 = vset.pattern.permute.xlu0 0
      %2196 = vperm.xlu0 %2195, %v346
      %v2197 = vpop.permute.xlu0 %2196
      %2199 = vset.pattern.permute.xlu0 0
      %2200 = vperm.xlu0 %2199, %v347
      %v2201 = vpop.permute.xlu0 %2200
      %2203 = vset.pattern.permute.xlu0 0
      %2204 = vperm.xlu0 %2203, %v348
      %v2205 = vpop.permute.xlu0 %2204
      %2207 = vset.pattern.permute.xlu0 0
      %2208 = vperm.xlu0 %2207, %v349
      %v2209 = vpop.permute.xlu0 %2208
      %2211 = vset.pattern.permute.xlu0 0
      %2212 = vperm.xlu0 %2211, %v350
      %v2213 = vpop.permute.xlu0 %2212
      %2215 = vset.pattern.permute.xlu0 0
      %2216 = vperm.xlu0 %2215, %v351
      %v2217 = vpop.permute.xlu0 %2216
      %2219 = vset.pattern.permute.xlu0 0
      %2220 = vperm.xlu0 %2219, %v352
      %v2221 = vpop.permute.xlu0 %2220
      %2223 = vset.pattern.permute.xlu0 0
      %2224 = vperm.xlu0 %2223, %v353
      %v2225 = vpop.permute.xlu0 %2224
      %2227 = vset.pattern.permute.xlu0 0
      %2228 = vperm.xlu0 %2227, %v354
      %v2229 = vpop.permute.xlu0 %2228
      %2231 = vset.pattern.permute.xlu0 0
      %2232 = vperm.xlu0 %2231, %v355
      %v2233 = vpop.permute.xlu0 %2232
      %2235 = vset.pattern.permute.xlu0 0
      %2236 = vperm.xlu0 %2235, %v356
      %v2237 = vpop.permute.xlu0 %2236
      %2239 = vset.pattern.permute.xlu0 0
      %2240 = vperm.xlu0 %2239, %v357
      %v2241 = vpop.permute.xlu0 %2240
      %2243 = vset.pattern.permute.xlu0 0
      %2244 = vperm.xlu0 %2243, %v358
      %v2245 = vpop.permute.xlu0 %2244
      %2247 = vset.pattern.permute.xlu0 0
      %2248 = vperm.xlu0 %2247, %v359
      %v2249 = vpop.permute.xlu0 %2248
      %2251 = vset.pattern.permute.xlu0 0
      %2252 = vperm.xlu0 %2251, %v360
      %v2253 = vpop.permute.xlu0 %2252
      %2255 = vset.pattern.permute.xlu0 0
      %2256 = vperm.xlu0 %2255, %v361
      %v2257 = vpop.permute.xlu0 %2256
      %2259 = vset.pattern.permute.xlu0 0
      %2260 = vperm.xlu0 %2259, %v362
      %v2261 = vpop.permute.xlu0 %2260
      %2263 = vset.pattern.permute.xlu0 0
      %2264 = vperm.xlu0 %2263, %v363
      %v2265 = vpop.permute.xlu0 %2264
      %2267 = vset.pattern.permute.xlu0 0
      %2268 = vperm.xlu0 %2267, %v364
      %v2269 = vpop.permute.xlu0 %2268
      %2271 = vset.pattern.permute.xlu0 0
      %2272 = vperm.xlu0 %2271, %v365
      %v2273 = vpop.permute.xlu0 %2272
      %2275 = vset.pattern.permute.xlu0 0
      %2276 = vperm.xlu0 %2275, %v366
      %v2277 = vpop.permute.xlu0 %2276
      %2279 = vset.pattern.permute.xlu0 0
      %2280 = vperm.xlu0 %2279, %v367
      %v2281 = vpop.permute.xlu0 %2280
      %2283 = vset.pattern.permute.xlu0 0
      %2284 = vperm.xlu0 %2283, %v368
      %v2285 = vpop.permute.xlu0 %2284
      %2287 = vset.pattern.permute.xlu0 0
      %2288 = vperm.xlu0 %2287, %v369
      %v2289 = vpop.permute.xlu0 %2288
      %2291 = vset.pattern.permute.xlu0 0
      %2292 = vperm.xlu0 %2291, %v370
      %v2293 = vpop.permute.xlu0 %2292
      %2295 = vset.pattern.permute.xlu0 0
      %2296 = vperm.xlu0 %2295, %v371
      %v2297 = vpop.permute.xlu0 %2296
      %2299 = vset.pattern.permute.xlu0 0
      %2300 = vperm.xlu0 %2299, %v372
      %v2301 = vpop.permute.xlu0 %2300
      %2303 = vset.pattern.permute.xlu0 0
      %2304 = vperm.xlu0 %2303, %v373
      %v2305 = vpop.permute.xlu0 %2304
      %2307 = vset.pattern.permute.xlu0 0
      %2308 = vperm.xlu0 %2307, %v374
      %v2309 = vpop.permute.xlu0 %2308
      %2311 = vset.pattern.permute.xlu0 0
      %2312 = vperm.xlu0 %2311, %v375
      %v2313 = vpop.permute.xlu0 %2312
      %2315 = vset.pattern.permute.xlu0 0
      %2316 = vperm.xlu0 %2315, %v376
      %v2317 = vpop.permute.xlu0 %2316
      %2319 = vset.pattern.permute.xlu0 0
      %2320 = vperm.xlu0 %2319, %v377
      %v2321 = vpop.permute.xlu0 %2320
      %2323 = vset.pattern.permute.xlu0 0
      %2324 = vperm.xlu0 %2323, %v378
      %v2325 = vpop.permute.xlu0 %2324
      %2327 = vset.pattern.permute.xlu0 0
      %2328 = vperm.xlu0 %2327, %v379
      %v2329 = vpop.permute.xlu0 %2328
      %2331 = vset.pattern.permute.xlu0 0
      %2332 = vperm.xlu0 %2331, %v380
      %v2333 = vpop.permute.xlu0 %2332
      %2335 = vset.pattern.permute.xlu0 0
      %2336 = vperm.xlu0 %2335, %v381
      %v2337 = vpop.permute.xlu0 %2336
      %2339 = vset.pattern.permute.xlu0 0
      %2340 = vperm.xlu0 %2339, %v382
      %v2341 = vpop.permute.xlu0 %2340
      %2343 = vset.pattern.permute.xlu0 0
      %2344 = vperm.xlu0 %2343, %v383
      %v2345 = vpop.permute.xlu0 %2344
      %2347 = vset.pattern.permute.xlu0 0
      %2348 = vperm.xlu0 %2347, %v384
      %v2349 = vpop.permute.xlu0 %2348
      %2351 = vset.pattern.permute.xlu0 0
      %2352 = vperm.xlu0 %2351, %v385
      %v2353 = vpop.permute.xlu0 %2352
      %2355 = vset.pattern.permute.xlu0 0
      %2356 = vperm.xlu0 %2355, %v386
      %v2357 = vpop.permute.xlu0 %2356
      %2359 = vset.pattern.permute.xlu0 0
      %2360 = vperm.xlu0 %2359, %v387
      %v2361 = vpop.permute.xlu0 %2360
      %2363 = vset.pattern.permute.xlu0 0
      %2364 = vperm.xlu0 %2363, %v388
      %v2365 = vpop.permute.xlu0 %2364
      %2367 = vset.pattern.permute.xlu0 0
      %2368 = vperm.xlu0 %2367, %v389
      %v2369 = vpop.permute.xlu0 %2368
      %2371 = vset.pattern.permute.xlu0 0
      %2372 = vperm.xlu0 %2371, %v390
      %v2373 = vpop.permute.xlu0 %2372
      %2375 = vset.pattern.permute.xlu0 0
      %2376 = vperm.xlu0 %2375, %v391
      %v2377 = vpop.permute.xlu0 %2376
      %2379 = vset.pattern.permute.xlu0 0
      %2380 = vperm.xlu0 %2379, %v392
      %v2381 = vpop.permute.xlu0 %2380
      %2383 = vset.pattern.permute.xlu0 0
      %2384 = vperm.xlu0 %2383, %v393
      %v2385 = vpop.permute.xlu0 %2384
      %2387 = vset.pattern.permute.xlu0 0
      %2388 = vperm.xlu0 %2387, %v394
      %v2389 = vpop.permute.xlu0 %2388
      %2391 = vset.pattern.permute.xlu0 0
      %2392 = vperm.xlu0 %2391, %v395
      %v2393 = vpop.permute.xlu0 %2392
      %2395 = vset.pattern.permute.xlu0 0
      %2396 = vperm.xlu0 %2395, %v396
      %v2397 = vpop.permute.xlu0 %2396
      %2399 = vset.pattern.permute.xlu0 0
      %2400 = vperm.xlu0 %2399, %v397
      %v2401 = vpop.permute.xlu0 %2400
      %2403 = vset.pattern.permute.xlu0 0
      %2404 = vperm.xlu0 %2403, %v398
      %v2405 = vpop.permute.xlu0 %2404
      %2407 = vset.pattern.permute.xlu0 0
      %2408 = vperm.xlu0 %2407, %v399
      %v2409 = vpop.permute.xlu0 %2408
      %2411 = vset.pattern.permute.xlu0 0
      %2412 = vperm.xlu0 %2411, %v400
      %v2413 = vpop.permute.xlu0 %2412
      %2415 = vset.pattern.permute.xlu0 0
      %2416 = vperm.xlu0 %2415, %v401
      %v2417 = vpop.permute.xlu0 %2416
      %2419 = vset.pattern.permute.xlu0 0
      %2420 = vperm.xlu0 %2419, %v402
      %v2421 = vpop.permute.xlu0 %2420
      %2423 = vset.pattern.permute.xlu0 0
      %2424 = vperm.xlu0 %2423, %v403
      %v2425 = vpop.permute.xlu0 %2424
      %2427 = vset.pattern.permute.xlu0 0
      %2428 = vperm.xlu0 %2427, %v404
      %v2429 = vpop.permute.xlu0 %2428
      %2431 = vset.pattern.permute.xlu0 0
      %2432 = vperm.xlu0 %2431, %v405
      %v2433 = vpop.permute.xlu0 %2432
      %2435 = vset.pattern.permute.xlu0 0
      %2436 = vperm.xlu0 %2435, %v406
      %v2437 = vpop.permute.xlu0 %2436
      %2439 = vset.pattern.permute.xlu0 0
      %2440 = vperm.xlu0 %2439, %v407
      %v2441 = vpop.permute.xlu0 %2440
      %2443 = vset.pattern.permute.xlu0 0
      %2444 = vperm.xlu0 %2443, %v408
      %v2445 = vpop.permute.xlu0 %2444
      %2447 = vset.pattern.permute.xlu0 0
      %2448 = vperm.xlu0 %2447, %v409
      %v2449 = vpop.permute.xlu0 %2448
      %2451 = vset.pattern.permute.xlu0 0
      %2452 = vperm.xlu0 %2451, %v410
      %v2453 = vpop.permute.xlu0 %2452
      %2455 = vset.pattern.permute.xlu0 0
      %2456 = vperm.xlu0 %2455, %v411
      %v2457 = vpop.permute.xlu0 %2456
      %2459 = vset.pattern.permute.xlu0 0
      %2460 = vperm.xlu0 %2459, %v412
      %v2461 = vpop.permute.xlu0 %2460
      %2463 = vset.pattern.permute.xlu0 0
      %2464 = vperm.xlu0 %2463, %v413
      %v2465 = vpop.permute.xlu0 %2464
      %2467 = vset.pattern.permute.xlu0 0
      %2468 = vperm.xlu0 %2467, %v414
      %v2469 = vpop.permute.xlu0 %2468
      %2471 = vset.pattern.permute.xlu0 0
      %2472 = vperm.xlu0 %2471, %v415
      %v2473 = vpop.permute.xlu0 %2472
      %2475 = vset.pattern.permute.xlu0 0
      %2476 = vperm.xlu0 %2475, %v416
      %v2477 = vpop.permute.xlu0 %2476
      %2479 = vset.pattern.permute.xlu0 0
      %2480 = vperm.xlu0 %2479, %v417
      %v2481 = vpop.permute.xlu0 %2480
      %2483 = vset.pattern.permute.xlu0 0
      %2484 = vperm.xlu0 %2483, %v418
      %v2485 = vpop.permute.xlu0 %2484
      %2487 = vset.pattern.permute.xlu0 0
      %2488 = vperm.xlu0 %2487, %v419
      %v2489 = vpop.permute.xlu0 %2488
      %2491 = vset.pattern.permute.xlu0 0
      %2492 = vperm.xlu0 %2491, %v420
      %v2493 = vpop.permute.xlu0 %2492
      %2495 = vset.pattern.permute.xlu0 0
      %2496 = vperm.xlu0 %2495, %v421
      %v2497 = vpop.permute.xlu0 %2496
      %2499 = vset.pattern.permute.xlu0 0
      %2500 = vperm.xlu0 %2499, %v422
      %v2501 = vpop.permute.xlu0 %2500
      %2503 = vset.pattern.permute.xlu0 0
      %2504 = vperm.xlu0 %2503, %v423
      %v2505 = vpop.permute.xlu0 %2504
      %2507 = vset.pattern.permute.xlu0 0
      %2508 = vperm.xlu0 %2507, %v424
      %v2509 = vpop.permute.xlu0 %2508
      %2511 = vset.pattern.permute.xlu0 0
      %2512 = vperm.xlu0 %2511, %v425
      %v2513 = vpop.permute.xlu0 %2512
      %2515 = vset.pattern.permute.xlu0 0
      %2516 = vperm.xlu0 %2515, %v426
      %v2517 = vpop.permute.xlu0 %2516
      %2519 = vset.pattern.permute.xlu0 0
      %2520 = vperm.xlu0 %2519, %v427
      %v2521 = vpop.permute.xlu0 %2520
      %2523 = vset.pattern.permute.xlu0 0
      %2524 = vperm.xlu0 %2523, %v428
      %v2525 = vpop.permute.xlu0 %2524
      %2527 = vset.pattern.permute.xlu0 0
      %2528 = vperm.xlu0 %2527, %v429
      %v2529 = vpop.permute.xlu0 %2528
      %2531 = vset.pattern.permute.xlu0 0
      %2532 = vperm.xlu0 %2531, %v430
      %v2533 = vpop.permute.xlu0 %2532
      %2535 = vset.pattern.permute.xlu0 0
      %2536 = vperm.xlu0 %2535, %v431
      %v2537 = vpop.permute.xlu0 %2536
      %2539 = vset.pattern.permute.xlu0 0
      %2540 = vperm.xlu0 %2539, %v432
      %v2541 = vpop.permute.xlu0 %2540
      %2543 = vset.pattern.permute.xlu0 0
      %2544 = vperm.xlu0 %2543, %v433
      %v2545 = vpop.permute.xlu0 %2544
      %2547 = vset.pattern.permute.xlu0 0
      %2548 = vperm.xlu0 %2547, %v434
      %v2549 = vpop.permute.xlu0 %2548
      %2551 = vset.pattern.permute.xlu0 0
      %2552 = vperm.xlu0 %2551, %v435
      %v2553 = vpop.permute.xlu0 %2552
      %2555 = vset.pattern.permute.xlu0 0
      %2556 = vperm.xlu0 %2555, %v436
      %v2557 = vpop.permute.xlu0 %2556
      %2559 = vset.pattern.permute.xlu0 0
      %2560 = vperm.xlu0 %2559, %v437
      %v2561 = vpop.permute.xlu0 %2560
      %2563 = vset.pattern.permute.xlu0 0
      %2564 = vperm.xlu0 %2563, %v438
      %v2565 = vpop.permute.xlu0 %2564
      %2567 = vset.pattern.permute.xlu0 0
      %2568 = vperm.xlu0 %2567, %v439
      %v2569 = vpop.permute.xlu0 %2568
      %2571 = vset.pattern.permute.xlu0 0
      %2572 = vperm.xlu0 %2571, %v440
      %v2573 = vpop.permute.xlu0 %2572
      %2575 = vset.pattern.permute.xlu0 0
      %2576 = vperm.xlu0 %2575, %v441
      %v2577 = vpop.permute.xlu0 %2576
      %2579 = vset.pattern.permute.xlu0 0
      %2580 = vperm.xlu0 %2579, %v442
      %v2581 = vpop.permute.xlu0 %2580
      %2583 = vset.pattern.permute.xlu0 0
      %2584 = vperm.xlu0 %2583, %v443
      %v2585 = vpop.permute.xlu0 %2584
      %2587 = vset.pattern.permute.xlu0 0
      %2588 = vperm.xlu0 %2587, %v444
      %v2589 = vpop.permute.xlu0 %2588
      %2591 = vset.pattern.permute.xlu0 0
      %2592 = vperm.xlu0 %2591, %v445
      %v2593 = vpop.permute.xlu0 %2592
      %2595 = vset.pattern.permute.xlu0 0
      %2596 = vperm.xlu0 %2595, %v446
      %v2597 = vpop.permute.xlu0 %2596
      %2599 = vset.pattern.permute.xlu0 0
      %2600 = vperm.xlu0 %2599, %v447
      %v2601 = vpop.permute.xlu0 %2600
      %2603 = vset.pattern.permute.xlu0 0
      %2604 = vperm.xlu0 %2603, %v448
      %v2605 = vpop.permute.xlu0 %2604
      %2607 = vset.pattern.permute.xlu0 0
      %2608 = vperm.xlu0 %2607, %v449
      %v2609 = vpop.permute.xlu0 %2608
      %2611 = vset.pattern.permute.xlu0 0
      %2612 = vperm.xlu0 %2611, %v450
      %v2613 = vpop.permute.xlu0 %2612
      %2615 = vset.pattern.permute.xlu0 0
      %2616 = vperm.xlu0 %2615, %v451
      %v2617 = vpop.permute.xlu0 %2616
      %2619 = vset.pattern.permute.xlu0 0
      %2620 = vperm.xlu0 %2619, %v452
      %v2621 = vpop.permute.xlu0 %2620
      %2623 = vset.pattern.permute.xlu0 0
      %2624 = vperm.xlu0 %2623, %v453
      %v2625 = vpop.permute.xlu0 %2624
      %2627 = vset.pattern.permute.xlu0 0
      %2628 = vperm.xlu0 %2627, %v454
      %v2629 = vpop.permute.xlu0 %2628
      %2631 = vset.pattern.permute.xlu0 0
      %2632 = vperm.xlu0 %2631, %v455
      %v2633 = vpop.permute.xlu0 %2632
      %2635 = vset.pattern.permute.xlu0 0
      %2636 = vperm.xlu0 %2635, %v456
      %v2637 = vpop.permute.xlu0 %2636
      %2639 = vset.pattern.permute.xlu0 1
      %2640 = vperm.xlu0 %2639, %v331
      %v2641 = vpop.permute.xlu0 %2640
      %2643 = vset.pattern.permute.xlu0 1
      %2644 = vperm.xlu0 %2643, %v332
      %v2645 = vpop.permute.xlu0 %2644
      %2647 = vset.pattern.permute.xlu0 1
      %2648 = vperm.xlu0 %2647, %v333
      %v2649 = vpop.permute.xlu0 %2648
      %2651 = vset.pattern.permute.xlu0 1
      %2652 = vperm.xlu0 %2651, %v334
      %v2653 = vpop.permute.xlu0 %2652
      %2655 = vset.pattern.permute.xlu0 1
      %2656 = vperm.xlu0 %2655, %v335
      %v2657 = vpop.permute.xlu0 %2656
      %2659 = vset.pattern.permute.xlu0 1
      %2660 = vperm.xlu0 %2659, %v336
      %v2661 = vpop.permute.xlu0 %2660
      %2663 = vset.pattern.permute.xlu0 1
      %2664 = vperm.xlu0 %2663, %v337
      %v2665 = vpop.permute.xlu0 %2664
      %2667 = vset.pattern.permute.xlu0 1
      %2668 = vperm.xlu0 %2667, %v338
      %v2669 = vpop.permute.xlu0 %2668
      %2671 = vset.pattern.permute.xlu0 1
      %2672 = vperm.xlu0 %2671, %v339
      %v2673 = vpop.permute.xlu0 %2672
      %2675 = vset.pattern.permute.xlu0 1
      %2676 = vperm.xlu0 %2675, %v340
      %v2677 = vpop.permute.xlu0 %2676
      %2679 = vset.pattern.permute.xlu0 1
      %2680 = vperm.xlu0 %2679, %v341
      %v2681 = vpop.permute.xlu0 %2680
      %2683 = vset.pattern.permute.xlu0 1
      %2684 = vperm.xlu0 %2683, %v342
      %v2685 = vpop.permute.xlu0 %2684
      %2687 = vset.pattern.permute.xlu0 1
      %2688 = vperm.xlu0 %2687, %v343
      %v2689 = vpop.permute.xlu0 %2688
      %2691 = vset.pattern.permute.xlu0 1
      %2692 = vperm.xlu0 %2691, %v344
      %v2693 = vpop.permute.xlu0 %2692
      %2695 = vset.pattern.permute.xlu0 1
      %2696 = vperm.xlu0 %2695, %v345
      %v2697 = vpop.permute.xlu0 %2696
      %2699 = vset.pattern.permute.xlu0 1
      %2700 = vperm.xlu0 %2699, %v346
      %v2701 = vpop.permute.xlu0 %2700
      %2703 = vset.pattern.permute.xlu0 1
      %2704 = vperm.xlu0 %2703, %v347
      %v2705 = vpop.permute.xlu0 %2704
      %2707 = vset.pattern.permute.xlu0 1
      %2708 = vperm.xlu0 %2707, %v348
      %v2709 = vpop.permute.xlu0 %2708
      %2711 = vset.pattern.permute.xlu0 1
      %2712 = vperm.xlu0 %2711, %v349
      %v2713 = vpop.permute.xlu0 %2712
      %2715 = vset.pattern.permute.xlu0 1
      %2716 = vperm.xlu0 %2715, %v350
      %v2717 = vpop.permute.xlu0 %2716
      %2719 = vset.pattern.permute.xlu0 1
      %2720 = vperm.xlu0 %2719, %v351
      %v2721 = vpop.permute.xlu0 %2720
      %2723 = vset.pattern.permute.xlu0 1
      %2724 = vperm.xlu0 %2723, %v352
      %v2725 = vpop.permute.xlu0 %2724
      %2727 = vset.pattern.permute.xlu0 1
      %2728 = vperm.xlu0 %2727, %v353
      %v2729 = vpop.permute.xlu0 %2728
      %2731 = vset.pattern.permute.xlu0 1
      %2732 = vperm.xlu0 %2731, %v354
      %v2733 = vpop.permute.xlu0 %2732
      %2735 = vset.pattern.permute.xlu0 1
      %2736 = vperm.xlu0 %2735, %v355
      %v2737 = vpop.permute.xlu0 %2736
      %2739 = vset.pattern.permute.xlu0 1
      %2740 = vperm.xlu0 %2739, %v356
      %v2741 = vpop.permute.xlu0 %2740
      %2743 = vset.pattern.permute.xlu0 1
      %2744 = vperm.xlu0 %2743, %v357
      %v2745 = vpop.permute.xlu0 %2744
      %2747 = vset.pattern.permute.xlu0 1
      %2748 = vperm.xlu0 %2747, %v358
      %v2749 = vpop.permute.xlu0 %2748
      %2751 = vset.pattern.permute.xlu0 1
      %2752 = vperm.xlu0 %2751, %v359
      %v2753 = vpop.permute.xlu0 %2752
      %2755 = vset.pattern.permute.xlu0 1
      %2756 = vperm.xlu0 %2755, %v360
      %v2757 = vpop.permute.xlu0 %2756
      %2759 = vset.pattern.permute.xlu0 1
      %2760 = vperm.xlu0 %2759, %v361
      %v2761 = vpop.permute.xlu0 %2760
      %2763 = vset.pattern.permute.xlu0 1
      %2764 = vperm.xlu0 %2763, %v362
      %v2765 = vpop.permute.xlu0 %2764
      %2767 = vset.pattern.permute.xlu0 1
      %2768 = vperm.xlu0 %2767, %v363
      %v2769 = vpop.permute.xlu0 %2768
      %2771 = vset.pattern.permute.xlu0 1
      %2772 = vperm.xlu0 %2771, %v364
      %v2773 = vpop.permute.xlu0 %2772
      %2775 = vset.pattern.permute.xlu0 1
      %2776 = vperm.xlu0 %2775, %v365
      %v2777 = vpop.permute.xlu0 %2776
      %2779 = vset.pattern.permute.xlu0 1
      %2780 = vperm.xlu0 %2779, %v366
      %v2781 = vpop.permute.xlu0 %2780
      %2783 = vset.pattern.permute.xlu0 1
      %2784 = vperm.xlu0 %2783, %v367
      %v2785 = vpop.permute.xlu0 %2784
      %2787 = vset.pattern.permute.xlu0 1
      %2788 = vperm.xlu0 %2787, %v368
      %v2789 = vpop.permute.xlu0 %2788
      %2791 = vset.pattern.permute.xlu0 1
      %2792 = vperm.xlu0 %2791, %v369
      %v2793 = vpop.permute.xlu0 %2792
      %2795 = vset.pattern.permute.xlu0 1
      %2796 = vperm.xlu0 %2795, %v370
      %v2797 = vpop.permute.xlu0 %2796
      %2799 = vset.pattern.permute.xlu0 1
      %2800 = vperm.xlu0 %2799, %v371
      %v2801 = vpop.permute.xlu0 %2800
      %2803 = vset.pattern.permute.xlu0 1
      %2804 = vperm.xlu0 %2803, %v372
      %v2805 = vpop.permute.xlu0 %2804
      %2807 = vset.pattern.permute.xlu0 1
      %2808 = vperm.xlu0 %2807, %v373
      %v2809 = vpop.permute.xlu0 %2808
      %2811 = vset.pattern.permute.xlu0 1
      %2812 = vperm.xlu0 %2811, %v374
      %v2813 = vpop.permute.xlu0 %2812
      %2815 = vset.pattern.permute.xlu0 1
      %2816 = vperm.xlu0 %2815, %v375
      %v2817 = vpop.permute.xlu0 %2816
      %2819 = vset.pattern.permute.xlu0 1
      %2820 = vperm.xlu0 %2819, %v376
      %v2821 = vpop.permute.xlu0 %2820
      %2823 = vset.pattern.permute.xlu0 1
      %2824 = vperm.xlu0 %2823, %v377
      %v2825 = vpop.permute.xlu0 %2824
      %2827 = vset.pattern.permute.xlu0 1
      %2828 = vperm.xlu0 %2827, %v378
      %v2829 = vpop.permute.xlu0 %2828
      %2831 = vset.pattern.permute.xlu0 1
      %2832 = vperm.xlu0 %2831, %v379
      %v2833 = vpop.permute.xlu0 %2832
      %2835 = vset.pattern.permute.xlu0 1
      %2836 = vperm.xlu0 %2835, %v380
      %v2837 = vpop.permute.xlu0 %2836
      %2839 = vset.pattern.permute.xlu0 1
      %2840 = vperm.xlu0 %2839, %v381
      %v2841 = vpop.permute.xlu0 %2840
      %2843 = vset.pattern.permute.xlu0 1
      %2844 = vperm.xlu0 %2843, %v382
      %v2845 = vpop.permute.xlu0 %2844
      %2847 = vset.pattern.permute.xlu0 1
      %2848 = vperm.xlu0 %2847, %v383
      %v2849 = vpop.permute.xlu0 %2848
      %2851 = vset.pattern.permute.xlu0 1
      %2852 = vperm.xlu0 %2851, %v384
      %v2853 = vpop.permute.xlu0 %2852
      %2855 = vset.pattern.permute.xlu0 1
      %2856 = vperm.xlu0 %2855, %v385
      %v2857 = vpop.permute.xlu0 %2856
      %2859 = vset.pattern.permute.xlu0 1
      %2860 = vperm.xlu0 %2859, %v386
      %v2861 = vpop.permute.xlu0 %2860
      %2863 = vset.pattern.permute.xlu0 1
      %2864 = vperm.xlu0 %2863, %v387
      %v2865 = vpop.permute.xlu0 %2864
      %2867 = vset.pattern.permute.xlu0 1
      %2868 = vperm.xlu0 %2867, %v388
      %v2869 = vpop.permute.xlu0 %2868
      %2871 = vset.pattern.permute.xlu0 1
      %2872 = vperm.xlu0 %2871, %v389
      %v2873 = vpop.permute.xlu0 %2872
      %2875 = vset.pattern.permute.xlu0 1
      %2876 = vperm.xlu0 %2875, %v390
      %v2877 = vpop.permute.xlu0 %2876
      %2879 = vset.pattern.permute.xlu0 1
      %2880 = vperm.xlu0 %2879, %v391
      %v2881 = vpop.permute.xlu0 %2880
      %2883 = vset.pattern.permute.xlu0 1
      %2884 = vperm.xlu0 %2883, %v392
      %v2885 = vpop.permute.xlu0 %2884
      %2887 = vset.pattern.permute.xlu0 1
      %2888 = vperm.xlu0 %2887, %v393
      %v2889 = vpop.permute.xlu0 %2888
      %2891 = vset.pattern.permute.xlu0 1
      %2892 = vperm.xlu0 %2891, %v394
      %v2893 = vpop.permute.xlu0 %2892
      %2895 = vset.pattern.permute.xlu0 1
      %2896 = vperm.xlu0 %2895, %v395
      %v2897 = vpop.permute.xlu0 %2896
      %2899 = vset.pattern.permute.xlu0 1
      %2900 = vperm.xlu0 %2899, %v396
      %v2901 = vpop.permute.xlu0 %2900
      %2903 = vset.pattern.permute.xlu0 1
      %2904 = vperm.xlu0 %2903, %v397
      %v2905 = vpop.permute.xlu0 %2904
      %2907 = vset.pattern.permute.xlu0 1
      %2908 = vperm.xlu0 %2907, %v398
      %v2909 = vpop.permute.xlu0 %2908
      %2911 = vset.pattern.permute.xlu0 1
      %2912 = vperm.xlu0 %2911, %v399
      %v2913 = vpop.permute.xlu0 %2912
      %2915 = vset.pattern.permute.xlu0 1
      %2916 = vperm.xlu0 %2915, %v400
      %v2917 = vpop.permute.xlu0 %2916
      %2919 = vset.pattern.permute.xlu0 1
      %2920 = vperm.xlu0 %2919, %v401
      %v2921 = vpop.permute.xlu0 %2920
      %2923 = vset.pattern.permute.xlu0 1
      %2924 = vperm.xlu0 %2923, %v402
      %v2925 = vpop.permute.xlu0 %2924
      %2927 = vset.pattern.permute.xlu0 1
      %2928 = vperm.xlu0 %2927, %v403
      %v2929 = vpop.permute.xlu0 %2928
      %2931 = vset.pattern.permute.xlu0 1
      %2932 = vperm.xlu0 %2931, %v404
      %v2933 = vpop.permute.xlu0 %2932
      %2935 = vset.pattern.permute.xlu0 1
      %2936 = vperm.xlu0 %2935, %v405
      %v2937 = vpop.permute.xlu0 %2936
      %2939 = vset.pattern.permute.xlu0 1
      %2940 = vperm.xlu0 %2939, %v406
      %v2941 = vpop.permute.xlu0 %2940
      %2943 = vset.pattern.permute.xlu0 1
      %2944 = vperm.xlu0 %2943, %v407
      %v2945 = vpop.permute.xlu0 %2944
      %2947 = vset.pattern.permute.xlu0 1
      %2948 = vperm.xlu0 %2947, %v408
      %v2949 = vpop.permute.xlu0 %2948
      %2951 = vset.pattern.permute.xlu0 1
      %2952 = vperm.xlu0 %2951, %v409
      %v2953 = vpop.permute.xlu0 %2952
      %2955 = vset.pattern.permute.xlu0 1
      %2956 = vperm.xlu0 %2955, %v410
      %v2957 = vpop.permute.xlu0 %2956
      %2959 = vset.pattern.permute.xlu0 1
      %2960 = vperm.xlu0 %2959, %v411
      %v2961 = vpop.permute.xlu0 %2960
      %2963 = vset.pattern.permute.xlu0 1
      %2964 = vperm.xlu0 %2963, %v412
      %v2965 = vpop.permute.xlu0 %2964
      %2967 = vset.pattern.permute.xlu0 1
      %2968 = vperm.xlu0 %2967, %v413
      %v2969 = vpop.permute.xlu0 %2968
      %2971 = vset.pattern.permute.xlu0 1
      %2972 = vperm.xlu0 %2971, %v414
      %v2973 = vpop.permute.xlu0 %2972
      %2975 = vset.pattern.permute.xlu0 1
      %2976 = vperm.xlu0 %2975, %v415
      %v2977 = vpop.permute.xlu0 %2976
      %2979 = vset.pattern.permute.xlu0 1
      %2980 = vperm.xlu0 %2979, %v416
      %v2981 = vpop.permute.xlu0 %2980
      %2983 = vset.pattern.permute.xlu0 1
      %2984 = vperm.xlu0 %2983, %v417
      %v2985 = vpop.permute.xlu0 %2984
      %2987 = vset.pattern.permute.xlu0 1
      %2988 = vperm.xlu0 %2987, %v418
      %v2989 = vpop.permute.xlu0 %2988
      %2991 = vset.pattern.permute.xlu0 1
      %2992 = vperm.xlu0 %2991, %v419
      %v2993 = vpop.permute.xlu0 %2992
      %2995 = vset.pattern.permute.xlu0 1
      %2996 = vperm.xlu0 %2995, %v420
      %v2997 = vpop.permute.xlu0 %2996
      %2999 = vset.pattern.permute.xlu0 1
      %3000 = vperm.xlu0 %2999, %v421
      %v3001 = vpop.permute.xlu0 %3000
      %3003 = vset.pattern.permute.xlu0 1
      %3004 = vperm.xlu0 %3003, %v422
      %v3005 = vpop.permute.xlu0 %3004
      %3007 = vset.pattern.permute.xlu0 1
      %3008 = vperm.xlu0 %3007, %v423
      %v3009 = vpop.permute.xlu0 %3008
      %3011 = vset.pattern.permute.xlu0 1
      %3012 = vperm.xlu0 %3011, %v424
      %v3013 = vpop.permute.xlu0 %3012
      %3015 = vset.pattern.permute.xlu0 1
      %3016 = vperm.xlu0 %3015, %v425
      %v3017 = vpop.permute.xlu0 %3016
      %3019 = vset.pattern.permute.xlu0 1
      %3020 = vperm.xlu0 %3019, %v426
      %v3021 = vpop.permute.xlu0 %3020
      %3023 = vset.pattern.permute.xlu0 1
      %3024 = vperm.xlu0 %3023, %v427
      %v3025 = vpop.permute.xlu0 %3024
      %3027 = vset.pattern.permute.xlu0 1
      %3028 = vperm.xlu0 %3027, %v428
      %v3029 = vpop.permute.xlu0 %3028
      %3031 = vset.pattern.permute.xlu0 1
      %3032 = vperm.xlu0 %3031, %v429
      %v3033 = vpop.permute.xlu0 %3032
      %3035 = vset.pattern.permute.xlu0 1
      %3036 = vperm.xlu0 %3035, %v430
      %v3037 = vpop.permute.xlu0 %3036
      %3039 = vset.pattern.permute.xlu0 1
      %3040 = vperm.xlu0 %3039, %v431
      %v3041 = vpop.permute.xlu0 %3040
      %3043 = vset.pattern.permute.xlu0 1
      %3044 = vperm.xlu0 %3043, %v432
      %v3045 = vpop.permute.xlu0 %3044
      %3047 = vset.pattern.permute.xlu0 1
      %3048 = vperm.xlu0 %3047, %v433
      %v3049 = vpop.permute.xlu0 %3048
      %3051 = vset.pattern.permute.xlu0 1
      %3052 = vperm.xlu0 %3051, %v434
      %v3053 = vpop.permute.xlu0 %3052
      %3055 = vset.pattern.permute.xlu0 1
      %3056 = vperm.xlu0 %3055, %v435
      %v3057 = vpop.permute.xlu0 %3056
      %3059 = vset.pattern.permute.xlu0 1
      %3060 = vperm.xlu0 %3059, %v436
      %v3061 = vpop.permute.xlu0 %3060
      %3063 = vset.pattern.permute.xlu0 1
      %3064 = vperm.xlu0 %3063, %v437
      %v3065 = vpop.permute.xlu0 %3064
      %3067 = vset.pattern.permute.xlu0 1
      %3068 = vperm.xlu0 %3067, %v438
      %v3069 = vpop.permute.xlu0 %3068
      %3071 = vset.pattern.permute.xlu0 1
      %3072 = vperm.xlu0 %3071, %v439
      %v3073 = vpop.permute.xlu0 %3072
      %3075 = vset.pattern.permute.xlu0 1
      %3076 = vperm.xlu0 %3075, %v440
      %v3077 = vpop.permute.xlu0 %3076
      %3079 = vset.pattern.permute.xlu0 1
      %3080 = vperm.xlu0 %3079, %v441
      %v3081 = vpop.permute.xlu0 %3080
      %3083 = vset.pattern.permute.xlu0 1
      %3084 = vperm.xlu0 %3083, %v442
      %v3085 = vpop.permute.xlu0 %3084
      %3087 = vset.pattern.permute.xlu0 1
      %3088 = vperm.xlu0 %3087, %v443
      %v3089 = vpop.permute.xlu0 %3088
      %3091 = vset.pattern.permute.xlu0 1
      %3092 = vperm.xlu0 %3091, %v444
      %v3093 = vpop.permute.xlu0 %3092
      %3095 = vset.pattern.permute.xlu0 1
      %3096 = vperm.xlu0 %3095, %v445
      %v3097 = vpop.permute.xlu0 %3096
      %3099 = vset.pattern.permute.xlu0 1
      %3100 = vperm.xlu0 %3099, %v446
      %v3101 = vpop.permute.xlu0 %3100
      %3103 = vset.pattern.permute.xlu0 1
      %3104 = vperm.xlu0 %3103, %v447
      %v3105 = vpop.permute.xlu0 %3104
      %3107 = vset.pattern.permute.xlu0 1
      %3108 = vperm.xlu0 %3107, %v448
      %v3109 = vpop.permute.xlu0 %3108
      %3111 = vset.pattern.permute.xlu0 1
      %3112 = vperm.xlu0 %3111, %v449
      %v3113 = vpop.permute.xlu0 %3112
      %3115 = vset.pattern.permute.xlu0 1
      %3116 = vperm.xlu0 %3115, %v450
      %v3117 = vpop.permute.xlu0 %3116
      %3119 = vset.pattern.permute.xlu0 1
      %3120 = vperm.xlu0 %3119, %v451
      %v3121 = vpop.permute.xlu0 %3120
      %3123 = vset.pattern.permute.xlu0 1
      %3124 = vperm.xlu0 %3123, %v452
      %v3125 = vpop.permute.xlu0 %3124
      %3127 = vset.pattern.permute.xlu0 1
      %3128 = vperm.xlu0 %3127, %v453
      %v3129 = vpop.permute.xlu0 %3128
      %3131 = vset.pattern.permute.xlu0 1
      %3132 = vperm.xlu0 %3131, %v454
      %v3133 = vpop.permute.xlu0 %3132
      %3135 = vset.pattern.permute.xlu0 1
      %3136 = vperm.xlu0 %3135, %v455
      %v3137 = vpop.permute.xlu0 %3136
      %3139 = vset.pattern.permute.xlu0 1
      %3140 = vperm.xlu0 %3139, %v456
      %v3141 = vpop.permute.xlu0 %3140
      %v3143 = vsel %vm2134, %v2137, %v2641
      %v3144 = vsel %vm2134, %v2141, %v2645
      %v3145 = vsel %vm2134, %v2145, %v2649
      %v3146 = vsel %vm2134, %v2149, %v2653
      %v3147 = vsel %vm2134, %v2153, %v2657
      %v3148 = vsel %vm2134, %v2157, %v2661
      %v3149 = vsel %vm2134, %v2161, %v2665
      %v3150 = vsel %vm2134, %v2165, %v2669
      %v3151 = vsel %vm2134, %v2169, %v2673
      %v3152 = vsel %vm2134, %v2173, %v2677
      %v3153 = vsel %vm2134, %v2177, %v2681
      %v3154 = vsel %vm2134, %v2181, %v2685
      %v3155 = vsel %vm2134, %v2185, %v2689
      %v3156 = vsel %vm2134, %v2189, %v2693
      %v3157 = vsel %vm2134, %v2193, %v2697
      %v3158 = vsel %vm2134, %v2197, %v2701
      %v3159 = vsel %vm2134, %v2201, %v2705
      %v3160 = vsel %vm2134, %v2205, %v2709
      %v3161 = vsel %vm2134, %v2209, %v2713
      %v3162 = vsel %vm2134, %v2213, %v2717
      %v3163 = vsel %vm2134, %v2217, %v2721
      %v3164 = vsel %vm2134, %v2221, %v2725
      %v3165 = vsel %vm2134, %v2225, %v2729
      %v3166 = vsel %vm2134, %v2229, %v2733
      %v3167 = vsel %vm2134, %v2233, %v2737
      %v3168 = vsel %vm2134, %v2237, %v2741
      %v3169 = vsel %vm2134, %v2241, %v2745
      %v3170 = vsel %vm2134, %v2245, %v2749
      %v3171 = vsel %vm2134, %v2249, %v2753
      %v3172 = vsel %vm2134, %v2253, %v2757
      %v3173 = vsel %vm2134, %v2257, %v2761
      %v3174 = vsel %vm2134, %v2261, %v2765
      %v3175 = vsel %vm2134, %v2265, %v2769
      %v3176 = vsel %vm2134, %v2269, %v2773
      %v3177 = vsel %vm2134, %v2273, %v2777
      %v3178 = vsel %vm2134, %v2277, %v2781
      %v3179 = vsel %vm2134, %v2281, %v2785
      %v3180 = vsel %vm2134, %v2285, %v2789
      %v3181 = vsel %vm2134, %v2289, %v2793
      %v3182 = vsel %vm2134, %v2293, %v2797
      %v3183 = vsel %vm2134, %v2297, %v2801
      %v3184 = vsel %vm2134, %v2301, %v2805
      %v3185 = vsel %vm2134, %v2305, %v2809
      %v3186 = vsel %vm2134, %v2309, %v2813
      %v3187 = vsel %vm2134, %v2313, %v2817
      %v3188 = vsel %vm2134, %v2317, %v2821
      %v3189 = vsel %vm2134, %v2321, %v2825
      %v3190 = vsel %vm2134, %v2325, %v2829
      %v3191 = vsel %vm2134, %v2329, %v2833
      %v3192 = vsel %vm2134, %v2333, %v2837
      %v3193 = vsel %vm2134, %v2337, %v2841
      %v3194 = vsel %vm2134, %v2341, %v2845
      %v3195 = vsel %vm2134, %v2345, %v2849
      %v3196 = vsel %vm2134, %v2349, %v2853
      %v3197 = vsel %vm2134, %v2353, %v2857
      %v3198 = vsel %vm2134, %v2357, %v2861
      %v3199 = vsel %vm2134, %v2361, %v2865
      %v3200 = vsel %vm2134, %v2365, %v2869
      %v3201 = vsel %vm2134, %v2369, %v2873
      %v3202 = vsel %vm2134, %v2373, %v2877
      %v3203 = vsel %vm2134, %v2377, %v2881
      %v3204 = vsel %vm2134, %v2381, %v2885
      %v3205 = vsel %vm2134, %v2385, %v2889
      %v3206 = vsel %vm2134, %v2389, %v2893
      %v3207 = vsel %vm2134, %v2393, %v2897
      %v3208 = vsel %vm2134, %v2397, %v2901
      %v3209 = vsel %vm2134, %v2401, %v2905
      %v3210 = vsel %vm2134, %v2405, %v2909
      %v3211 = vsel %vm2134, %v2409, %v2913
      %v3212 = vsel %vm2134, %v2413, %v2917
      %v3213 = vsel %vm2134, %v2417, %v2921
      %v3214 = vsel %vm2134, %v2421, %v2925
      %v3215 = vsel %vm2134, %v2425, %v2929
      %v3216 = vsel %vm2134, %v2429, %v2933
      %v3217 = vsel %vm2134, %v2433, %v2937
      %v3218 = vsel %vm2134, %v2437, %v2941
      %v3219 = vsel %vm2134, %v2441, %v2945
      %v3220 = vsel %vm2134, %v2445, %v2949
      %v3221 = vsel %vm2134, %v2449, %v2953
      %v3222 = vsel %vm2134, %v2453, %v2957
      %v3223 = vsel %vm2134, %v2457, %v2961
      %v3224 = vsel %vm2134, %v2461, %v2965
      %v3225 = vsel %vm2134, %v2465, %v2969
      %v3226 = vsel %vm2134, %v2469, %v2973
      %v3227 = vsel %vm2134, %v2473, %v2977
      %v3228 = vsel %vm2134, %v2477, %v2981
      %v3229 = vsel %vm2134, %v2481, %v2985
      %v3230 = vsel %vm2134, %v2485, %v2989
      %v3231 = vsel %vm2134, %v2489, %v2993
      %v3232 = vsel %vm2134, %v2493, %v2997
      %v3233 = vsel %vm2134, %v2497, %v3001
      %v3234 = vsel %vm2134, %v2501, %v3005
      %v3235 = vsel %vm2134, %v2505, %v3009
      %v3236 = vsel %vm2134, %v2509, %v3013
      %v3237 = vsel %vm2134, %v2513, %v3017
      %v3238 = vsel %vm2134, %v2517, %v3021
      %v3239 = vsel %vm2134, %v2521, %v3025
      %v3240 = vsel %vm2134, %v2525, %v3029
      %v3241 = vsel %vm2134, %v2529, %v3033
      %v3242 = vsel %vm2134, %v2533, %v3037
      %v3243 = vsel %vm2134, %v2537, %v3041
      %v3244 = vsel %vm2134, %v2541, %v3045
      %v3245 = vsel %vm2134, %v2545, %v3049
      %v3246 = vsel %vm2134, %v2549, %v3053
      %v3247 = vsel %vm2134, %v2553, %v3057
      %v3248 = vsel %vm2134, %v2557, %v3061
      %v3249 = vsel %vm2134, %v2561, %v3065
      %v3250 = vsel %vm2134, %v2565, %v3069
      %v3251 = vsel %vm2134, %v2569, %v3073
      %v3252 = vsel %vm2134, %v2573, %v3077
      %v3253 = vsel %vm2134, %v2577, %v3081
      %v3254 = vsel %vm2134, %v2581, %v3085
      %v3255 = vsel %vm2134, %v2585, %v3089
      %v3256 = vsel %vm2134, %v2589, %v3093
      %v3257 = vsel %vm2134, %v2593, %v3097
      %v3258 = vsel %vm2134, %v2597, %v3101
      %v3259 = vsel %vm2134, %v2601, %v3105
      %v3260 = vsel %vm2134, %v2605, %v3109
      %v3261 = vsel %vm2134, %v2609, %v3113
      %v3262 = vsel %vm2134, %v2613, %v3117
      %v3263 = vsel %vm2134, %v2617, %v3121
      %v3264 = vsel %vm2134, %v2621, %v3125
      %v3265 = vsel %vm2134, %v2625, %v3129
      %v3266 = vsel %vm2134, %v2629, %v3133
      %v3267 = vsel %vm2134, %v2633, %v3137
      %v3268 = vsel %vm2134, %v2637, %v3141
      %v3269 = vadd.f32 %v2007, %v3143
      %v3270 = vadd.f32 %v2008, %v3144
      %v3271 = vadd.f32 %v2009, %v3145
      %v3272 = vadd.f32 %v2010, %v3146
      %v3273 = vadd.f32 %v2011, %v3147
      %v3274 = vadd.f32 %v2012, %v3148
      %v3275 = vadd.f32 %v2013, %v3149
      %v3276 = vadd.f32 %v2014, %v3150
      %v3277 = vadd.f32 %v2015, %v3151
      %v3278 = vadd.f32 %v2016, %v3152
      %v3279 = vadd.f32 %v2017, %v3153
      %v3280 = vadd.f32 %v2018, %v3154
      %v3281 = vadd.f32 %v2019, %v3155
      %v3282 = vadd.f32 %v2020, %v3156
      %v3283 = vadd.f32 %v2021, %v3157
      %v3284 = vadd.f32 %v2022, %v3158
      %v3285 = vadd.f32 %v2023, %v3159
      %v3286 = vadd.f32 %v2024, %v3160
      %v3287 = vadd.f32 %v2025, %v3161
      %v3288 = vadd.f32 %v2026, %v3162
      %v3289 = vadd.f32 %v2027, %v3163
      %v3290 = vadd.f32 %v2028, %v3164
      %v3291 = vadd.f32 %v2029, %v3165
      %v3292 = vadd.f32 %v2030, %v3166
      %v3293 = vadd.f32 %v2031, %v3167
      %v3294 = vadd.f32 %v2032, %v3168
      %v3295 = vadd.f32 %v2033, %v3169
      %v3296 = vadd.f32 %v2034, %v3170
      %v3297 = vadd.f32 %v2035, %v3171
      %v3298 = vadd.f32 %v2036, %v3172
      %v3299 = vadd.f32 %v2037, %v3173
      %v3300 = vadd.f32 %v2038, %v3174
      %v3301 = vadd.f32 %v2039, %v3175
      %v3302 = vadd.f32 %v2040, %v3176
      %v3303 = vadd.f32 %v2041, %v3177
      %v3304 = vadd.f32 %v2042, %v3178
      %v3305 = vadd.f32 %v2043, %v3179
      %v3306 = vadd.f32 %v2044, %v3180
      %v3307 = vadd.f32 %v2045, %v3181
      %v3308 = vadd.f32 %v2046, %v3182
      %v3309 = vadd.f32 %v2047, %v3183
      %v3310 = vadd.f32 %v2048, %v3184
      %v3311 = vadd.f32 %v2049, %v3185
      %v3312 = vadd.f32 %v2050, %v3186
      %v3313 = vadd.f32 %v2051, %v3187
      %v3314 = vadd.f32 %v2052, %v3188
      %v3315 = vadd.f32 %v2053, %v3189
      %v3316 = vadd.f32 %v2054, %v3190
      %v3317 = vadd.f32 %v2055, %v3191
      %v3318 = vadd.f32 %v2056, %v3192
      %v3319 = vadd.f32 %v2057, %v3193
      %v3320 = vadd.f32 %v2058, %v3194
      %v3321 = vadd.f32 %v2059, %v3195
      %v3322 = vadd.f32 %v2060, %v3196
      %v3323 = vadd.f32 %v2061, %v3197
      %v3324 = vadd.f32 %v2062, %v3198
      %v3325 = vadd.f32 %v2063, %v3199
      %v3326 = vadd.f32 %v2064, %v3200
      %v3327 = vadd.f32 %v2065, %v3201
      %v3328 = vadd.f32 %v2066, %v3202
      %v3329 = vadd.f32 %v2067, %v3203
      %v3330 = vadd.f32 %v2068, %v3204
      %v3331 = vadd.f32 %v2069, %v3205
      %v3332 = vadd.f32 %v2070, %v3206
      %v3333 = vadd.f32 %v2071, %v3207
      %v3334 = vadd.f32 %v2072, %v3208
      %v3335 = vadd.f32 %v2073, %v3209
      %v3336 = vadd.f32 %v2074, %v3210
      %v3337 = vadd.f32 %v2075, %v3211
      %v3338 = vadd.f32 %v2076, %v3212
      %v3339 = vadd.f32 %v2077, %v3213
      %v3340 = vadd.f32 %v2078, %v3214
      %v3341 = vadd.f32 %v2079, %v3215
      %v3342 = vadd.f32 %v2080, %v3216
      %v3343 = vadd.f32 %v2081, %v3217
      %v3344 = vadd.f32 %v2082, %v3218
      %v3345 = vadd.f32 %v2083, %v3219
      %v3346 = vadd.f32 %v2084, %v3220
      %v3347 = vadd.f32 %v2085, %v3221
      %v3348 = vadd.f32 %v2086, %v3222
      %v3349 = vadd.f32 %v2087, %v3223
      %v3350 = vadd.f32 %v2088, %v3224
      %v3351 = vadd.f32 %v2089, %v3225
      %v3352 = vadd.f32 %v2090, %v3226
      %v3353 = vadd.f32 %v2091, %v3227
      %v3354 = vadd.f32 %v2092, %v3228
      %v3355 = vadd.f32 %v2093, %v3229
      %v3356 = vadd.f32 %v2094, %v3230
      %v3357 = vadd.f32 %v2095, %v3231
      %v3358 = vadd.f32 %v2096, %v3232
      %v3359 = vadd.f32 %v2097, %v3233
      %v3360 = vadd.f32 %v2098, %v3234
      %v3361 = vadd.f32 %v2099, %v3235
      %v3362 = vadd.f32 %v2100, %v3236
      %v3363 = vadd.f32 %v2101, %v3237
      %v3364 = vadd.f32 %v2102, %v3238
      %v3365 = vadd.f32 %v2103, %v3239
      %v3366 = vadd.f32 %v2104, %v3240
      %v3367 = vadd.f32 %v2105, %v3241
      %v3368 = vadd.f32 %v2106, %v3242
      %v3369 = vadd.f32 %v2107, %v3243
      %v3370 = vadd.f32 %v2108, %v3244
      %v3371 = vadd.f32 %v2109, %v3245
      %v3372 = vadd.f32 %v2110, %v3246
      %v3373 = vadd.f32 %v2111, %v3247
      %v3374 = vadd.f32 %v2112, %v3248
      %v3375 = vadd.f32 %v2113, %v3249
      %v3376 = vadd.f32 %v2114, %v3250
      %v3377 = vadd.f32 %v2115, %v3251
      %v3378 = vadd.f32 %v2116, %v3252
      %v3379 = vadd.f32 %v2117, %v3253
      %v3380 = vadd.f32 %v2118, %v3254
      %v3381 = vadd.f32 %v2119, %v3255
      %v3382 = vadd.f32 %v2120, %v3256
      %v3383 = vadd.f32 %v2121, %v3257
      %v3384 = vadd.f32 %v2122, %v3258
      %v3385 = vadd.f32 %v2123, %v3259
      %v3386 = vadd.f32 %v2124, %v3260
      %v3387 = vadd.f32 %v2125, %v3261
      %v3388 = vadd.f32 %v2126, %v3262
      %v3389 = vadd.f32 %v2127, %v3263
      %v3390 = vadd.f32 %v2128, %v3264
      %v3391 = vadd.f32 %v2129, %v3265
      %v3392 = vadd.f32 %v2130, %v3266
      %v3393 = vadd.f32 %v2131, %v3267
      %v3394 = vadd.f32 %v2132, %v3268
      %v3395 = vmul.f32 %v998, %v998
      %v3396 = vmul.f32 %v1000, %v1000
      %v3397 = vmul.f32 %v1002, %v1002
      %v3398 = vmul.f32 %v1004, %v1004
      %v3399 = vmul.f32 %v1006, %v1006
      %v3400 = vmul.f32 %v1008, %v1008
      %v3401 = vmul.f32 %v1010, %v1010
      %v3402 = vmul.f32 %v1012, %v1012
      %v3403 = vmul.f32 %v1014, %v1014
      %v3404 = vmul.f32 %v1016, %v1016
      %v3405 = vmul.f32 %v1018, %v1018
      %v3406 = vmul.f32 %v1020, %v1020
      %v3407 = vmul.f32 %v1022, %v1022
      %v3408 = vmul.f32 %v1024, %v1024
      %v3409 = vmul.f32 %v1026, %v1026
      %v3410 = vmul.f32 %v1028, %v1028
      %v3411 = vmul.f32 %v1030, %v1030
      %v3412 = vmul.f32 %v1032, %v1032
      %v3413 = vmul.f32 %v1034, %v1034
      %v3414 = vmul.f32 %v1036, %v1036
      %v3415 = vmul.f32 %v1038, %v1038
      %v3416 = vmul.f32 %v1040, %v1040
      %v3417 = vmul.f32 %v1042, %v1042
      %v3418 = vmul.f32 %v1044, %v1044
      %v3419 = vmul.f32 %v1046, %v1046
      %v3420 = vmul.f32 %v1048, %v1048
      %v3421 = vmul.f32 %v1050, %v1050
      %v3422 = vmul.f32 %v1052, %v1052
      %v3423 = vmul.f32 %v1054, %v1054
      %v3424 = vmul.f32 %v1056, %v1056
      %v3425 = vmul.f32 %v1058, %v1058
      %v3426 = vmul.f32 %v1060, %v1060
      %v3427 = vmul.f32 %v1062, %v1062
      %v3428 = vmul.f32 %v1064, %v1064
      %v3429 = vmul.f32 %v1066, %v1066
      %v3430 = vmul.f32 %v1068, %v1068
      %v3431 = vmul.f32 %v1070, %v1070
      %v3432 = vmul.f32 %v1072, %v1072
      %v3433 = vmul.f32 %v1074, %v1074
      %v3434 = vmul.f32 %v1076, %v1076
      %v3435 = vmul.f32 %v1078, %v1078
      %v3436 = vmul.f32 %v1080, %v1080
      %v3437 = vmul.f32 %v1082, %v1082
      %v3438 = vmul.f32 %v1084, %v1084
      %v3439 = vmul.f32 %v1086, %v1086
      %v3440 = vmul.f32 %v1088, %v1088
      %v3441 = vmul.f32 %v1090, %v1090
      %v3442 = vmul.f32 %v1092, %v1092
      %v3443 = vmul.f32 %v1094, %v1094
      %v3444 = vmul.f32 %v1096, %v1096
      %v3445 = vmul.f32 %v1098, %v1098
      %v3446 = vmul.f32 %v1100, %v1100
      %v3447 = vmul.f32 %v1102, %v1102
      %v3448 = vmul.f32 %v1104, %v1104
      %v3449 = vmul.f32 %v1106, %v1106
      %v3450 = vmul.f32 %v1108, %v1108
      %v3451 = vmul.f32 %v1110, %v1110
      %v3452 = vmul.f32 %v1112, %v1112
      %v3453 = vmul.f32 %v1114, %v1114
      %v3454 = vmul.f32 %v1116, %v1116
      %v3455 = vmul.f32 %v1118, %v1118
      %v3456 = vmul.f32 %v1120, %v1120
      %v3457 = vmul.f32 %v1122, %v1122
      %v3458 = vmul.f32 %v1124, %v1124
      %v3459 = vmul.f32 %v1126, %v1126
      %v3460 = vmul.f32 %v1128, %v1128
      %v3461 = vmul.f32 %v1130, %v1130
      %v3462 = vmul.f32 %v1132, %v1132
      %v3463 = vmul.f32 %v1134, %v1134
      %v3464 = vmul.f32 %v1136, %v1136
      %v3465 = vmul.f32 %v1138, %v1138
      %v3466 = vmul.f32 %v1140, %v1140
      %v3467 = vmul.f32 %v1142, %v1142
      %v3468 = vmul.f32 %v1144, %v1144
      %v3469 = vmul.f32 %v1146, %v1146
      %v3470 = vmul.f32 %v1148, %v1148
      %v3471 = vmul.f32 %v1150, %v1150
      %v3472 = vmul.f32 %v1152, %v1152
      %v3473 = vmul.f32 %v1154, %v1154
      %v3474 = vmul.f32 %v1156, %v1156
      %v3475 = vmul.f32 %v1158, %v1158
      %v3476 = vmul.f32 %v1160, %v1160
      %v3477 = vmul.f32 %v1162, %v1162
      %v3478 = vmul.f32 %v1164, %v1164
      %v3479 = vmul.f32 %v1166, %v1166
      %v3480 = vmul.f32 %v1168, %v1168
      %v3481 = vmul.f32 %v1170, %v1170
      %v3482 = vmul.f32 %v1172, %v1172
      %v3483 = vmul.f32 %v1174, %v1174
      %v3484 = vmul.f32 %v1176, %v1176
      %v3485 = vmul.f32 %v1178, %v1178
      %v3486 = vmul.f32 %v1180, %v1180
      %v3487 = vmul.f32 %v1182, %v1182
      %v3488 = vmul.f32 %v1184, %v1184
      %v3489 = vmul.f32 %v1186, %v1186
      %v3490 = vmul.f32 %v1188, %v1188
      %v3491 = vmul.f32 %v1190, %v1190
      %v3492 = vmul.f32 %v1192, %v1192
      %v3493 = vmul.f32 %v1194, %v1194
      %v3494 = vmul.f32 %v1196, %v1196
      %v3495 = vmul.f32 %v1198, %v1198
      %v3496 = vmul.f32 %v1200, %v1200
      %v3497 = vmul.f32 %v1202, %v1202
      %v3498 = vmul.f32 %v1204, %v1204
      %v3499 = vmul.f32 %v1206, %v1206
      %v3500 = vmul.f32 %v1208, %v1208
      %v3501 = vmul.f32 %v1210, %v1210
      %v3502 = vmul.f32 %v1212, %v1212
      %v3503 = vmul.f32 %v1214, %v1214
      %v3504 = vmul.f32 %v1216, %v1216
      %v3505 = vmul.f32 %v1218, %v1218
      %v3506 = vmul.f32 %v1220, %v1220
      %v3507 = vmul.f32 %v1222, %v1222
      %v3508 = vmul.f32 %v1224, %v1224
      %v3509 = vmul.f32 %v1226, %v1226
      %v3510 = vmul.f32 %v1228, %v1228
      %v3511 = vmul.f32 %v1230, %v1230
      %v3512 = vmul.f32 %v1232, %v1232
      %v3513 = vmul.f32 %v1234, %v1234
      %v3514 = vmul.f32 %v1236, %v1236
      %v3515 = vmul.f32 %v1238, %v1238
      %v3516 = vmul.f32 %v1240, %v1240
      %v3517 = vmul.f32 %v1242, %v1242
      %v3518 = vmul.f32 %v1244, %v1244
      %v3519 = vmul.f32 %v1246, %v1246
      %v3520 = vmul.f32 %v1248, %v1248
      %v3521 = vsel %vm490, 1, 0
      %vm3522 = vcmp.eq.s32.totalorder %v3521, 1
      %3523 = vset.pattern.permute.xlu0 2
      %3524 = vperm.xlu0 %3523, %v331
      %v3525 = vpop.permute.xlu0 %3524
      %3527 = vset.pattern.permute.xlu0 2
      %3528 = vperm.xlu0 %3527, %v332
      %v3529 = vpop.permute.xlu0 %3528
      %3531 = vset.pattern.permute.xlu0 2
      %3532 = vperm.xlu0 %3531, %v333
      %v3533 = vpop.permute.xlu0 %3532
      %3535 = vset.pattern.permute.xlu0 2
      %3536 = vperm.xlu0 %3535, %v334
      %v3537 = vpop.permute.xlu0 %3536
      %3539 = vset.pattern.permute.xlu0 2
      %3540 = vperm.xlu0 %3539, %v335
      %v3541 = vpop.permute.xlu0 %3540
      %3543 = vset.pattern.permute.xlu0 2
      %3544 = vperm.xlu0 %3543, %v336
      %v3545 = vpop.permute.xlu0 %3544
      %3547 = vset.pattern.permute.xlu0 2
      %3548 = vperm.xlu0 %3547, %v337
      %v3549 = vpop.permute.xlu0 %3548
      %3551 = vset.pattern.permute.xlu0 2
      %3552 = vperm.xlu0 %3551, %v338
      %v3553 = vpop.permute.xlu0 %3552
      %3555 = vset.pattern.permute.xlu0 2
      %3556 = vperm.xlu0 %3555, %v339
      %v3557 = vpop.permute.xlu0 %3556
      %3559 = vset.pattern.permute.xlu0 2
      %3560 = vperm.xlu0 %3559, %v340
      %v3561 = vpop.permute.xlu0 %3560
      %3563 = vset.pattern.permute.xlu0 2
      %3564 = vperm.xlu0 %3563, %v341
      %v3565 = vpop.permute.xlu0 %3564
      %3567 = vset.pattern.permute.xlu0 2
      %3568 = vperm.xlu0 %3567, %v342
      %v3569 = vpop.permute.xlu0 %3568
      %3571 = vset.pattern.permute.xlu0 2
      %3572 = vperm.xlu0 %3571, %v343
      %v3573 = vpop.permute.xlu0 %3572
      %3575 = vset.pattern.permute.xlu0 2
      %3576 = vperm.xlu0 %3575, %v344
      %v3577 = vpop.permute.xlu0 %3576
      %3579 = vset.pattern.permute.xlu0 2
      %3580 = vperm.xlu0 %3579, %v345
      %v3581 = vpop.permute.xlu0 %3580
      %3583 = vset.pattern.permute.xlu0 2
      %3584 = vperm.xlu0 %3583, %v346
      %v3585 = vpop.permute.xlu0 %3584
      %3587 = vset.pattern.permute.xlu0 2
      %3588 = vperm.xlu0 %3587, %v347
      %v3589 = vpop.permute.xlu0 %3588
      %3591 = vset.pattern.permute.xlu0 2
      %3592 = vperm.xlu0 %3591, %v348
      %v3593 = vpop.permute.xlu0 %3592
      %3595 = vset.pattern.permute.xlu0 2
      %3596 = vperm.xlu0 %3595, %v349
      %v3597 = vpop.permute.xlu0 %3596
      %3599 = vset.pattern.permute.xlu0 2
      %3600 = vperm.xlu0 %3599, %v350
      %v3601 = vpop.permute.xlu0 %3600
      %3603 = vset.pattern.permute.xlu0 2
      %3604 = vperm.xlu0 %3603, %v351
      %v3605 = vpop.permute.xlu0 %3604
      %3607 = vset.pattern.permute.xlu0 2
      %3608 = vperm.xlu0 %3607, %v352
      %v3609 = vpop.permute.xlu0 %3608
      %3611 = vset.pattern.permute.xlu0 2
      %3612 = vperm.xlu0 %3611, %v353
      %v3613 = vpop.permute.xlu0 %3612
      %3615 = vset.pattern.permute.xlu0 2
      %3616 = vperm.xlu0 %3615, %v354
      %v3617 = vpop.permute.xlu0 %3616
      %3619 = vset.pattern.permute.xlu0 2
      %3620 = vperm.xlu0 %3619, %v355
      %v3621 = vpop.permute.xlu0 %3620
      %3623 = vset.pattern.permute.xlu0 2
      %3624 = vperm.xlu0 %3623, %v356
      %v3625 = vpop.permute.xlu0 %3624
      %3627 = vset.pattern.permute.xlu0 2
      %3628 = vperm.xlu0 %3627, %v357
      %v3629 = vpop.permute.xlu0 %3628
      %3631 = vset.pattern.permute.xlu0 2
      %3632 = vperm.xlu0 %3631, %v358
      %v3633 = vpop.permute.xlu0 %3632
      %3635 = vset.pattern.permute.xlu0 2
      %3636 = vperm.xlu0 %3635, %v359
      %v3637 = vpop.permute.xlu0 %3636
      %3639 = vset.pattern.permute.xlu0 2
      %3640 = vperm.xlu0 %3639, %v360
      %v3641 = vpop.permute.xlu0 %3640
      %3643 = vset.pattern.permute.xlu0 2
      %3644 = vperm.xlu0 %3643, %v361
      %v3645 = vpop.permute.xlu0 %3644
      %3647 = vset.pattern.permute.xlu0 2
      %3648 = vperm.xlu0 %3647, %v362
      %v3649 = vpop.permute.xlu0 %3648
      %3651 = vset.pattern.permute.xlu0 2
      %3652 = vperm.xlu0 %3651, %v363
      %v3653 = vpop.permute.xlu0 %3652
      %3655 = vset.pattern.permute.xlu0 2
      %3656 = vperm.xlu0 %3655, %v364
      %v3657 = vpop.permute.xlu0 %3656
      %3659 = vset.pattern.permute.xlu0 2
      %3660 = vperm.xlu0 %3659, %v365
      %v3661 = vpop.permute.xlu0 %3660
      %3663 = vset.pattern.permute.xlu0 2
      %3664 = vperm.xlu0 %3663, %v366
      %v3665 = vpop.permute.xlu0 %3664
      %3667 = vset.pattern.permute.xlu0 2
      %3668 = vperm.xlu0 %3667, %v367
      %v3669 = vpop.permute.xlu0 %3668
      %3671 = vset.pattern.permute.xlu0 2
      %3672 = vperm.xlu0 %3671, %v368
      %v3673 = vpop.permute.xlu0 %3672
      %3675 = vset.pattern.permute.xlu0 2
      %3676 = vperm.xlu0 %3675, %v369
      %v3677 = vpop.permute.xlu0 %3676
      %3679 = vset.pattern.permute.xlu0 2
      %3680 = vperm.xlu0 %3679, %v370
      %v3681 = vpop.permute.xlu0 %3680
      %3683 = vset.pattern.permute.xlu0 2
      %3684 = vperm.xlu0 %3683, %v371
      %v3685 = vpop.permute.xlu0 %3684
      %3687 = vset.pattern.permute.xlu0 2
      %3688 = vperm.xlu0 %3687, %v372
      %v3689 = vpop.permute.xlu0 %3688
      %3691 = vset.pattern.permute.xlu0 2
      %3692 = vperm.xlu0 %3691, %v373
      %v3693 = vpop.permute.xlu0 %3692
      %3695 = vset.pattern.permute.xlu0 2
      %3696 = vperm.xlu0 %3695, %v374
      %v3697 = vpop.permute.xlu0 %3696
      %3699 = vset.pattern.permute.xlu0 2
      %3700 = vperm.xlu0 %3699, %v375
      %v3701 = vpop.permute.xlu0 %3700
      %3703 = vset.pattern.permute.xlu0 2
      %3704 = vperm.xlu0 %3703, %v376
      %v3705 = vpop.permute.xlu0 %3704
      %3707 = vset.pattern.permute.xlu0 2
      %3708 = vperm.xlu0 %3707, %v377
      %v3709 = vpop.permute.xlu0 %3708
      %3711 = vset.pattern.permute.xlu0 2
      %3712 = vperm.xlu0 %3711, %v378
      %v3713 = vpop.permute.xlu0 %3712
      %3715 = vset.pattern.permute.xlu0 2
      %3716 = vperm.xlu0 %3715, %v379
      %v3717 = vpop.permute.xlu0 %3716
      %3719 = vset.pattern.permute.xlu0 2
      %3720 = vperm.xlu0 %3719, %v380
      %v3721 = vpop.permute.xlu0 %3720
      %3723 = vset.pattern.permute.xlu0 2
      %3724 = vperm.xlu0 %3723, %v381
      %v3725 = vpop.permute.xlu0 %3724
      %3727 = vset.pattern.permute.xlu0 2
      %3728 = vperm.xlu0 %3727, %v382
      %v3729 = vpop.permute.xlu0 %3728
      %3731 = vset.pattern.permute.xlu0 2
      %3732 = vperm.xlu0 %3731, %v383
      %v3733 = vpop.permute.xlu0 %3732
      %3735 = vset.pattern.permute.xlu0 2
      %3736 = vperm.xlu0 %3735, %v384
      %v3737 = vpop.permute.xlu0 %3736
      %3739 = vset.pattern.permute.xlu0 2
      %3740 = vperm.xlu0 %3739, %v385
      %v3741 = vpop.permute.xlu0 %3740
      %3743 = vset.pattern.permute.xlu0 2
      %3744 = vperm.xlu0 %3743, %v386
      %v3745 = vpop.permute.xlu0 %3744
      %3747 = vset.pattern.permute.xlu0 2
      %3748 = vperm.xlu0 %3747, %v387
      %v3749 = vpop.permute.xlu0 %3748
      %3751 = vset.pattern.permute.xlu0 2
      %3752 = vperm.xlu0 %3751, %v388
      %v3753 = vpop.permute.xlu0 %3752
      %3755 = vset.pattern.permute.xlu0 2
      %3756 = vperm.xlu0 %3755, %v389
      %v3757 = vpop.permute.xlu0 %3756
      %3759 = vset.pattern.permute.xlu0 2
      %3760 = vperm.xlu0 %3759, %v390
      %v3761 = vpop.permute.xlu0 %3760
      %3763 = vset.pattern.permute.xlu0 2
      %3764 = vperm.xlu0 %3763, %v391
      %v3765 = vpop.permute.xlu0 %3764
      %3767 = vset.pattern.permute.xlu0 2
      %3768 = vperm.xlu0 %3767, %v392
      %v3769 = vpop.permute.xlu0 %3768
      %3771 = vset.pattern.permute.xlu0 2
      %3772 = vperm.xlu0 %3771, %v393
      %v3773 = vpop.permute.xlu0 %3772
      %3775 = vset.pattern.permute.xlu0 2
      %3776 = vperm.xlu0 %3775, %v394
      %v3777 = vpop.permute.xlu0 %3776
      %3779 = vset.pattern.permute.xlu0 2
      %3780 = vperm.xlu0 %3779, %v395
      %v3781 = vpop.permute.xlu0 %3780
      %3783 = vset.pattern.permute.xlu0 2
      %3784 = vperm.xlu0 %3783, %v396
      %v3785 = vpop.permute.xlu0 %3784
      %3787 = vset.pattern.permute.xlu0 2
      %3788 = vperm.xlu0 %3787, %v397
      %v3789 = vpop.permute.xlu0 %3788
      %3791 = vset.pattern.permute.xlu0 2
      %3792 = vperm.xlu0 %3791, %v398
      %v3793 = vpop.permute.xlu0 %3792
      %3795 = vset.pattern.permute.xlu0 2
      %3796 = vperm.xlu0 %3795, %v399
      %v3797 = vpop.permute.xlu0 %3796
      %3799 = vset.pattern.permute.xlu0 2
      %3800 = vperm.xlu0 %3799, %v400
      %v3801 = vpop.permute.xlu0 %3800
      %3803 = vset.pattern.permute.xlu0 2
      %3804 = vperm.xlu0 %3803, %v401
      %v3805 = vpop.permute.xlu0 %3804
      %3807 = vset.pattern.permute.xlu0 2
      %3808 = vperm.xlu0 %3807, %v402
      %v3809 = vpop.permute.xlu0 %3808
      %3811 = vset.pattern.permute.xlu0 2
      %3812 = vperm.xlu0 %3811, %v403
      %v3813 = vpop.permute.xlu0 %3812
      %3815 = vset.pattern.permute.xlu0 2
      %3816 = vperm.xlu0 %3815, %v404
      %v3817 = vpop.permute.xlu0 %3816
      %3819 = vset.pattern.permute.xlu0 2
      %3820 = vperm.xlu0 %3819, %v405
      %v3821 = vpop.permute.xlu0 %3820
      %3823 = vset.pattern.permute.xlu0 2
      %3824 = vperm.xlu0 %3823, %v406
      %v3825 = vpop.permute.xlu0 %3824
      %3827 = vset.pattern.permute.xlu0 2
      %3828 = vperm.xlu0 %3827, %v407
      %v3829 = vpop.permute.xlu0 %3828
      %3831 = vset.pattern.permute.xlu0 2
      %3832 = vperm.xlu0 %3831, %v408
      %v3833 = vpop.permute.xlu0 %3832
      %3835 = vset.pattern.permute.xlu0 2
      %3836 = vperm.xlu0 %3835, %v409
      %v3837 = vpop.permute.xlu0 %3836
      %3839 = vset.pattern.permute.xlu0 2
      %3840 = vperm.xlu0 %3839, %v410
      %v3841 = vpop.permute.xlu0 %3840
      %3843 = vset.pattern.permute.xlu0 2
      %3844 = vperm.xlu0 %3843, %v411
      %v3845 = vpop.permute.xlu0 %3844
      %3847 = vset.pattern.permute.xlu0 2
      %3848 = vperm.xlu0 %3847, %v412
      %v3849 = vpop.permute.xlu0 %3848
      %3851 = vset.pattern.permute.xlu0 2
      %3852 = vperm.xlu0 %3851, %v413
      %v3853 = vpop.permute.xlu0 %3852
      %3855 = vset.pattern.permute.xlu0 2
      %3856 = vperm.xlu0 %3855, %v414
      %v3857 = vpop.permute.xlu0 %3856
      %3859 = vset.pattern.permute.xlu0 2
      %3860 = vperm.xlu0 %3859, %v415
      %v3861 = vpop.permute.xlu0 %3860
      %3863 = vset.pattern.permute.xlu0 2
      %3864 = vperm.xlu0 %3863, %v416
      %v3865 = vpop.permute.xlu0 %3864
      %3867 = vset.pattern.permute.xlu0 2
      %3868 = vperm.xlu0 %3867, %v417
      %v3869 = vpop.permute.xlu0 %3868
      %3871 = vset.pattern.permute.xlu0 2
      %3872 = vperm.xlu0 %3871, %v418
      %v3873 = vpop.permute.xlu0 %3872
      %3875 = vset.pattern.permute.xlu0 2
      %3876 = vperm.xlu0 %3875, %v419
      %v3877 = vpop.permute.xlu0 %3876
      %3879 = vset.pattern.permute.xlu0 2
      %3880 = vperm.xlu0 %3879, %v420
      %v3881 = vpop.permute.xlu0 %3880
      %3883 = vset.pattern.permute.xlu0 2
      %3884 = vperm.xlu0 %3883, %v421
      %v3885 = vpop.permute.xlu0 %3884
      %3887 = vset.pattern.permute.xlu0 2
      %3888 = vperm.xlu0 %3887, %v422
      %v3889 = vpop.permute.xlu0 %3888
      %3891 = vset.pattern.permute.xlu0 2
      %3892 = vperm.xlu0 %3891, %v423
      %v3893 = vpop.permute.xlu0 %3892
      %3895 = vset.pattern.permute.xlu0 2
      %3896 = vperm.xlu0 %3895, %v424
      %v3897 = vpop.permute.xlu0 %3896
      %3899 = vset.pattern.permute.xlu0 2
      %3900 = vperm.xlu0 %3899, %v425
      %v3901 = vpop.permute.xlu0 %3900
      %3903 = vset.pattern.permute.xlu0 2
      %3904 = vperm.xlu0 %3903, %v426
      %v3905 = vpop.permute.xlu0 %3904
      %3907 = vset.pattern.permute.xlu0 2
      %3908 = vperm.xlu0 %3907, %v427
      %v3909 = vpop.permute.xlu0 %3908
      %3911 = vset.pattern.permute.xlu0 2
      %3912 = vperm.xlu0 %3911, %v428
      %v3913 = vpop.permute.xlu0 %3912
      %3915 = vset.pattern.permute.xlu0 2
      %3916 = vperm.xlu0 %3915, %v429
      %v3917 = vpop.permute.xlu0 %3916
      %3919 = vset.pattern.permute.xlu0 2
      %3920 = vperm.xlu0 %3919, %v430
      %v3921 = vpop.permute.xlu0 %3920
      %3923 = vset.pattern.permute.xlu0 2
      %3924 = vperm.xlu0 %3923, %v431
      %v3925 = vpop.permute.xlu0 %3924
      %3927 = vset.pattern.permute.xlu0 2
      %3928 = vperm.xlu0 %3927, %v432
      %v3929 = vpop.permute.xlu0 %3928
      %3931 = vset.pattern.permute.xlu0 2
      %3932 = vperm.xlu0 %3931, %v433
      %v3933 = vpop.permute.xlu0 %3932
      %3935 = vset.pattern.permute.xlu0 2
      %3936 = vperm.xlu0 %3935, %v434
      %v3937 = vpop.permute.xlu0 %3936
      %3939 = vset.pattern.permute.xlu0 2
      %3940 = vperm.xlu0 %3939, %v435
      %v3941 = vpop.permute.xlu0 %3940
      %3943 = vset.pattern.permute.xlu0 2
      %3944 = vperm.xlu0 %3943, %v436
      %v3945 = vpop.permute.xlu0 %3944
      %3947 = vset.pattern.permute.xlu0 2
      %3948 = vperm.xlu0 %3947, %v437
      %v3949 = vpop.permute.xlu0 %3948
      %3951 = vset.pattern.permute.xlu0 2
      %3952 = vperm.xlu0 %3951, %v438
      %v3953 = vpop.permute.xlu0 %3952
      %3955 = vset.pattern.permute.xlu0 2
      %3956 = vperm.xlu0 %3955, %v439
      %v3957 = vpop.permute.xlu0 %3956
      %3959 = vset.pattern.permute.xlu0 2
      %3960 = vperm.xlu0 %3959, %v440
      %v3961 = vpop.permute.xlu0 %3960
      %3963 = vset.pattern.permute.xlu0 2
      %3964 = vperm.xlu0 %3963, %v441
      %v3965 = vpop.permute.xlu0 %3964
      %3967 = vset.pattern.permute.xlu0 2
      %3968 = vperm.xlu0 %3967, %v442
      %v3969 = vpop.permute.xlu0 %3968
      %3971 = vset.pattern.permute.xlu0 2
      %3972 = vperm.xlu0 %3971, %v443
      %v3973 = vpop.permute.xlu0 %3972
      %3975 = vset.pattern.permute.xlu0 2
      %3976 = vperm.xlu0 %3975, %v444
      %v3977 = vpop.permute.xlu0 %3976
      %3979 = vset.pattern.permute.xlu0 2
      %3980 = vperm.xlu0 %3979, %v445
      %v3981 = vpop.permute.xlu0 %3980
      %3983 = vset.pattern.permute.xlu0 2
      %3984 = vperm.xlu0 %3983, %v446
      %v3985 = vpop.permute.xlu0 %3984
      %3987 = vset.pattern.permute.xlu0 2
      %3988 = vperm.xlu0 %3987, %v447
      %v3989 = vpop.permute.xlu0 %3988
      %3991 = vset.pattern.permute.xlu0 2
      %3992 = vperm.xlu0 %3991, %v448
      %v3993 = vpop.permute.xlu0 %3992
      %3995 = vset.pattern.permute.xlu0 2
      %3996 = vperm.xlu0 %3995, %v449
      %v3997 = vpop.permute.xlu0 %3996
      %3999 = vset.pattern.permute.xlu0 2
      %4000 = vperm.xlu0 %3999, %v450
      %v4001 = vpop.permute.xlu0 %4000
      %4003 = vset.pattern.permute.xlu0 2
      %4004 = vperm.xlu0 %4003, %v451
      %v4005 = vpop.permute.xlu0 %4004
      %4007 = vset.pattern.permute.xlu0 2
      %4008 = vperm.xlu0 %4007, %v452
      %v4009 = vpop.permute.xlu0 %4008
      %4011 = vset.pattern.permute.xlu0 2
      %4012 = vperm.xlu0 %4011, %v453
      %v4013 = vpop.permute.xlu0 %4012
      %4015 = vset.pattern.permute.xlu0 2
      %4016 = vperm.xlu0 %4015, %v454
      %v4017 = vpop.permute.xlu0 %4016
      %4019 = vset.pattern.permute.xlu0 2
      %4020 = vperm.xlu0 %4019, %v455
      %v4021 = vpop.permute.xlu0 %4020
      %4023 = vset.pattern.permute.xlu0 2
      %4024 = vperm.xlu0 %4023, %v456
      %v4025 = vpop.permute.xlu0 %4024
      %4027 = vset.pattern.permute.xlu0 3
      %4028 = vperm.xlu0 %4027, %v331
      %v4029 = vpop.permute.xlu0 %4028
      %4031 = vset.pattern.permute.xlu0 3
      %4032 = vperm.xlu0 %4031, %v332
      %v4033 = vpop.permute.xlu0 %4032
      %4035 = vset.pattern.permute.xlu0 3
      %4036 = vperm.xlu0 %4035, %v333
      %v4037 = vpop.permute.xlu0 %4036
      %4039 = vset.pattern.permute.xlu0 3
      %4040 = vperm.xlu0 %4039, %v334
      %v4041 = vpop.permute.xlu0 %4040
      %4043 = vset.pattern.permute.xlu0 3
      %4044 = vperm.xlu0 %4043, %v335
      %v4045 = vpop.permute.xlu0 %4044
      %4047 = vset.pattern.permute.xlu0 3
      %4048 = vperm.xlu0 %4047, %v336
      %v4049 = vpop.permute.xlu0 %4048
      %4051 = vset.pattern.permute.xlu0 3
      %4052 = vperm.xlu0 %4051, %v337
      %v4053 = vpop.permute.xlu0 %4052
      %4055 = vset.pattern.permute.xlu0 3
      %4056 = vperm.xlu0 %4055, %v338
      %v4057 = vpop.permute.xlu0 %4056
      %4059 = vset.pattern.permute.xlu0 3
      %4060 = vperm.xlu0 %4059, %v339
      %v4061 = vpop.permute.xlu0 %4060
      %4063 = vset.pattern.permute.xlu0 3
      %4064 = vperm.xlu0 %4063, %v340
      %v4065 = vpop.permute.xlu0 %4064
      %4067 = vset.pattern.permute.xlu0 3
      %4068 = vperm.xlu0 %4067, %v341
      %v4069 = vpop.permute.xlu0 %4068
      %4071 = vset.pattern.permute.xlu0 3
      %4072 = vperm.xlu0 %4071, %v342
      %v4073 = vpop.permute.xlu0 %4072
      %4075 = vset.pattern.permute.xlu0 3
      %4076 = vperm.xlu0 %4075, %v343
      %v4077 = vpop.permute.xlu0 %4076
      %4079 = vset.pattern.permute.xlu0 3
      %4080 = vperm.xlu0 %4079, %v344
      %v4081 = vpop.permute.xlu0 %4080
      %4083 = vset.pattern.permute.xlu0 3
      %4084 = vperm.xlu0 %4083, %v345
      %v4085 = vpop.permute.xlu0 %4084
      %4087 = vset.pattern.permute.xlu0 3
      %4088 = vperm.xlu0 %4087, %v346
      %v4089 = vpop.permute.xlu0 %4088
      %4091 = vset.pattern.permute.xlu0 3
      %4092 = vperm.xlu0 %4091, %v347
      %v4093 = vpop.permute.xlu0 %4092
      %4095 = vset.pattern.permute.xlu0 3
      %4096 = vperm.xlu0 %4095, %v348
      %v4097 = vpop.permute.xlu0 %4096
      %4099 = vset.pattern.permute.xlu0 3
      %4100 = vperm.xlu0 %4099, %v349
      %v4101 = vpop.permute.xlu0 %4100
      %4103 = vset.pattern.permute.xlu0 3
      %4104 = vperm.xlu0 %4103, %v350
      %v4105 = vpop.permute.xlu0 %4104
      %4107 = vset.pattern.permute.xlu0 3
      %4108 = vperm.xlu0 %4107, %v351
      %v4109 = vpop.permute.xlu0 %4108
      %4111 = vset.pattern.permute.xlu0 3
      %4112 = vperm.xlu0 %4111, %v352
      %v4113 = vpop.permute.xlu0 %4112
      %4115 = vset.pattern.permute.xlu0 3
      %4116 = vperm.xlu0 %4115, %v353
      %v4117 = vpop.permute.xlu0 %4116
      %4119 = vset.pattern.permute.xlu0 3
      %4120 = vperm.xlu0 %4119, %v354
      %v4121 = vpop.permute.xlu0 %4120
      %4123 = vset.pattern.permute.xlu0 3
      %4124 = vperm.xlu0 %4123, %v355
      %v4125 = vpop.permute.xlu0 %4124
      %4127 = vset.pattern.permute.xlu0 3
      %4128 = vperm.xlu0 %4127, %v356
      %v4129 = vpop.permute.xlu0 %4128
      %4131 = vset.pattern.permute.xlu0 3
      %4132 = vperm.xlu0 %4131, %v357
      %v4133 = vpop.permute.xlu0 %4132
      %4135 = vset.pattern.permute.xlu0 3
      %4136 = vperm.xlu0 %4135, %v358
      %v4137 = vpop.permute.xlu0 %4136
      %4139 = vset.pattern.permute.xlu0 3
      %4140 = vperm.xlu0 %4139, %v359
      %v4141 = vpop.permute.xlu0 %4140
      %4143 = vset.pattern.permute.xlu0 3
      %4144 = vperm.xlu0 %4143, %v360
      %v4145 = vpop.permute.xlu0 %4144
      %4147 = vset.pattern.permute.xlu0 3
      %4148 = vperm.xlu0 %4147, %v361
      %v4149 = vpop.permute.xlu0 %4148
      %4151 = vset.pattern.permute.xlu0 3
      %4152 = vperm.xlu0 %4151, %v362
      %v4153 = vpop.permute.xlu0 %4152
      %4155 = vset.pattern.permute.xlu0 3
      %4156 = vperm.xlu0 %4155, %v363
      %v4157 = vpop.permute.xlu0 %4156
      %4159 = vset.pattern.permute.xlu0 3
      %4160 = vperm.xlu0 %4159, %v364
      %v4161 = vpop.permute.xlu0 %4160
      %4163 = vset.pattern.permute.xlu0 3
      %4164 = vperm.xlu0 %4163, %v365
      %v4165 = vpop.permute.xlu0 %4164
      %4167 = vset.pattern.permute.xlu0 3
      %4168 = vperm.xlu0 %4167, %v366
      %v4169 = vpop.permute.xlu0 %4168
      %4171 = vset.pattern.permute.xlu0 3
      %4172 = vperm.xlu0 %4171, %v367
      %v4173 = vpop.permute.xlu0 %4172
      %4175 = vset.pattern.permute.xlu0 3
      %4176 = vperm.xlu0 %4175, %v368
      %v4177 = vpop.permute.xlu0 %4176
      %4179 = vset.pattern.permute.xlu0 3
      %4180 = vperm.xlu0 %4179, %v369
      %v4181 = vpop.permute.xlu0 %4180
      %4183 = vset.pattern.permute.xlu0 3
      %4184 = vperm.xlu0 %4183, %v370
      %v4185 = vpop.permute.xlu0 %4184
      %4187 = vset.pattern.permute.xlu0 3
      %4188 = vperm.xlu0 %4187, %v371
      %v4189 = vpop.permute.xlu0 %4188
      %4191 = vset.pattern.permute.xlu0 3
      %4192 = vperm.xlu0 %4191, %v372
      %v4193 = vpop.permute.xlu0 %4192
      %4195 = vset.pattern.permute.xlu0 3
      %4196 = vperm.xlu0 %4195, %v373
      %v4197 = vpop.permute.xlu0 %4196
      %4199 = vset.pattern.permute.xlu0 3
      %4200 = vperm.xlu0 %4199, %v374
      %v4201 = vpop.permute.xlu0 %4200
      %4203 = vset.pattern.permute.xlu0 3
      %4204 = vperm.xlu0 %4203, %v375
      %v4205 = vpop.permute.xlu0 %4204
      %4207 = vset.pattern.permute.xlu0 3
      %4208 = vperm.xlu0 %4207, %v376
      %v4209 = vpop.permute.xlu0 %4208
      %4211 = vset.pattern.permute.xlu0 3
      %4212 = vperm.xlu0 %4211, %v377
      %v4213 = vpop.permute.xlu0 %4212
      %4215 = vset.pattern.permute.xlu0 3
      %4216 = vperm.xlu0 %4215, %v378
      %v4217 = vpop.permute.xlu0 %4216
      %4219 = vset.pattern.permute.xlu0 3
      %4220 = vperm.xlu0 %4219, %v379
      %v4221 = vpop.permute.xlu0 %4220
      %4223 = vset.pattern.permute.xlu0 3
      %4224 = vperm.xlu0 %4223, %v380
      %v4225 = vpop.permute.xlu0 %4224
      %4227 = vset.pattern.permute.xlu0 3
      %4228 = vperm.xlu0 %4227, %v381
      %v4229 = vpop.permute.xlu0 %4228
      %4231 = vset.pattern.permute.xlu0 3
      %4232 = vperm.xlu0 %4231, %v382
      %v4233 = vpop.permute.xlu0 %4232
      %4235 = vset.pattern.permute.xlu0 3
      %4236 = vperm.xlu0 %4235, %v383
      %v4237 = vpop.permute.xlu0 %4236
      %4239 = vset.pattern.permute.xlu0 3
      %4240 = vperm.xlu0 %4239, %v384
      %v4241 = vpop.permute.xlu0 %4240
      %4243 = vset.pattern.permute.xlu0 3
      %4244 = vperm.xlu0 %4243, %v385
      %v4245 = vpop.permute.xlu0 %4244
      %4247 = vset.pattern.permute.xlu0 3
      %4248 = vperm.xlu0 %4247, %v386
      %v4249 = vpop.permute.xlu0 %4248
      %4251 = vset.pattern.permute.xlu0 3
      %4252 = vperm.xlu0 %4251, %v387
      %v4253 = vpop.permute.xlu0 %4252
      %4255 = vset.pattern.permute.xlu0 3
      %4256 = vperm.xlu0 %4255, %v388
      %v4257 = vpop.permute.xlu0 %4256
      %4259 = vset.pattern.permute.xlu0 3
      %4260 = vperm.xlu0 %4259, %v389
      %v4261 = vpop.permute.xlu0 %4260
      %4263 = vset.pattern.permute.xlu0 3
      %4264 = vperm.xlu0 %4263, %v390
      %v4265 = vpop.permute.xlu0 %4264
      %4267 = vset.pattern.permute.xlu0 3
      %4268 = vperm.xlu0 %4267, %v391
      %v4269 = vpop.permute.xlu0 %4268
      %4271 = vset.pattern.permute.xlu0 3
      %4272 = vperm.xlu0 %4271, %v392
      %v4273 = vpop.permute.xlu0 %4272
      %4275 = vset.pattern.permute.xlu0 3
      %4276 = vperm.xlu0 %4275, %v393
      %v4277 = vpop.permute.xlu0 %4276
      %4279 = vset.pattern.permute.xlu0 3
      %4280 = vperm.xlu0 %4279, %v394
      %v4281 = vpop.permute.xlu0 %4280
      %4283 = vset.pattern.permute.xlu0 3
      %4284 = vperm.xlu0 %4283, %v395
      %v4285 = vpop.permute.xlu0 %4284
      %4287 = vset.pattern.permute.xlu0 3
      %4288 = vperm.xlu0 %4287, %v396
      %v4289 = vpop.permute.xlu0 %4288
      %4291 = vset.pattern.permute.xlu0 3
      %4292 = vperm.xlu0 %4291, %v397
      %v4293 = vpop.permute.xlu0 %4292
      %4295 = vset.pattern.permute.xlu0 3
      %4296 = vperm.xlu0 %4295, %v398
      %v4297 = vpop.permute.xlu0 %4296
      %4299 = vset.pattern.permute.xlu0 3
      %4300 = vperm.xlu0 %4299, %v399
      %v4301 = vpop.permute.xlu0 %4300
      %4303 = vset.pattern.permute.xlu0 3
      %4304 = vperm.xlu0 %4303, %v400
      %v4305 = vpop.permute.xlu0 %4304
      %4307 = vset.pattern.permute.xlu0 3
      %4308 = vperm.xlu0 %4307, %v401
      %v4309 = vpop.permute.xlu0 %4308
      %4311 = vset.pattern.permute.xlu0 3
      %4312 = vperm.xlu0 %4311, %v402
      %v4313 = vpop.permute.xlu0 %4312
      %4315 = vset.pattern.permute.xlu0 3
      %4316 = vperm.xlu0 %4315, %v403
      %v4317 = vpop.permute.xlu0 %4316
      %4319 = vset.pattern.permute.xlu0 3
      %4320 = vperm.xlu0 %4319, %v404
      %v4321 = vpop.permute.xlu0 %4320
      %4323 = vset.pattern.permute.xlu0 3
      %4324 = vperm.xlu0 %4323, %v405
      %v4325 = vpop.permute.xlu0 %4324
      %4327 = vset.pattern.permute.xlu0 3
      %4328 = vperm.xlu0 %4327, %v406
      %v4329 = vpop.permute.xlu0 %4328
      %4331 = vset.pattern.permute.xlu0 3
      %4332 = vperm.xlu0 %4331, %v407
      %v4333 = vpop.permute.xlu0 %4332
      %4335 = vset.pattern.permute.xlu0 3
      %4336 = vperm.xlu0 %4335, %v408
      %v4337 = vpop.permute.xlu0 %4336
      %4339 = vset.pattern.permute.xlu0 3
      %4340 = vperm.xlu0 %4339, %v409
      %v4341 = vpop.permute.xlu0 %4340
      %4343 = vset.pattern.permute.xlu0 3
      %4344 = vperm.xlu0 %4343, %v410
      %v4345 = vpop.permute.xlu0 %4344
      %4347 = vset.pattern.permute.xlu0 3
      %4348 = vperm.xlu0 %4347, %v411
      %v4349 = vpop.permute.xlu0 %4348
      %4351 = vset.pattern.permute.xlu0 3
      %4352 = vperm.xlu0 %4351, %v412
      %v4353 = vpop.permute.xlu0 %4352
      %4355 = vset.pattern.permute.xlu0 3
      %4356 = vperm.xlu0 %4355, %v413
      %v4357 = vpop.permute.xlu0 %4356
      %4359 = vset.pattern.permute.xlu0 3
      %4360 = vperm.xlu0 %4359, %v414
      %v4361 = vpop.permute.xlu0 %4360
      %4363 = vset.pattern.permute.xlu0 3
      %4364 = vperm.xlu0 %4363, %v415
      %v4365 = vpop.permute.xlu0 %4364
      %4367 = vset.pattern.permute.xlu0 3
      %4368 = vperm.xlu0 %4367, %v416
      %v4369 = vpop.permute.xlu0 %4368
      %4371 = vset.pattern.permute.xlu0 3
      %4372 = vperm.xlu0 %4371, %v417
      %v4373 = vpop.permute.xlu0 %4372
      %4375 = vset.pattern.permute.xlu0 3
      %4376 = vperm.xlu0 %4375, %v418
      %v4377 = vpop.permute.xlu0 %4376
      %4379 = vset.pattern.permute.xlu0 3
      %4380 = vperm.xlu0 %4379, %v419
      %v4381 = vpop.permute.xlu0 %4380
      %4383 = vset.pattern.permute.xlu0 3
      %4384 = vperm.xlu0 %4383, %v420
      %v4385 = vpop.permute.xlu0 %4384
      %4387 = vset.pattern.permute.xlu0 3
      %4388 = vperm.xlu0 %4387, %v421
      %v4389 = vpop.permute.xlu0 %4388
      %4391 = vset.pattern.permute.xlu0 3
      %4392 = vperm.xlu0 %4391, %v422
      %v4393 = vpop.permute.xlu0 %4392
      %4395 = vset.pattern.permute.xlu0 3
      %4396 = vperm.xlu0 %4395, %v423
      %v4397 = vpop.permute.xlu0 %4396
      %4399 = vset.pattern.permute.xlu0 3
      %4400 = vperm.xlu0 %4399, %v424
      %v4401 = vpop.permute.xlu0 %4400
      %4403 = vset.pattern.permute.xlu0 3
      %4404 = vperm.xlu0 %4403, %v425
      %v4405 = vpop.permute.xlu0 %4404
      %4407 = vset.pattern.permute.xlu0 3
      %4408 = vperm.xlu0 %4407, %v426
      %v4409 = vpop.permute.xlu0 %4408
      %4411 = vset.pattern.permute.xlu0 3
      %4412 = vperm.xlu0 %4411, %v427
      %v4413 = vpop.permute.xlu0 %4412
      %4415 = vset.pattern.permute.xlu0 3
      %4416 = vperm.xlu0 %4415, %v428
      %v4417 = vpop.permute.xlu0 %4416
      %4419 = vset.pattern.permute.xlu0 3
      %4420 = vperm.xlu0 %4419, %v429
      %v4421 = vpop.permute.xlu0 %4420
      %4423 = vset.pattern.permute.xlu0 3
      %4424 = vperm.xlu0 %4423, %v430
      %v4425 = vpop.permute.xlu0 %4424
      %4427 = vset.pattern.permute.xlu0 3
      %4428 = vperm.xlu0 %4427, %v431
      %v4429 = vpop.permute.xlu0 %4428
      %4431 = vset.pattern.permute.xlu0 3
      %4432 = vperm.xlu0 %4431, %v432
      %v4433 = vpop.permute.xlu0 %4432
      %4435 = vset.pattern.permute.xlu0 3
      %4436 = vperm.xlu0 %4435, %v433
      %v4437 = vpop.permute.xlu0 %4436
      %4439 = vset.pattern.permute.xlu0 3
      %4440 = vperm.xlu0 %4439, %v434
      %v4441 = vpop.permute.xlu0 %4440
      %4443 = vset.pattern.permute.xlu0 3
      %4444 = vperm.xlu0 %4443, %v435
      %v4445 = vpop.permute.xlu0 %4444
      %4447 = vset.pattern.permute.xlu0 3
      %4448 = vperm.xlu0 %4447, %v436
      %v4449 = vpop.permute.xlu0 %4448
      %4451 = vset.pattern.permute.xlu0 3
      %4452 = vperm.xlu0 %4451, %v437
      %v4453 = vpop.permute.xlu0 %4452
      %4455 = vset.pattern.permute.xlu0 3
      %4456 = vperm.xlu0 %4455, %v438
      %v4457 = vpop.permute.xlu0 %4456
      %4459 = vset.pattern.permute.xlu0 3
      %4460 = vperm.xlu0 %4459, %v439
      %v4461 = vpop.permute.xlu0 %4460
      %4463 = vset.pattern.permute.xlu0 3
      %4464 = vperm.xlu0 %4463, %v440
      %v4465 = vpop.permute.xlu0 %4464
      %4467 = vset.pattern.permute.xlu0 3
      %4468 = vperm.xlu0 %4467, %v441
      %v4469 = vpop.permute.xlu0 %4468
      %4471 = vset.pattern.permute.xlu0 3
      %4472 = vperm.xlu0 %4471, %v442
      %v4473 = vpop.permute.xlu0 %4472
      %4475 = vset.pattern.permute.xlu0 3
      %4476 = vperm.xlu0 %4475, %v443
      %v4477 = vpop.permute.xlu0 %4476
      %4479 = vset.pattern.permute.xlu0 3
      %4480 = vperm.xlu0 %4479, %v444
      %v4481 = vpop.permute.xlu0 %4480
      %4483 = vset.pattern.permute.xlu0 3
      %4484 = vperm.xlu0 %4483, %v445
      %v4485 = vpop.permute.xlu0 %4484
      %4487 = vset.pattern.permute.xlu0 3
      %4488 = vperm.xlu0 %4487, %v446
      %v4489 = vpop.permute.xlu0 %4488
      %4491 = vset.pattern.permute.xlu0 3
      %4492 = vperm.xlu0 %4491, %v447
      %v4493 = vpop.permute.xlu0 %4492
      %4495 = vset.pattern.permute.xlu0 3
      %4496 = vperm.xlu0 %4495, %v448
      %v4497 = vpop.permute.xlu0 %4496
      %4499 = vset.pattern.permute.xlu0 3
      %4500 = vperm.xlu0 %4499, %v449
      %v4501 = vpop.permute.xlu0 %4500
      %4503 = vset.pattern.permute.xlu0 3
      %4504 = vperm.xlu0 %4503, %v450
      %v4505 = vpop.permute.xlu0 %4504
      %4507 = vset.pattern.permute.xlu0 3
      %4508 = vperm.xlu0 %4507, %v451
      %v4509 = vpop.permute.xlu0 %4508
      %4511 = vset.pattern.permute.xlu0 3
      %4512 = vperm.xlu0 %4511, %v452
      %v4513 = vpop.permute.xlu0 %4512
      %4515 = vset.pattern.permute.xlu0 3
      %4516 = vperm.xlu0 %4515, %v453
      %v4517 = vpop.permute.xlu0 %4516
      %4519 = vset.pattern.permute.xlu0 3
      %4520 = vperm.xlu0 %4519, %v454
      %v4521 = vpop.permute.xlu0 %4520
      %4523 = vset.pattern.permute.xlu0 3
      %4524 = vperm.xlu0 %4523, %v455
      %v4525 = vpop.permute.xlu0 %4524
      %4527 = vset.pattern.permute.xlu0 3
      %4528 = vperm.xlu0 %4527, %v456
      %v4529 = vpop.permute.xlu0 %4528
      %v4531 = vsel %vm3522, %v3525, %v4029
      %v4532 = vsel %vm3522, %v3529, %v4033
      %v4533 = vsel %vm3522, %v3533, %v4037
      %v4534 = vsel %vm3522, %v3537, %v4041
      %v4535 = vsel %vm3522, %v3541, %v4045
      %v4536 = vsel %vm3522, %v3545, %v4049
      %v4537 = vsel %vm3522, %v3549, %v4053
      %v4538 = vsel %vm3522, %v3553, %v4057
      %v4539 = vsel %vm3522, %v3557, %v4061
      %v4540 = vsel %vm3522, %v3561, %v4065
      %v4541 = vsel %vm3522, %v3565, %v4069
      %v4542 = vsel %vm3522, %v3569, %v4073
      %v4543 = vsel %vm3522, %v3573, %v4077
      %v4544 = vsel %vm3522, %v3577, %v4081
      %v4545 = vsel %vm3522, %v3581, %v4085
      %v4546 = vsel %vm3522, %v3585, %v4089
      %v4547 = vsel %vm3522, %v3589, %v4093
      %v4548 = vsel %vm3522, %v3593, %v4097
      %v4549 = vsel %vm3522, %v3597, %v4101
      %v4550 = vsel %vm3522, %v3601, %v4105
      %v4551 = vsel %vm3522, %v3605, %v4109
      %v4552 = vsel %vm3522, %v3609, %v4113
      %v4553 = vsel %vm3522, %v3613, %v4117
      %v4554 = vsel %vm3522, %v3617, %v4121
      %v4555 = vsel %vm3522, %v3621, %v4125
      %v4556 = vsel %vm3522, %v3625, %v4129
      %v4557 = vsel %vm3522, %v3629, %v4133
      %v4558 = vsel %vm3522, %v3633, %v4137
      %v4559 = vsel %vm3522, %v3637, %v4141
      %v4560 = vsel %vm3522, %v3641, %v4145
      %v4561 = vsel %vm3522, %v3645, %v4149
      %v4562 = vsel %vm3522, %v3649, %v4153
      %v4563 = vsel %vm3522, %v3653, %v4157
      %v4564 = vsel %vm3522, %v3657, %v4161
      %v4565 = vsel %vm3522, %v3661, %v4165
      %v4566 = vsel %vm3522, %v3665, %v4169
      %v4567 = vsel %vm3522, %v3669, %v4173
      %v4568 = vsel %vm3522, %v3673, %v4177
      %v4569 = vsel %vm3522, %v3677, %v4181
      %v4570 = vsel %vm3522, %v3681, %v4185
      %v4571 = vsel %vm3522, %v3685, %v4189
      %v4572 = vsel %vm3522, %v3689, %v4193
      %v4573 = vsel %vm3522, %v3693, %v4197
      %v4574 = vsel %vm3522, %v3697, %v4201
      %v4575 = vsel %vm3522, %v3701, %v4205
      %v4576 = vsel %vm3522, %v3705, %v4209
      %v4577 = vsel %vm3522, %v3709, %v4213
      %v4578 = vsel %vm3522, %v3713, %v4217
      %v4579 = vsel %vm3522, %v3717, %v4221
      %v4580 = vsel %vm3522, %v3721, %v4225
      %v4581 = vsel %vm3522, %v3725, %v4229
      %v4582 = vsel %vm3522, %v3729, %v4233
      %v4583 = vsel %vm3522, %v3733, %v4237
      %v4584 = vsel %vm3522, %v3737, %v4241
      %v4585 = vsel %vm3522, %v3741, %v4245
      %v4586 = vsel %vm3522, %v3745, %v4249
      %v4587 = vsel %vm3522, %v3749, %v4253
      %v4588 = vsel %vm3522, %v3753, %v4257
      %v4589 = vsel %vm3522, %v3757, %v4261
      %v4590 = vsel %vm3522, %v3761, %v4265
      %v4591 = vsel %vm3522, %v3765, %v4269
      %v4592 = vsel %vm3522, %v3769, %v4273
      %v4593 = vsel %vm3522, %v3773, %v4277
      %v4594 = vsel %vm3522, %v3777, %v4281
      %v4595 = vsel %vm3522, %v3781, %v4285
      %v4596 = vsel %vm3522, %v3785, %v4289
      %v4597 = vsel %vm3522, %v3789, %v4293
      %v4598 = vsel %vm3522, %v3793, %v4297
      %v4599 = vsel %vm3522, %v3797, %v4301
      %v4600 = vsel %vm3522, %v3801, %v4305
      %v4601 = vsel %vm3522, %v3805, %v4309
      %v4602 = vsel %vm3522, %v3809, %v4313
      %v4603 = vsel %vm3522, %v3813, %v4317
      %v4604 = vsel %vm3522, %v3817, %v4321
      %v4605 = vsel %vm3522, %v3821, %v4325
      %v4606 = vsel %vm3522, %v3825, %v4329
      %v4607 = vsel %vm3522, %v3829, %v4333
      %v4608 = vsel %vm3522, %v3833, %v4337
      %v4609 = vsel %vm3522, %v3837, %v4341
      %v4610 = vsel %vm3522, %v3841, %v4345
      %v4611 = vsel %vm3522, %v3845, %v4349
      %v4612 = vsel %vm3522, %v3849, %v4353
      %v4613 = vsel %vm3522, %v3853, %v4357
      %v4614 = vsel %vm3522, %v3857, %v4361
      %v4615 = vsel %vm3522, %v3861, %v4365
      %v4616 = vsel %vm3522, %v3865, %v4369
      %v4617 = vsel %vm3522, %v3869, %v4373
      %v4618 = vsel %vm3522, %v3873, %v4377
      %v4619 = vsel %vm3522, %v3877, %v4381
      %v4620 = vsel %vm3522, %v3881, %v4385
      %v4621 = vsel %vm3522, %v3885, %v4389
      %v4622 = vsel %vm3522, %v3889, %v4393
      %v4623 = vsel %vm3522, %v3893, %v4397
      %v4624 = vsel %vm3522, %v3897, %v4401
      %v4625 = vsel %vm3522, %v3901, %v4405
      %v4626 = vsel %vm3522, %v3905, %v4409
      %v4627 = vsel %vm3522, %v3909, %v4413
      %v4628 = vsel %vm3522, %v3913, %v4417
      %v4629 = vsel %vm3522, %v3917, %v4421
      %v4630 = vsel %vm3522, %v3921, %v4425
      %v4631 = vsel %vm3522, %v3925, %v4429
      %v4632 = vsel %vm3522, %v3929, %v4433
      %v4633 = vsel %vm3522, %v3933, %v4437
      %v4634 = vsel %vm3522, %v3937, %v4441
      %v4635 = vsel %vm3522, %v3941, %v4445
      %v4636 = vsel %vm3522, %v3945, %v4449
      %v4637 = vsel %vm3522, %v3949, %v4453
      %v4638 = vsel %vm3522, %v3953, %v4457
      %v4639 = vsel %vm3522, %v3957, %v4461
      %v4640 = vsel %vm3522, %v3961, %v4465
      %v4641 = vsel %vm3522, %v3965, %v4469
      %v4642 = vsel %vm3522, %v3969, %v4473
      %v4643 = vsel %vm3522, %v3973, %v4477
      %v4644 = vsel %vm3522, %v3977, %v4481
      %v4645 = vsel %vm3522, %v3981, %v4485
      %v4646 = vsel %vm3522, %v3985, %v4489
      %v4647 = vsel %vm3522, %v3989, %v4493
      %v4648 = vsel %vm3522, %v3993, %v4497
      %v4649 = vsel %vm3522, %v3997, %v4501
      %v4650 = vsel %vm3522, %v4001, %v4505
      %v4651 = vsel %vm3522, %v4005, %v4509
      %v4652 = vsel %vm3522, %v4009, %v4513
      %v4653 = vsel %vm3522, %v4013, %v4517
      %v4654 = vsel %vm3522, %v4017, %v4521
      %v4655 = vsel %vm3522, %v4021, %v4525
      %v4656 = vsel %vm3522, %v4025, %v4529
      %v4657 = vmul.f32 %v3395, %v4531
      %v4658 = vmul.f32 %v3396, %v4532
      %v4659 = vmul.f32 %v3397, %v4533
      %v4660 = vmul.f32 %v3398, %v4534
      %v4661 = vmul.f32 %v3399, %v4535
      %v4662 = vmul.f32 %v3400, %v4536
      %v4663 = vmul.f32 %v3401, %v4537
      %v4664 = vmul.f32 %v3402, %v4538
      %v4665 = vmul.f32 %v3403, %v4539
      %v4666 = vmul.f32 %v3404, %v4540
      %v4667 = vmul.f32 %v3405, %v4541
      %v4668 = vmul.f32 %v3406, %v4542
      %v4669 = vmul.f32 %v3407, %v4543
      %v4670 = vmul.f32 %v3408, %v4544
      %v4671 = vmul.f32 %v3409, %v4545
      %v4672 = vmul.f32 %v3410, %v4546
      %v4673 = vmul.f32 %v3411, %v4547
      %v4674 = vmul.f32 %v3412, %v4548
      %v4675 = vmul.f32 %v3413, %v4549
      %v4676 = vmul.f32 %v3414, %v4550
      %v4677 = vmul.f32 %v3415, %v4551
      %v4678 = vmul.f32 %v3416, %v4552
      %v4679 = vmul.f32 %v3417, %v4553
      %v4680 = vmul.f32 %v3418, %v4554
      %v4681 = vmul.f32 %v3419, %v4555
      %v4682 = vmul.f32 %v3420, %v4556
      %v4683 = vmul.f32 %v3421, %v4557
      %v4684 = vmul.f32 %v3422, %v4558
      %v4685 = vmul.f32 %v3423, %v4559
      %v4686 = vmul.f32 %v3424, %v4560
      %v4687 = vmul.f32 %v3425, %v4561
      %v4688 = vmul.f32 %v3426, %v4562
      %v4689 = vmul.f32 %v3427, %v4563
      %v4690 = vmul.f32 %v3428, %v4564
      %v4691 = vmul.f32 %v3429, %v4565
      %v4692 = vmul.f32 %v3430, %v4566
      %v4693 = vmul.f32 %v3431, %v4567
      %v4694 = vmul.f32 %v3432, %v4568
      %v4695 = vmul.f32 %v3433, %v4569
      %v4696 = vmul.f32 %v3434, %v4570
      %v4697 = vmul.f32 %v3435, %v4571
      %v4698 = vmul.f32 %v3436, %v4572
      %v4699 = vmul.f32 %v3437, %v4573
      %v4700 = vmul.f32 %v3438, %v4574
      %v4701 = vmul.f32 %v3439, %v4575
      %v4702 = vmul.f32 %v3440, %v4576
      %v4703 = vmul.f32 %v3441, %v4577
      %v4704 = vmul.f32 %v3442, %v4578
      %v4705 = vmul.f32 %v3443, %v4579
      %v4706 = vmul.f32 %v3444, %v4580
      %v4707 = vmul.f32 %v3445, %v4581
      %v4708 = vmul.f32 %v3446, %v4582
      %v4709 = vmul.f32 %v3447, %v4583
      %v4710 = vmul.f32 %v3448, %v4584
      %v4711 = vmul.f32 %v3449, %v4585
      %v4712 = vmul.f32 %v3450, %v4586
      %v4713 = vmul.f32 %v3451, %v4587
      %v4714 = vmul.f32 %v3452, %v4588
      %v4715 = vmul.f32 %v3453, %v4589
      %v4716 = vmul.f32 %v3454, %v4590
      %v4717 = vmul.f32 %v3455, %v4591
      %v4718 = vmul.f32 %v3456, %v4592
      %v4719 = vmul.f32 %v3457, %v4593
      %v4720 = vmul.f32 %v3458, %v4594
      %v4721 = vmul.f32 %v3459, %v4595
      %v4722 = vmul.f32 %v3460, %v4596
      %v4723 = vmul.f32 %v3461, %v4597
      %v4724 = vmul.f32 %v3462, %v4598
      %v4725 = vmul.f32 %v3463, %v4599
      %v4726 = vmul.f32 %v3464, %v4600
      %v4727 = vmul.f32 %v3465, %v4601
      %v4728 = vmul.f32 %v3466, %v4602
      %v4729 = vmul.f32 %v3467, %v4603
      %v4730 = vmul.f32 %v3468, %v4604
      %v4731 = vmul.f32 %v3469, %v4605
      %v4732 = vmul.f32 %v3470, %v4606
      %v4733 = vmul.f32 %v3471, %v4607
      %v4734 = vmul.f32 %v3472, %v4608
      %v4735 = vmul.f32 %v3473, %v4609
      %v4736 = vmul.f32 %v3474, %v4610
      %v4737 = vmul.f32 %v3475, %v4611
      %v4738 = vmul.f32 %v3476, %v4612
      %v4739 = vmul.f32 %v3477, %v4613
      %v4740 = vmul.f32 %v3478, %v4614
      %v4741 = vmul.f32 %v3479, %v4615
      %v4742 = vmul.f32 %v3480, %v4616
      %v4743 = vmul.f32 %v3481, %v4617
      %v4744 = vmul.f32 %v3482, %v4618
      %v4745 = vmul.f32 %v3483, %v4619
      %v4746 = vmul.f32 %v3484, %v4620
      %v4747 = vmul.f32 %v3485, %v4621
      %v4748 = vmul.f32 %v3486, %v4622
      %v4749 = vmul.f32 %v3487, %v4623
      %v4750 = vmul.f32 %v3488, %v4624
      %v4751 = vmul.f32 %v3489, %v4625
      %v4752 = vmul.f32 %v3490, %v4626
      %v4753 = vmul.f32 %v3491, %v4627
      %v4754 = vmul.f32 %v3492, %v4628
      %v4755 = vmul.f32 %v3493, %v4629
      %v4756 = vmul.f32 %v3494, %v4630
      %v4757 = vmul.f32 %v3495, %v4631
      %v4758 = vmul.f32 %v3496, %v4632
      %v4759 = vmul.f32 %v3497, %v4633
      %v4760 = vmul.f32 %v3498, %v4634
      %v4761 = vmul.f32 %v3499, %v4635
      %v4762 = vmul.f32 %v3500, %v4636
      %v4763 = vmul.f32 %v3501, %v4637
      %v4764 = vmul.f32 %v3502, %v4638
      %v4765 = vmul.f32 %v3503, %v4639
      %v4766 = vmul.f32 %v3504, %v4640
      %v4767 = vmul.f32 %v3505, %v4641
      %v4768 = vmul.f32 %v3506, %v4642
      %v4769 = vmul.f32 %v3507, %v4643
      %v4770 = vmul.f32 %v3508, %v4644
      %v4771 = vmul.f32 %v3509, %v4645
      %v4772 = vmul.f32 %v3510, %v4646
      %v4773 = vmul.f32 %v3511, %v4647
      %v4774 = vmul.f32 %v3512, %v4648
      %v4775 = vmul.f32 %v3513, %v4649
      %v4776 = vmul.f32 %v3514, %v4650
      %v4777 = vmul.f32 %v3515, %v4651
      %v4778 = vmul.f32 %v3516, %v4652
      %v4779 = vmul.f32 %v3517, %v4653
      %v4780 = vmul.f32 %v3518, %v4654
      %v4781 = vmul.f32 %v3519, %v4655
      %v4782 = vmul.f32 %v3520, %v4656
      %v4783 = vsel %vm492, 1, 0
      %vm4784 = vcmp.eq.s32.totalorder %v4783, 1
      %v4785 = vsel %vm4784, %v4657, %v998
      %v4786 = vsel %vm4784, %v4658, %v1000
      %v4787 = vsel %vm4784, %v4659, %v1002
      %v4788 = vsel %vm4784, %v4660, %v1004
      %v4789 = vsel %vm4784, %v4661, %v1006
      %v4790 = vsel %vm4784, %v4662, %v1008
      %v4791 = vsel %vm4784, %v4663, %v1010
      %v4792 = vsel %vm4784, %v4664, %v1012
      %v4793 = vsel %vm4784, %v4665, %v1014
      %v4794 = vsel %vm4784, %v4666, %v1016
      %v4795 = vsel %vm4784, %v4667, %v1018
      %v4796 = vsel %vm4784, %v4668, %v1020
      %v4797 = vsel %vm4784, %v4669, %v1022
      %v4798 = vsel %vm4784, %v4670, %v1024
      %v4799 = vsel %vm4784, %v4671, %v1026
      %v4800 = vsel %vm4784, %v4672, %v1028
      %v4801 = vsel %vm4784, %v4673, %v1030
      %v4802 = vsel %vm4784, %v4674, %v1032
      %v4803 = vsel %vm4784, %v4675, %v1034
      %v4804 = vsel %vm4784, %v4676, %v1036
      %v4805 = vsel %vm4784, %v4677, %v1038
      %v4806 = vsel %vm4784, %v4678, %v1040
      %v4807 = vsel %vm4784, %v4679, %v1042
      %v4808 = vsel %vm4784, %v4680, %v1044
      %v4809 = vsel %vm4784, %v4681, %v1046
      %v4810 = vsel %vm4784, %v4682, %v1048
      %v4811 = vsel %vm4784, %v4683, %v1050
      %v4812 = vsel %vm4784, %v4684, %v1052
      %v4813 = vsel %vm4784, %v4685, %v1054
      %v4814 = vsel %vm4784, %v4686, %v1056
      %v4815 = vsel %vm4784, %v4687, %v1058
      %v4816 = vsel %vm4784, %v4688, %v1060
      %v4817 = vsel %vm4784, %v4689, %v1062
      %v4818 = vsel %vm4784, %v4690, %v1064
      %v4819 = vsel %vm4784, %v4691, %v1066
      %v4820 = vsel %vm4784, %v4692, %v1068
      %v4821 = vsel %vm4784, %v4693, %v1070
      %v4822 = vsel %vm4784, %v4694, %v1072
      %v4823 = vsel %vm4784, %v4695, %v1074
      %v4824 = vsel %vm4784, %v4696, %v1076
      %v4825 = vsel %vm4784, %v4697, %v1078
      %v4826 = vsel %vm4784, %v4698, %v1080
      %v4827 = vsel %vm4784, %v4699, %v1082
      %v4828 = vsel %vm4784, %v4700, %v1084
      %v4829 = vsel %vm4784, %v4701, %v1086
      %v4830 = vsel %vm4784, %v4702, %v1088
      %v4831 = vsel %vm4784, %v4703, %v1090
      %v4832 = vsel %vm4784, %v4704, %v1092
      %v4833 = vsel %vm4784, %v4705, %v1094
      %v4834 = vsel %vm4784, %v4706, %v1096
      %v4835 = vsel %vm4784, %v4707, %v1098
      %v4836 = vsel %vm4784, %v4708, %v1100
      %v4837 = vsel %vm4784, %v4709, %v1102
      %v4838 = vsel %vm4784, %v4710, %v1104
      %v4839 = vsel %vm4784, %v4711, %v1106
      %v4840 = vsel %vm4784, %v4712, %v1108
      %v4841 = vsel %vm4784, %v4713, %v1110
      %v4842 = vsel %vm4784, %v4714, %v1112
      %v4843 = vsel %vm4784, %v4715, %v1114
      %v4844 = vsel %vm4784, %v4716, %v1116
      %v4845 = vsel %vm4784, %v4717, %v1118
      %v4846 = vsel %vm4784, %v4718, %v1120
      %v4847 = vsel %vm4784, %v4719, %v1122
      %v4848 = vsel %vm4784, %v4720, %v1124
      %v4849 = vsel %vm4784, %v4721, %v1126
      %v4850 = vsel %vm4784, %v4722, %v1128
      %v4851 = vsel %vm4784, %v4723, %v1130
      %v4852 = vsel %vm4784, %v4724, %v1132
      %v4853 = vsel %vm4784, %v4725, %v1134
      %v4854 = vsel %vm4784, %v4726, %v1136
      %v4855 = vsel %vm4784, %v4727, %v1138
      %v4856 = vsel %vm4784, %v4728, %v1140
      %v4857 = vsel %vm4784, %v4729, %v1142
      %v4858 = vsel %vm4784, %v4730, %v1144
      %v4859 = vsel %vm4784, %v4731, %v1146
      %v4860 = vsel %vm4784, %v4732, %v1148
      %v4861 = vsel %vm4784, %v4733, %v1150
      %v4862 = vsel %vm4784, %v4734, %v1152
      %v4863 = vsel %vm4784, %v4735, %v1154
      %v4864 = vsel %vm4784, %v4736, %v1156
      %v4865 = vsel %vm4784, %v4737, %v1158
      %v4866 = vsel %vm4784, %v4738, %v1160
      %v4867 = vsel %vm4784, %v4739, %v1162
      %v4868 = vsel %vm4784, %v4740, %v1164
      %v4869 = vsel %vm4784, %v4741, %v1166
      %v4870 = vsel %vm4784, %v4742, %v1168
      %v4871 = vsel %vm4784, %v4743, %v1170
      %v4872 = vsel %vm4784, %v4744, %v1172
      %v4873 = vsel %vm4784, %v4745, %v1174
      %v4874 = vsel %vm4784, %v4746, %v1176
      %v4875 = vsel %vm4784, %v4747, %v1178
      %v4876 = vsel %vm4784, %v4748, %v1180
      %v4877 = vsel %vm4784, %v4749, %v1182
      %v4878 = vsel %vm4784, %v4750, %v1184
      %v4879 = vsel %vm4784, %v4751, %v1186
      %v4880 = vsel %vm4784, %v4752, %v1188
      %v4881 = vsel %vm4784, %v4753, %v1190
      %v4882 = vsel %vm4784, %v4754, %v1192
      %v4883 = vsel %vm4784, %v4755, %v1194
      %v4884 = vsel %vm4784, %v4756, %v1196
      %v4885 = vsel %vm4784, %v4757, %v1198
      %v4886 = vsel %vm4784, %v4758, %v1200
      %v4887 = vsel %vm4784, %v4759, %v1202
      %v4888 = vsel %vm4784, %v4760, %v1204
      %v4889 = vsel %vm4784, %v4761, %v1206
      %v4890 = vsel %vm4784, %v4762, %v1208
      %v4891 = vsel %vm4784, %v4763, %v1210
      %v4892 = vsel %vm4784, %v4764, %v1212
      %v4893 = vsel %vm4784, %v4765, %v1214
      %v4894 = vsel %vm4784, %v4766, %v1216
      %v4895 = vsel %vm4784, %v4767, %v1218
      %v4896 = vsel %vm4784, %v4768, %v1220
      %v4897 = vsel %vm4784, %v4769, %v1222
      %v4898 = vsel %vm4784, %v4770, %v1224
      %v4899 = vsel %vm4784, %v4771, %v1226
      %v4900 = vsel %vm4784, %v4772, %v1228
      %v4901 = vsel %vm4784, %v4773, %v1230
      %v4902 = vsel %vm4784, %v4774, %v1232
      %v4903 = vsel %vm4784, %v4775, %v1234
      %v4904 = vsel %vm4784, %v4776, %v1236
      %v4905 = vsel %vm4784, %v4777, %v1238
      %v4906 = vsel %vm4784, %v4778, %v1240
      %v4907 = vsel %vm4784, %v4779, %v1242
      %v4908 = vsel %vm4784, %v4780, %v1244
      %v4909 = vsel %vm4784, %v4781, %v1246
      %v4910 = vsel %vm4784, %v4782, %v1248
      %v4911 = vsel %vm489, 1, 0
      %vm4912 = vcmp.eq.s32.totalorder %v4911, 1
      %v4913 = vsel %vm4912, %v3269, %v4785
      %v4914 = vsel %vm4912, %v3270, %v4786
      %v4915 = vsel %vm4912, %v3271, %v4787
      %v4916 = vsel %vm4912, %v3272, %v4788
      %v4917 = vsel %vm4912, %v3273, %v4789
      %v4918 = vsel %vm4912, %v3274, %v4790
      %v4919 = vsel %vm4912, %v3275, %v4791
      %v4920 = vsel %vm4912, %v3276, %v4792
      %v4921 = vsel %vm4912, %v3277, %v4793
      %v4922 = vsel %vm4912, %v3278, %v4794
      %v4923 = vsel %vm4912, %v3279, %v4795
      %v4924 = vsel %vm4912, %v3280, %v4796
      %v4925 = vsel %vm4912, %v3281, %v4797
      %v4926 = vsel %vm4912, %v3282, %v4798
      %v4927 = vsel %vm4912, %v3283, %v4799
      %v4928 = vsel %vm4912, %v3284, %v4800
      %v4929 = vsel %vm4912, %v3285, %v4801
      %v4930 = vsel %vm4912, %v3286, %v4802
      %v4931 = vsel %vm4912, %v3287, %v4803
      %v4932 = vsel %vm4912, %v3288, %v4804
      %v4933 = vsel %vm4912, %v3289, %v4805
      %v4934 = vsel %vm4912, %v3290, %v4806
      %v4935 = vsel %vm4912, %v3291, %v4807
      %v4936 = vsel %vm4912, %v3292, %v4808
      %v4937 = vsel %vm4912, %v3293, %v4809
      %v4938 = vsel %vm4912, %v3294, %v4810
      %v4939 = vsel %vm4912, %v3295, %v4811
      %v4940 = vsel %vm4912, %v3296, %v4812
      %v4941 = vsel %vm4912, %v3297, %v4813
      %v4942 = vsel %vm4912, %v3298, %v4814
      %v4943 = vsel %vm4912, %v3299, %v4815
      %v4944 = vsel %vm4912, %v3300, %v4816
      %v4945 = vsel %vm4912, %v3301, %v4817
      %v4946 = vsel %vm4912, %v3302, %v4818
      %v4947 = vsel %vm4912, %v3303, %v4819
      %v4948 = vsel %vm4912, %v3304, %v4820
      %v4949 = vsel %vm4912, %v3305, %v4821
      %v4950 = vsel %vm4912, %v3306, %v4822
      %v4951 = vsel %vm4912, %v3307, %v4823
      %v4952 = vsel %vm4912, %v3308, %v4824
      %v4953 = vsel %vm4912, %v3309, %v4825
      %v4954 = vsel %vm4912, %v3310, %v4826
      %v4955 = vsel %vm4912, %v3311, %v4827
      %v4956 = vsel %vm4912, %v3312, %v4828
      %v4957 = vsel %vm4912, %v3313, %v4829
      %v4958 = vsel %vm4912, %v3314, %v4830
      %v4959 = vsel %vm4912, %v3315, %v4831
      %v4960 = vsel %vm4912, %v3316, %v4832
      %v4961 = vsel %vm4912, %v3317, %v4833
      %v4962 = vsel %vm4912, %v3318, %v4834
      %v4963 = vsel %vm4912, %v3319, %v4835
      %v4964 = vsel %vm4912, %v3320, %v4836
      %v4965 = vsel %vm4912, %v3321, %v4837
      %v4966 = vsel %vm4912, %v3322, %v4838
      %v4967 = vsel %vm4912, %v3323, %v4839
      %v4968 = vsel %vm4912, %v3324, %v4840
      %v4969 = vsel %vm4912, %v3325, %v4841
      %v4970 = vsel %vm4912, %v3326, %v4842
      %v4971 = vsel %vm4912, %v3327, %v4843
      %v4972 = vsel %vm4912, %v3328, %v4844
      %v4973 = vsel %vm4912, %v3329, %v4845
      %v4974 = vsel %vm4912, %v3330, %v4846
      %v4975 = vsel %vm4912, %v3331, %v4847
      %v4976 = vsel %vm4912, %v3332, %v4848
      %v4977 = vsel %vm4912, %v3333, %v4849
      %v4978 = vsel %vm4912, %v3334, %v4850
      %v4979 = vsel %vm4912, %v3335, %v4851
      %v4980 = vsel %vm4912, %v3336, %v4852
      %v4981 = vsel %vm4912, %v3337, %v4853
      %v4982 = vsel %vm4912, %v3338, %v4854
      %v4983 = vsel %vm4912, %v3339, %v4855
      %v4984 = vsel %vm4912, %v3340, %v4856
      %v4985 = vsel %vm4912, %v3341, %v4857
      %v4986 = vsel %vm4912, %v3342, %v4858
      %v4987 = vsel %vm4912, %v3343, %v4859
      %v4988 = vsel %vm4912, %v3344, %v4860
      %v4989 = vsel %vm4912, %v3345, %v4861
      %v4990 = vsel %vm4912, %v3346, %v4862
      %v4991 = vsel %vm4912, %v3347, %v4863
      %v4992 = vsel %vm4912, %v3348, %v4864
      %v4993 = vsel %vm4912, %v3349, %v4865
      %v4994 = vsel %vm4912, %v3350, %v4866
      %v4995 = vsel %vm4912, %v3351, %v4867
      %v4996 = vsel %vm4912, %v3352, %v4868
      %v4997 = vsel %vm4912, %v3353, %v4869
      %v4998 = vsel %vm4912, %v3354, %v4870
      %v4999 = vsel %vm4912, %v3355, %v4871
      %v5000 = vsel %vm4912, %v3356, %v4872
      %v5001 = vsel %vm4912, %v3357, %v4873
      %v5002 = vsel %vm4912, %v3358, %v4874
      %v5003 = vsel %vm4912, %v3359, %v4875
      %v5004 = vsel %vm4912, %v3360, %v4876
      %v5005 = vsel %vm4912, %v3361, %v4877
      %v5006 = vsel %vm4912, %v3362, %v4878
      %v5007 = vsel %vm4912, %v3363, %v4879
      %v5008 = vsel %vm4912, %v3364, %v4880
      %v5009 = vsel %vm4912, %v3365, %v4881
      %v5010 = vsel %vm4912, %v3366, %v4882
      %v5011 = vsel %vm4912, %v3367, %v4883
      %v5012 = vsel %vm4912, %v3368, %v4884
      %v5013 = vsel %vm4912, %v3369, %v4885
      %v5014 = vsel %vm4912, %v3370, %v4886
      %v5015 = vsel %vm4912, %v3371, %v4887
      %v5016 = vsel %vm4912, %v3372, %v4888
      %v5017 = vsel %vm4912, %v3373, %v4889
      %v5018 = vsel %vm4912, %v3374, %v4890
      %v5019 = vsel %vm4912, %v3375, %v4891
      %v5020 = vsel %vm4912, %v3376, %v4892
      %v5021 = vsel %vm4912, %v3377, %v4893
      %v5022 = vsel %vm4912, %v3378, %v4894
      %v5023 = vsel %vm4912, %v3379, %v4895
      %v5024 = vsel %vm4912, %v3380, %v4896
      %v5025 = vsel %vm4912, %v3381, %v4897
      %v5026 = vsel %vm4912, %v3382, %v4898
      %v5027 = vsel %vm4912, %v3383, %v4899
      %v5028 = vsel %vm4912, %v3384, %v4900
      %v5029 = vsel %vm4912, %v3385, %v4901
      %v5030 = vsel %vm4912, %v3386, %v4902
      %v5031 = vsel %vm4912, %v3387, %v4903
      %v5032 = vsel %vm4912, %v3388, %v4904
      %v5033 = vsel %vm4912, %v3389, %v4905
      %v5034 = vsel %vm4912, %v3390, %v4906
      %v5035 = vsel %vm4912, %v3391, %v4907
      %v5036 = vsel %vm4912, %v3392, %v4908
      %v5037 = vsel %vm4912, %v3393, %v4909
      %v5038 = vsel %vm4912, %v3394, %v4910
      %vm5039 = vcmask 465920
      %5040 = vst.msk [vmem:[%s203] sm:$0xff] %vm5039, %v4913
      %5041 = vst.msk [vmem:[%s203 + $0x8] sm:$0xff] %vm5039, %v4914
      %5042 = vst.msk [vmem:[%s203 + $0x10] sm:$0xff] %vm5039, %v4915
      %5043 = vst.msk [vmem:[%s203 + $0x18] sm:$0xff] %vm5039, %v4916
      %5044 = vst.msk [vmem:[%s203 + $0x20] sm:$0xff] %vm5039, %v4917
      %5045 = vst.msk [vmem:[%s203 + $0x28] sm:$0xff] %vm5039, %v4918
      %5046 = vst.msk [vmem:[%s203 + $0x30] sm:$0xff] %vm5039, %v4919
      %5047 = vst.msk [vmem:[%s203 + $0x38] sm:$0xff] %vm5039, %v4920
      %5048 = vst.msk [vmem:[%s203 + $0x40] sm:$0xff] %vm5039, %v4921
      %5049 = vst.msk [vmem:[%s203 + $0x48] sm:$0xff] %vm5039, %v4922
      %5050 = vst.msk [vmem:[%s203 + $0x50] sm:$0xff] %vm5039, %v4923
      %5051 = vst.msk [vmem:[%s203 + $0x58] sm:$0xff] %vm5039, %v4924
      %5052 = vst.msk [vmem:[%s203 + $0x60] sm:$0xff] %vm5039, %v4925
      %5053 = vst.msk [vmem:[%s203 + $0x68] sm:$0xff] %vm5039, %v4926
      %5054 = vst.msk [vmem:[%s203 + $0x70] sm:$0xff] %vm5039, %v4927
      %5055 = vst.msk [vmem:[%s203 + $0x78] sm:$0xff] %vm5039, %v4928
      %5056 = vst.msk [vmem:[%s203 + $0x80] sm:$0xff] %vm5039, %v4929
      %5057 = vst.msk [vmem:[%s203 + $0x88] sm:$0xff] %vm5039, %v4930
      %5058 = vst.msk [vmem:[%s203 + $0x90] sm:$0xff] %vm5039, %v4931
      %5059 = vst.msk [vmem:[%s203 + $0x98] sm:$0xff] %vm5039, %v4932
      %5060 = vst.msk [vmem:[%s203 + $0xa0] sm:$0xff] %vm5039, %v4933
      %5061 = vst.msk [vmem:[%s203 + $0xa8] sm:$0xff] %vm5039, %v4934
      %5062 = vst.msk [vmem:[%s203 + $0xb0] sm:$0xff] %vm5039, %v4935
      %5063 = vst.msk [vmem:[%s203 + $0xb8] sm:$0xff] %vm5039, %v4936
      %5064 = vst.msk [vmem:[%s203 + $0xc0] sm:$0xff] %vm5039, %v4937
      %5065 = vst.msk [vmem:[%s203 + $0xc8] sm:$0xff] %vm5039, %v4938
      %5066 = vst.msk [vmem:[%s203 + $0xd0] sm:$0xff] %vm5039, %v4939
      %5067 = vst.msk [vmem:[%s203 + $0xd8] sm:$0xff] %vm5039, %v4940
      %5068 = vst.msk [vmem:[%s203 + $0xe0] sm:$0xff] %vm5039, %v4941
      %5069 = vst.msk [vmem:[%s203 + $0xe8] sm:$0xff] %vm5039, %v4942
      %5070 = vst.msk [vmem:[%s203 + $0xf0] sm:$0xff] %vm5039, %v4943
      %5071 = vst.msk [vmem:[%s203 + $0xf8] sm:$0xff] %vm5039, %v4944
      %5072 = vst.msk [vmem:[%s203 + $0x100] sm:$0xff] %vm5039, %v4945
      %5073 = vst.msk [vmem:[%s203 + $0x108] sm:$0xff] %vm5039, %v4946
      %5074 = vst.msk [vmem:[%s203 + $0x110] sm:$0xff] %vm5039, %v4947
      %5075 = vst.msk [vmem:[%s203 + $0x118] sm:$0xff] %vm5039, %v4948
      %5076 = vst.msk [vmem:[%s203 + $0x120] sm:$0xff] %vm5039, %v4949
      %5077 = vst.msk [vmem:[%s203 + $0x128] sm:$0xff] %vm5039, %v4950
      %5078 = vst.msk [vmem:[%s203 + $0x130] sm:$0xff] %vm5039, %v4951
      %5079 = vst.msk [vmem:[%s203 + $0x138] sm:$0xff] %vm5039, %v4952
      %5080 = vst.msk [vmem:[%s203 + $0x140] sm:$0xff] %vm5039, %v4953
      %5081 = vst.msk [vmem:[%s203 + $0x148] sm:$0xff] %vm5039, %v4954
      %5082 = vst.msk [vmem:[%s203 + $0x150] sm:$0xff] %vm5039, %v4955
      %5083 = vst.msk [vmem:[%s203 + $0x158] sm:$0xff] %vm5039, %v4956
      %5084 = vst.msk [vmem:[%s203 + $0x160] sm:$0xff] %vm5039, %v4957
      %5085 = vst.msk [vmem:[%s203 + $0x168] sm:$0xff] %vm5039, %v4958
      %5086 = vst.msk [vmem:[%s203 + $0x170] sm:$0xff] %vm5039, %v4959
      %5087 = vst.msk [vmem:[%s203 + $0x178] sm:$0xff] %vm5039, %v4960
      %5088 = vst.msk [vmem:[%s203 + $0x180] sm:$0xff] %vm5039, %v4961
      %5089 = vst.msk [vmem:[%s203 + $0x188] sm:$0xff] %vm5039, %v4962
      %5090 = vst.msk [vmem:[%s203 + $0x190] sm:$0xff] %vm5039, %v4963
      %5091 = vst.msk [vmem:[%s203 + $0x198] sm:$0xff] %vm5039, %v4964
      %5092 = vst.msk [vmem:[%s203 + $0x1a0] sm:$0xff] %vm5039, %v4965
      %5093 = vst.msk [vmem:[%s203 + $0x1a8] sm:$0xff] %vm5039, %v4966
      %5094 = vst.msk [vmem:[%s203 + $0x1b0] sm:$0xff] %vm5039, %v4967
      %5095 = vst.msk [vmem:[%s203 + $0x1b8] sm:$0xff] %vm5039, %v4968
      %5096 = vst.msk [vmem:[%s203 + $0x1c0] sm:$0xff] %vm5039, %v4969
      %5097 = vst.msk [vmem:[%s203 + $0x1c8] sm:$0xff] %vm5039, %v4970
      %5098 = vst.msk [vmem:[%s203 + $0x1d0] sm:$0xff] %vm5039, %v4971
      %5099 = vst.msk [vmem:[%s203 + $0x1d8] sm:$0xff] %vm5039, %v4972
      %5100 = vst.msk [vmem:[%s203 + $0x1e0] sm:$0xff] %vm5039, %v4973
      %5101 = vst.msk [vmem:[%s203 + $0x1e8] sm:$0xff] %vm5039, %v4974
      %5102 = vst.msk [vmem:[%s203 + $0x1f0] sm:$0xff] %vm5039, %v4975
      %5103 = vst.msk [vmem:[%s203 + $0x1f8] sm:$0xff] %vm5039, %v4976
      %5104 = vst.msk [vmem:[%s203 + $0x200] sm:$0xff] %vm5039, %v4977
      %5105 = vst.msk [vmem:[%s203 + $0x208] sm:$0xff] %vm5039, %v4978
      %5106 = vst.msk [vmem:[%s203 + $0x210] sm:$0xff] %vm5039, %v4979
      %5107 = vst.msk [vmem:[%s203 + $0x218] sm:$0xff] %vm5039, %v4980
      %5108 = vst.msk [vmem:[%s203 + $0x220] sm:$0xff] %vm5039, %v4981
      %5109 = vst.msk [vmem:[%s203 + $0x228] sm:$0xff] %vm5039, %v4982
      %5110 = vst.msk [vmem:[%s203 + $0x230] sm:$0xff] %vm5039, %v4983
      %5111 = vst.msk [vmem:[%s203 + $0x238] sm:$0xff] %vm5039, %v4984
      %5112 = vst.msk [vmem:[%s203 + $0x240] sm:$0xff] %vm5039, %v4985
      %5113 = vst.msk [vmem:[%s203 + $0x248] sm:$0xff] %vm5039, %v4986
      %5114 = vst.msk [vmem:[%s203 + $0x250] sm:$0xff] %vm5039, %v4987
      %5115 = vst.msk [vmem:[%s203 + $0x258] sm:$0xff] %vm5039, %v4988
      %5116 = vst.msk [vmem:[%s203 + $0x260] sm:$0xff] %vm5039, %v4989
      %5117 = vst.msk [vmem:[%s203 + $0x268] sm:$0xff] %vm5039, %v4990
      %5118 = vst.msk [vmem:[%s203 + $0x270] sm:$0xff] %vm5039, %v4991
      %5119 = vst.msk [vmem:[%s203 + $0x278] sm:$0xff] %vm5039, %v4992
      %5120 = vst.msk [vmem:[%s203 + $0x280] sm:$0xff] %vm5039, %v4993
      %5121 = vst.msk [vmem:[%s203 + $0x288] sm:$0xff] %vm5039, %v4994
      %5122 = vst.msk [vmem:[%s203 + $0x290] sm:$0xff] %vm5039, %v4995
      %5123 = vst.msk [vmem:[%s203 + $0x298] sm:$0xff] %vm5039, %v4996
      %5124 = vst.msk [vmem:[%s203 + $0x2a0] sm:$0xff] %vm5039, %v4997
      %5125 = vst.msk [vmem:[%s203 + $0x2a8] sm:$0xff] %vm5039, %v4998
      %5126 = vst.msk [vmem:[%s203 + $0x2b0] sm:$0xff] %vm5039, %v4999
      %5127 = vst.msk [vmem:[%s203 + $0x2b8] sm:$0xff] %vm5039, %v5000
      %5128 = vst.msk [vmem:[%s203 + $0x2c0] sm:$0xff] %vm5039, %v5001
      %5129 = vst.msk [vmem:[%s203 + $0x2c8] sm:$0xff] %vm5039, %v5002
      %5130 = vst.msk [vmem:[%s203 + $0x2d0] sm:$0xff] %vm5039, %v5003
      %5131 = vst.msk [vmem:[%s203 + $0x2d8] sm:$0xff] %vm5039, %v5004
      %5132 = vst.msk [vmem:[%s203 + $0x2e0] sm:$0xff] %vm5039, %v5005
      %5133 = vst.msk [vmem:[%s203 + $0x2e8] sm:$0xff] %vm5039, %v5006
      %5134 = vst.msk [vmem:[%s203 + $0x2f0] sm:$0xff] %vm5039, %v5007
      %5135 = vst.msk [vmem:[%s203 + $0x2f8] sm:$0xff] %vm5039, %v5008
      %5136 = vst.msk [vmem:[%s203 + $0x300] sm:$0xff] %vm5039, %v5009
      %5137 = vst.msk [vmem:[%s203 + $0x308] sm:$0xff] %vm5039, %v5010
      %5138 = vst.msk [vmem:[%s203 + $0x310] sm:$0xff] %vm5039, %v5011
      %5139 = vst.msk [vmem:[%s203 + $0x318] sm:$0xff] %vm5039, %v5012
      %5140 = vst.msk [vmem:[%s203 + $0x320] sm:$0xff] %vm5039, %v5013
      %5141 = vst.msk [vmem:[%s203 + $0x328] sm:$0xff] %vm5039, %v5014
      %5142 = vst.msk [vmem:[%s203 + $0x330] sm:$0xff] %vm5039, %v5015
      %5143 = vst.msk [vmem:[%s203 + $0x338] sm:$0xff] %vm5039, %v5016
      %5144 = vst.msk [vmem:[%s203 + $0x340] sm:$0xff] %vm5039, %v5017
      %5145 = vst.msk [vmem:[%s203 + $0x348] sm:$0xff] %vm5039, %v5018
      %5146 = vst.msk [vmem:[%s203 + $0x350] sm:$0xff] %vm5039, %v5019
      %5147 = vst.msk [vmem:[%s203 + $0x358] sm:$0xff] %vm5039, %v5020
      %5148 = vst.msk [vmem:[%s203 + $0x360] sm:$0xff] %vm5039, %v5021
      %5149 = vst.msk [vmem:[%s203 + $0x368] sm:$0xff] %vm5039, %v5022
      %5150 = vst.msk [vmem:[%s203 + $0x370] sm:$0xff] %vm5039, %v5023
      %5151 = vst.msk [vmem:[%s203 + $0x378] sm:$0xff] %vm5039, %v5024
      %5152 = vst.msk [vmem:[%s203 + $0x380] sm:$0xff] %vm5039, %v5025
      %5153 = vst.msk [vmem:[%s203 + $0x388] sm:$0xff] %vm5039, %v5026
      %5154 = vst.msk [vmem:[%s203 + $0x390] sm:$0xff] %vm5039, %v5027
      %5155 = vst.msk [vmem:[%s203 + $0x398] sm:$0xff] %vm5039, %v5028
      %5156 = vst.msk [vmem:[%s203 + $0x3a0] sm:$0xff] %vm5039, %v5029
      %5157 = vst.msk [vmem:[%s203 + $0x3a8] sm:$0xff] %vm5039, %v5030
      %5158 = vst.msk [vmem:[%s203 + $0x3b0] sm:$0xff] %vm5039, %v5031
      %5159 = vst.msk [vmem:[%s203 + $0x3b8] sm:$0xff] %vm5039, %v5032
      %5160 = vst.msk [vmem:[%s203 + $0x3c0] sm:$0xff] %vm5039, %v5033
      %5161 = vst.msk [vmem:[%s203 + $0x3c8] sm:$0xff] %vm5039, %v5034
      %5162 = vst.msk [vmem:[%s203 + $0x3d0] sm:$0xff] %vm5039, %v5035
      %5163 = vst.msk [vmem:[%s203 + $0x3d8] sm:$0xff] %vm5039, %v5036
      %5164 = vst.msk [vmem:[%s203 + $0x3e0] sm:$0xff] %vm5039, %v5037
      %5165 = vst.msk [vmem:[%s203 + $0x3e8] sm:$0xff] %vm5039, %v5038
      %s5166 = smul.u32 126, %s18
      %p5167 = scmp.lt.s32.totalorder %s17, 1
      %s5168 = scalar_select %p5167, %s17, 1
      %p5169 = scmp.lt.s32.totalorder %s5166, 125
      %s5170 = scalar_select %p5169, %s5166, 125
      %s5171 = smul.addr %s5168, 126
      %s5172 = sadd.s32 %s5170, %s5171
      %s5173 = smul.addr %s5172, 8
      %s5174 = scalar_lea.vmem %s2, %s5173
      // Predicated region
      $region29: #{_lambda_.1} parent=27 // pred_check
        %p5175 = pneg %p99
      $region30: #{_lambda_.1} parent=27 // pred_check_branch
        %5177 = sbr.rel (%p5175) target = $region32
      $region31: #{_lambda_.1} parent=27 // pred_region
        %s5178 = smul.u32 126, %s18
      $region32: #{_lambda_.1} parent=27 // pred_fallthru
        _
    $region28: #{_lambda_.1} parent=5 // pred_fallthru
      _
    %p5179 = scmp.le.s32.totalorder 2, %s8
    // Predicated region
    $region33: #{_lambda_.1} parent=5 // pred_check
      %p5180 = pneg %p5179
    $region34: #{_lambda_.1} parent=5 // pred_check_branch
      %5182 = sbr.rel (%p5180) target = $region36
    $region35: #{_lambda_.1} parent=5 // pred_region
      %s5183 = ssub.s32 %s8, 2
      // Predicated region
      $region37: #{_lambda_.1} parent=35 // pred_check
        %p5184 = pneg %p105
      $region38: #{_lambda_.1} parent=35 // pred_check_branch
        %5186 = sbr.rel (%p5184) target = $region40
      $region39: #{_lambda_.1} parent=35 // pred_region
        %s5187 = smul.u32 126, %s20
        %p5188 = scmp.lt.s32.totalorder %s19, 1
        %s5189 = scalar_select %p5188, %s19, 1
        %p5190 = scmp.lt.s32.totalorder %s5187, 125
        %s5191 = scalar_select %p5190, %s5187, 125
        %s5192 = smul.addr %s5189, 126
        %s5193 = sadd.s32 %s5191, %s5192
        %s5194 = smul.addr %s5193, 8
        %s5195 = scalar_lea.vmem %s2, %s5194
      $region40: #{_lambda_.1} parent=35 // pred_fallthru
        _
    $region36: #{_lambda_.1} parent=5 // pred_fallthru
      _
  $region6: #{_lambda_.1} parent=0 // loop_footer
    %s12 = sadd.s32 1, %s8
  $region7: #{_lambda_.1} parent=0 // loop_footer_branch
    %7 = sbr.rel target = $region3
  $region8: #{_lambda_.1} parent=0 // loop_exit
    _

</llo_original>
